<compile_context>
chip_gen: v6e
topology: v6e:2x2x1
jax: 0.10.0
libtpu: 0.0.40
codegen_flags: <defaults>
</compile_context>

<pallas_src>
import jax
import jax.numpy as jnp
from jax.experimental import pallas as pl
from jax.experimental.pallas import tpu as pltpu

LANE = 128


def _ceil_to(v, m):
    return ((v + m - 1) // m) * m


# ----------------------------------------------------------------------------
# Fused kernel: 3 x (ChebConv K=2 + ReLU)  ->  channel-max pool  ->  MLP head
# ----------------------------------------------------------------------------
def _make_fused_kernel(batch, fin_pads, fout_pads, n_cheb):
    """Build the fused ChebNet kernel for a static batch / layer config."""

    def kernel(*refs):
        x_ref, l_ref = refs[0], refs[1]
        wa_refs = refs[2:2 + n_cheb]                       # W0 - W2   (fin, fout)
        wb_refs = refs[2 + n_cheb:2 + 2 * n_cheb]          # W1 + 2W2  (fin, fout)
        brow_refs = refs[2 + 2 * n_cheb:2 + 3 * n_cheb]    # (1, fout)
        (w1t_ref, b1c_ref, w2t_ref, b2c_ref,
         w3t_ref, b3c_ref) = refs[2 + 3 * n_cheb:2 + 3 * n_cheb + 6]
        o_ref = refs[-1]

        lap = l_ref[...]                       # (N_pad, N_pad)
        x = x_ref[...]                         # (N_pad, B * fin_pads[0])
        n_pad = lap.shape[0]

        # ---- stacked ChebConv(K=2) + ReLU layers ---------------------------
        cols = None
        for layer in range(n_cheb):
            fin, fout = fin_pads[layer], fout_pads[layer]
            # ONE Laplacian matmul for the whole batch (RHS width = B * fin).
            lx = jnp.dot(lap, x, preferred_element_type=jnp.float32)
            wa = wa_refs[layer][...]           # (fin, fout)
            wb = wb_refs[layer][...]           # (fin, fout)
            # Bias broadcast hoisted out of the batch loop (no per-iter
            # broadcast_in_dim re-materialization).
            bias = jnp.broadcast_to(brow_refs[layer][...], (n_pad, fout))
            cols = []
            for b in range(batch):             # static unroll, 128-aligned slices
                s = b * fin
                xb, lxb = x[:, s:s + fin], lx[:, s:s + fin]
                # out_b = x@W0 + Lx@W1 + (2Lx - x)@W2 + b
                #       = x@(W0-W2) + Lx@(W1+2W2) + b   (weights pre-combined)
                ob = (jnp.dot(xb, wa, preferred_element_type=jnp.float32)
                      + jnp.dot(lxb, wb, preferred_element_type=jnp.float32)
                      + bias)
                cols.append(jnp.maximum(ob, 0.0))    # ReLU; dropout = identity
            if layer < n_cheb - 1:
                # Re-pack into one slab so the next L @ X is a single matmul.
                x = jnp.concatenate(cols, axis=1)    # (N_pad, B * fout)

        # ---- pool + MLP head epilogue (never leaves VMEM) ------------------
        w1t, w2t, w3t = w1t_ref[...], w2t_ref[...], w3t_ref[...]
        b1c, b2c, b3c = b1c_ref[...], b2c_ref[...], b3c_ref[...]
        for b in range(batch):
            # AdaptiveMaxPool2d((nodes, 1)) == max over the channel lanes of
            # batch slab b.  Post-ReLU values are >= 0, so the padded zero
            # lanes cannot change the max; padded node rows are killed by the
            # zero rows of W1 (pre-padded at pack time).
            hb = jnp.max(cols[b], axis=1, keepdims=True)          # (N_pad, 1)
            z = jnp.maximum(
                jnp.dot(w1t, hb, preferred_element_type=jnp.float32) + b1c, 0.0)
            z = jnp.maximum(
                jnp.dot(w2t, z, preferred_element_type=jnp.float32) + b2c, 0.0)
            y = jnp.dot(w3t, z, preferred_element_type=jnp.float32) + b3c
            o_ref[:, b:b + 1] = y.astype(o_ref.dtype)    # (nclass_pad, 1) column

    return kernel


# ----------------------------------------------------------------------------
# Plain-JAX glue: dense scaled Laplacian from the sparse adjacency
# (scatter_add / add_self_loops — sparse gather/scatter stays in glue).
# ----------------------------------------------------------------------------
def build_scaled_laplacian(edge_index, edge_weight, num_nodes):
    row, col = edge_index[0], edge_index[1]
    # NOTE: degree from scatter over `row` only — exactly what the reference does.
    deg = jnp.zeros((num_nodes,), jnp.float32).at[row].add(edge_weight)
    deg_inv_sqrt = deg ** -0.5
    deg_inv_sqrt = jnp.where(jnp.isinf(deg_inv_sqrt), 0.0, deg_inv_sqrt)
    lap_vals = -deg_inv_sqrt[row] * edge_weight * deg_inv_sqrt[col]
    L = jnp.zeros((num_nodes, num_nodes), jnp.float32).at[row, col].add(lap_vals)
    # add_self_loops(..., fill_value=-0.05) then lap *= 2
    L = L + (-0.05) * jnp.eye(num_nodes, dtype=jnp.float32)
    return 2.0 * L


# ----------------------------------------------------------------------------
# Parameter init (mirrors the PyTorch module's shapes/inits)
# ----------------------------------------------------------------------------
def init_params(key, *, nfeat, nfilters, nclass, K, nodes, nhid, gcn_layer):
    n_cheb = 1 + gcn_layer
    keys = jax.random.split(key, n_cheb + 3)

    # ChebConv weights: (K+1, in, out), kaiming_normal fan_in; bias = 0
    cheb = []
    dims = [(nfeat, nfilters)] + [(nfilters, nfilters)] * gcn_layer
    for i, (fin, fout) in enumerate(dims):
        fan_in = fin * fout          # torch's fan_in for a 3-D (K+1, in, out) tensor
        std = (2.0 / fan_in) ** 0.5
        w = std * jax.random.normal(keys[i], (K + 1, fin, fout), jnp.float32)
        cheb.append((w, jnp.zeros((fout,), jnp.float32)))

    # hidden2label Linear layers, stored as (in, out); torch-default uniform init
    def linear(k, fin, fout):
        bound = 1.0 / (fin ** 0.5)
        kw, kb = jax.random.split(k)
        w = jax.random.uniform(kw, (fin, fout), jnp.float32, -bound, bound)
        b = jax.random.uniform(kb, (fout,), jnp.float32, -bound, bound)
        return w, b

    lin1 = linear(keys[n_cheb + 0], nodes, nhid)
    lin2 = linear(keys[n_cheb + 1], nhid, nhid // 4)
    lin3 = linear(keys[n_cheb + 2], nhid // 4, nclass)
    return cheb, (lin1, lin2, lin3)


# ----------------------------------------------------------------------------
# One-time weight packing (done at init/wrapper time, NOT per forward):
#   * pre-combine the K=2 Chebyshev weights:  Wa = W0 - W2,  Wb = W1 + 2*W2
#   * zero-pad every channel-like dim (and the node dim of W1) to 128-multiples
#   * pre-transpose the MLP weights so the head runs without in-kernel transposes
# ----------------------------------------------------------------------------
def pack_params(cheb_params, mlp_params, *, nodes):
    n_pad = _ceil_to(nodes, LANE)

    cheb_packed = []
    for w, b in cheb_params:
        kp1, fin, fout = w.shape
        assert kp1 == 3, "fused kernel is specialized to K=2 (3 Chebyshev terms)"
        fin_p, fout_p = _ceil_to(fin, LANE), _ceil_to(fout, LANE)
        pad2 = ((0, fin_p - fin), (0, fout_p - fout))
        wa = jnp.pad(w[0] - w[2], pad2)            # x-term weight
        wb = jnp.pad(w[1] + 2.0 * w[2], pad2)      # Lx-term weight
        brow = jnp.pad(b, (0, fout_p - fout)).reshape(1, fout_p)
        cheb_packed.append((wa, wb, brow))

    (w1, b1), (w2, b2), (w3, b3) = mlp_params
    nhid_p = _ceil_to(w1.shape[1], LANE)
    nh4_p = _ceil_to(w2.shape[1], LANE)
    ncls_p = _ceil_to(w3.shape[1], LANE)

    def lin_t(w, b, in_p, out_p):
        wp = jnp.pad(w, ((0, in_p - w.shape[0]), (0, out_p - w.shape[1])))
        bc = jnp.pad(b, (0, out_p - b.shape[0])).reshape(out_p, 1)
        return wp.T, bc                                   # pre-transposed

    mlp_packed = (lin_t(w1, b1, n_pad, nhid_p)
                  + lin_t(w2, b2, nhid_p, nh4_p)
                  + lin_t(w3, b3, nh4_p, ncls_p))
    return cheb_packed, mlp_packed


# ----------------------------------------------------------------------------
# Full forward: one fused pallas_call
# ----------------------------------------------------------------------------
def chebnet_forward(inputs, edge_index, edge_weight, cheb_packed, mlp_packed, nclass):
    B, N, nfeat = inputs.shape
    n_pad = _ceil_to(N, LANE)
    n_cheb = len(cheb_packed)
    was = [a for a, _, _ in cheb_packed]
    wbs = [b for _, b, _ in cheb_packed]
    brows = [c for _, _, c in cheb_packed]
    fin_pads = [w.shape[0] for w in was]
    fout_pads = [w.shape[1] for w in was]
    w1t, b1c, w2t, b2c, w3t, b3c = mlp_packed
    nclass_pad = w3t.shape[0]

    # Dense scaled Laplacian (sparse scatter/gather stays in plain-JAX glue),
    # zero-padded to N_pad so padded nodes contribute nothing.
    lap = build_scaled_laplacian(edge_index, edge_weight, N)
    lap = jnp.pad(lap, ((0, n_pad - N), (0, n_pad - N)))

    # Layout plumbing (wrapper side): (B, N, F) -> (N_pad, B*Fin_pad) so the
    # in-kernel L @ X matmul is batched over B along the lane axis.
    xp = jnp.pad(inputs, ((0, 0), (0, n_pad - N), (0, fin_pads[0] - nfeat)))
    x0 = jnp.transpose(xp, (1, 0, 2)).reshape(n_pad, B * fin_pads[0])

    args = [x0, lap] + was + wbs + brows + [w1t, b1c, w2t, b2c, w3t, b3c]
    kernel = _make_fused_kernel(B, fin_pads, fout_pads, n_cheb)

    # Single grid step: all operands (<1 MiB total at these shapes) live as
    # whole-array VMEM blocks and every intermediate stays in VMEM/vregs.
    # TODO(synk): for realistic node counts (N ~ 4k) the dense f32 L alone
    # approaches the VMEM budget — tile L over a reduction grid axis (and/or
    # store it in bf16); unnecessary at demo shapes.
    out = pl.pallas_call(
        kernel,
        out_shape=jax.ShapeDtypeStruct((nclass_pad, B), jnp.float32),
        in_specs=[pl.BlockSpec(memory_space=pltpu.MemorySpace.VMEM)] * len(args),
        out_specs=pl.BlockSpec(memory_space=pltpu.MemorySpace.VMEM),
    )(*args)
    # Un-pad: (nclass_pad, B) -> (B, nclass).
    return out[:nclass, :].T


if __name__ == "__main__":
    # Small, self-consistent shapes (nodes == inputs.shape[1]).
    B, N, NFEAT, NFILT, NCLASS, K, NHID, GCN_LAYER = 2, 16, 8, 8, 3, 2, 32, 2

    key = jax.random.PRNGKey(0)
    k_x, k_p = jax.random.split(key)

    # inputs: (B, N, nfeat)
    inputs = jax.random.normal(k_x, (B, N, NFEAT), jnp.float32)

    # synthetic sparse adjacency: undirected ring graph on N nodes
    src = jnp.arange(N, dtype=jnp.int32)
    dst = (src + 1) % N
    edge_index = jnp.stack([jnp.concatenate([src, dst]),
                            jnp.concatenate([dst, src])])          # (2, 2N)
    edge_weight = jnp.ones((2 * N,), jnp.float32)

    cheb_params, mlp_params = init_params(
        k_p, nfeat=NFEAT, nfilters=NFILT, nclass=NCLASS, K=K,
        nodes=N, nhid=NHID, gcn_layer=GCN_LAYER)

    # One-time packing (weight combination / padding / transposing).
    cheb_packed, mlp_packed = pack_params(cheb_params, mlp_params, nodes=N)

    # TODO(synk): nn.Dropout layers use eval-mode (identity) semantics.
    y = chebnet_forward(inputs, edge_index, edge_weight,
                        cheb_packed, mlp_packed, nclass=NCLASS)
    y = jax.block_until_ready(y)
    assert y.shape == (B, NCLASS) and y.dtype == jnp.float32
    print("KERNEL_OK")
</pallas_src>

<mosaic_0001>
module attributes {stable_mosaic.version = 11 : i64} {
  func.func @kernel(%arg0: memref<128x256xf32, #tpu.memory_space<vmem>>, %arg1: memref<128x128xf32, #tpu.memory_space<vmem>>, %arg2: memref<128x128xf32, #tpu.memory_space<vmem>>, %arg3: memref<128x128xf32, #tpu.memory_space<vmem>>, %arg4: memref<128x128xf32, #tpu.memory_space<vmem>>, %arg5: memref<128x128xf32, #tpu.memory_space<vmem>>, %arg6: memref<128x128xf32, #tpu.memory_space<vmem>>, %arg7: memref<128x128xf32, #tpu.memory_space<vmem>>, %arg8: memref<1x128xf32, #tpu.memory_space<vmem>>, %arg9: memref<1x128xf32, #tpu.memory_space<vmem>>, %arg10: memref<1x128xf32, #tpu.memory_space<vmem>>, %arg11: memref<128x128xf32, #tpu.memory_space<vmem>>, %arg12: memref<128x1xf32, #tpu.memory_space<vmem>>, %arg13: memref<128x128xf32, #tpu.memory_space<vmem>>, %arg14: memref<128x1xf32, #tpu.memory_space<vmem>>, %arg15: memref<128x128xf32, #tpu.memory_space<vmem>>, %arg16: memref<128x1xf32, #tpu.memory_space<vmem>>, %arg17: memref<128x2xf32, #tpu.memory_space<vmem>>) attributes {dimension_semantics = [], scalar_prefetch = 0 : i64, scratch_operands = 0 : i64, tpu.core_type = #tpu.core_type<tc>} {
    %c0 = arith.constant 0 : index
    %c0_0 = arith.constant 0 : index
    %0 = vector.load %arg1[%c0, %c0_0] : memref<128x128xf32, #tpu.memory_space<vmem>>, vector<128x128xf32>
    %c0_1 = arith.constant 0 : index
    %c0_2 = arith.constant 0 : index
    %1 = vector.load %arg0[%c0_1, %c0_2] : memref<128x256xf32, #tpu.memory_space<vmem>>, vector<128x256xf32>
    %cst = arith.constant dense<0.000000e+00> : vector<128x256xf32>
    %2 = tpu.matmul %0, %1, %cst {dimension_numbers = #tpu.dot_dimension_numbers<[1], [0], [0], [1], [0, 0, 1, 1], [], []>} : vector<128x128xf32>, vector<128x256xf32>, vector<128x256xf32> -> vector<128x256xf32>
    %c0_3 = arith.constant 0 : index
    %c0_4 = arith.constant 0 : index
    %3 = vector.load %arg2[%c0_3, %c0_4] : memref<128x128xf32, #tpu.memory_space<vmem>>, vector<128x128xf32>
    %c0_5 = arith.constant 0 : index
    %c0_6 = arith.constant 0 : index
    %4 = vector.load %arg5[%c0_5, %c0_6] : memref<128x128xf32, #tpu.memory_space<vmem>>, vector<128x128xf32>
    %c0_7 = arith.constant 0 : index
    %c0_8 = arith.constant 0 : index
    %5 = vector.load %arg8[%c0_7, %c0_8] : memref<1x128xf32, #tpu.memory_space<vmem>>, vector<1x128xf32>
    %6 = vector.shape_cast %5 : vector<1x128xf32> to vector<1x128xf32>
    %7 = vector.broadcast %6 : vector<1x128xf32> to vector<128x128xf32>
    %8 = vector.extract_strided_slice %1 {offsets = [0, 0], sizes = [128, 128], strides = [1, 1]} : vector<128x256xf32> to vector<128x128xf32>
    %9 = vector.extract_strided_slice %2 {offsets = [0, 0], sizes = [128, 128], strides = [1, 1]} : vector<128x256xf32> to vector<128x128xf32>
    %cst_9 = arith.constant dense<0.000000e+00> : vector<128x128xf32>
    %10 = tpu.matmul %8, %3, %cst_9 {dimension_numbers = #tpu.dot_dimension_numbers<[1], [0], [0], [1], [0, 0, 1, 1], [], []>} : vector<128x128xf32>, vector<128x128xf32>, vector<128x128xf32> -> vector<128x128xf32>
    %cst_10 = arith.constant dense<0.000000e+00> : vector<128x128xf32>
    %11 = tpu.matmul %9, %4, %cst_10 {dimension_numbers = #tpu.dot_dimension_numbers<[1], [0], [0], [1], [0, 0, 1, 1], [], []>} : vector<128x128xf32>, vector<128x128xf32>, vector<128x128xf32> -> vector<128x128xf32>
    %12 = arith.addf %10, %11 : vector<128x128xf32>
    %13 = arith.addf %12, %7 : vector<128x128xf32>
    %cst_11 = arith.constant 0.000000e+00 : f32
    %14 = vector.broadcast %cst_11 : f32 to vector<128x128xf32>
    %15 = arith.maximumf %13, %14 : vector<128x128xf32>
    %16 = vector.extract_strided_slice %1 {offsets = [0, 128], sizes = [128, 128], strides = [1, 1]} : vector<128x256xf32> to vector<128x128xf32>
    %17 = vector.extract_strided_slice %2 {offsets = [0, 128], sizes = [128, 128], strides = [1, 1]} : vector<128x256xf32> to vector<128x128xf32>
    %cst_12 = arith.constant dense<0.000000e+00> : vector<128x128xf32>
    %18 = tpu.matmul %16, %3, %cst_12 {dimension_numbers = #tpu.dot_dimension_numbers<[1], [0], [0], [1], [0, 0, 1, 1], [], []>} : vector<128x128xf32>, vector<128x128xf32>, vector<128x128xf32> -> vector<128x128xf32>
    %cst_13 = arith.constant dense<0.000000e+00> : vector<128x128xf32>
    %19 = tpu.matmul %17, %4, %cst_13 {dimension_numbers = #tpu.dot_dimension_numbers<[1], [0], [0], [1], [0, 0, 1, 1], [], []>} : vector<128x128xf32>, vector<128x128xf32>, vector<128x128xf32> -> vector<128x128xf32>
    %20 = arith.addf %18, %19 : vector<128x128xf32>
    %21 = arith.addf %20, %7 : vector<128x128xf32>
    %cst_14 = arith.constant 0.000000e+00 : f32
    %22 = vector.broadcast %cst_14 : f32 to vector<128x128xf32>
    %23 = arith.maximumf %21, %22 : vector<128x128xf32>
    %24 = tpu.concatenate %15, %23 in 1 : vector<128x128xf32>, vector<128x128xf32> -> vector<128x256xf32>
    %cst_15 = arith.constant dense<0.000000e+00> : vector<128x256xf32>
    %25 = tpu.matmul %0, %24, %cst_15 {dimension_numbers = #tpu.dot_dimension_numbers<[1], [0], [0], [1], [0, 0, 1, 1], [], []>} : vector<128x128xf32>, vector<128x256xf32>, vector<128x256xf32> -> vector<128x256xf32>
    %c0_16 = arith.constant 0 : index
    %c0_17 = arith.constant 0 : index
    %26 = vector.load %arg3[%c0_16, %c0_17] : memref<128x128xf32, #tpu.memory_space<vmem>>, vector<128x128xf32>
    %c0_18 = arith.constant 0 : index
    %c0_19 = arith.constant 0 : index
    %27 = vector.load %arg6[%c0_18, %c0_19] : memref<128x128xf32, #tpu.memory_space<vmem>>, vector<128x128xf32>
    %c0_20 = arith.constant 0 : index
    %c0_21 = arith.constant 0 : index
    %28 = vector.load %arg9[%c0_20, %c0_21] : memref<1x128xf32, #tpu.memory_space<vmem>>, vector<1x128xf32>
    %29 = vector.shape_cast %28 : vector<1x128xf32> to vector<1x128xf32>
    %30 = vector.broadcast %29 : vector<1x128xf32> to vector<128x128xf32>
    %31 = vector.extract_strided_slice %24 {offsets = [0, 0], sizes = [128, 128], strides = [1, 1]} : vector<128x256xf32> to vector<128x128xf32>
    %32 = vector.extract_strided_slice %25 {offsets = [0, 0], sizes = [128, 128], strides = [1, 1]} : vector<128x256xf32> to vector<128x128xf32>
    %cst_22 = arith.constant dense<0.000000e+00> : vector<128x128xf32>
    %33 = tpu.matmul %31, %26, %cst_22 {dimension_numbers = #tpu.dot_dimension_numbers<[1], [0], [0], [1], [0, 0, 1, 1], [], []>} : vector<128x128xf32>, vector<128x128xf32>, vector<128x128xf32> -> vector<128x128xf32>
    %cst_23 = arith.constant dense<0.000000e+00> : vector<128x128xf32>
    %34 = tpu.matmul %32, %27, %cst_23 {dimension_numbers = #tpu.dot_dimension_numbers<[1], [0], [0], [1], [0, 0, 1, 1], [], []>} : vector<128x128xf32>, vector<128x128xf32>, vector<128x128xf32> -> vector<128x128xf32>
    %35 = arith.addf %33, %34 : vector<128x128xf32>
    %36 = arith.addf %35, %30 : vector<128x128xf32>
    %cst_24 = arith.constant 0.000000e+00 : f32
    %37 = vector.broadcast %cst_24 : f32 to vector<128x128xf32>
    %38 = arith.maximumf %36, %37 : vector<128x128xf32>
    %39 = vector.extract_strided_slice %24 {offsets = [0, 128], sizes = [128, 128], strides = [1, 1]} : vector<128x256xf32> to vector<128x128xf32>
    %40 = vector.extract_strided_slice %25 {offsets = [0, 128], sizes = [128, 128], strides = [1, 1]} : vector<128x256xf32> to vector<128x128xf32>
    %cst_25 = arith.constant dense<0.000000e+00> : vector<128x128xf32>
    %41 = tpu.matmul %39, %26, %cst_25 {dimension_numbers = #tpu.dot_dimension_numbers<[1], [0], [0], [1], [0, 0, 1, 1], [], []>} : vector<128x128xf32>, vector<128x128xf32>, vector<128x128xf32> -> vector<128x128xf32>
    %cst_26 = arith.constant dense<0.000000e+00> : vector<128x128xf32>
    %42 = tpu.matmul %40, %27, %cst_26 {dimension_numbers = #tpu.dot_dimension_numbers<[1], [0], [0], [1], [0, 0, 1, 1], [], []>} : vector<128x128xf32>, vector<128x128xf32>, vector<128x128xf32> -> vector<128x128xf32>
    %43 = arith.addf %41, %42 : vector<128x128xf32>
    %44 = arith.addf %43, %30 : vector<128x128xf32>
    %cst_27 = arith.constant 0.000000e+00 : f32
    %45 = vector.broadcast %cst_27 : f32 to vector<128x128xf32>
    %46 = arith.maximumf %44, %45 : vector<128x128xf32>
    %47 = tpu.concatenate %38, %46 in 1 : vector<128x128xf32>, vector<128x128xf32> -> vector<128x256xf32>
    %cst_28 = arith.constant dense<0.000000e+00> : vector<128x256xf32>
    %48 = tpu.matmul %0, %47, %cst_28 {dimension_numbers = #tpu.dot_dimension_numbers<[1], [0], [0], [1], [0, 0, 1, 1], [], []>} : vector<128x128xf32>, vector<128x256xf32>, vector<128x256xf32> -> vector<128x256xf32>
    %c0_29 = arith.constant 0 : index
    %c0_30 = arith.constant 0 : index
    %49 = vector.load %arg4[%c0_29, %c0_30] : memref<128x128xf32, #tpu.memory_space<vmem>>, vector<128x128xf32>
    %c0_31 = arith.constant 0 : index
    %c0_32 = arith.constant 0 : index
    %50 = vector.load %arg7[%c0_31, %c0_32] : memref<128x128xf32, #tpu.memory_space<vmem>>, vector<128x128xf32>
    %c0_33 = arith.constant 0 : index
    %c0_34 = arith.constant 0 : index
    %51 = vector.load %arg10[%c0_33, %c0_34] : memref<1x128xf32, #tpu.memory_space<vmem>>, vector<1x128xf32>
    %52 = vector.shape_cast %51 : vector<1x128xf32> to vector<1x128xf32>
    %53 = vector.broadcast %52 : vector<1x128xf32> to vector<128x128xf32>
    %54 = vector.extract_strided_slice %47 {offsets = [0, 0], sizes = [128, 128], strides = [1, 1]} : vector<128x256xf32> to vector<128x128xf32>
    %55 = vector.extract_strided_slice %48 {offsets = [0, 0], sizes = [128, 128], strides = [1, 1]} : vector<128x256xf32> to vector<128x128xf32>
    %cst_35 = arith.constant dense<0.000000e+00> : vector<128x128xf32>
    %56 = tpu.matmul %54, %49, %cst_35 {dimension_numbers = #tpu.dot_dimension_numbers<[1], [0], [0], [1], [0, 0, 1, 1], [], []>} : vector<128x128xf32>, vector<128x128xf32>, vector<128x128xf32> -> vector<128x128xf32>
    %cst_36 = arith.constant dense<0.000000e+00> : vector<128x128xf32>
    %57 = tpu.matmul %55, %50, %cst_36 {dimension_numbers = #tpu.dot_dimension_numbers<[1], [0], [0], [1], [0, 0, 1, 1], [], []>} : vector<128x128xf32>, vector<128x128xf32>, vector<128x128xf32> -> vector<128x128xf32>
    %58 = arith.addf %56, %57 : vector<128x128xf32>
    %59 = arith.addf %58, %53 : vector<128x128xf32>
    %cst_37 = arith.constant 0.000000e+00 : f32
    %60 = vector.broadcast %cst_37 : f32 to vector<128x128xf32>
    %61 = arith.maximumf %59, %60 : vector<128x128xf32>
    %62 = vector.extract_strided_slice %47 {offsets = [0, 128], sizes = [128, 128], strides = [1, 1]} : vector<128x256xf32> to vector<128x128xf32>
    %63 = vector.extract_strided_slice %48 {offsets = [0, 128], sizes = [128, 128], strides = [1, 1]} : vector<128x256xf32> to vector<128x128xf32>
    %cst_38 = arith.constant dense<0.000000e+00> : vector<128x128xf32>
    %64 = tpu.matmul %62, %49, %cst_38 {dimension_numbers = #tpu.dot_dimension_numbers<[1], [0], [0], [1], [0, 0, 1, 1], [], []>} : vector<128x128xf32>, vector<128x128xf32>, vector<128x128xf32> -> vector<128x128xf32>
    %cst_39 = arith.constant dense<0.000000e+00> : vector<128x128xf32>
    %65 = tpu.matmul %63, %50, %cst_39 {dimension_numbers = #tpu.dot_dimension_numbers<[1], [0], [0], [1], [0, 0, 1, 1], [], []>} : vector<128x128xf32>, vector<128x128xf32>, vector<128x128xf32> -> vector<128x128xf32>
    %66 = arith.addf %64, %65 : vector<128x128xf32>
    %67 = arith.addf %66, %53 : vector<128x128xf32>
    %cst_40 = arith.constant 0.000000e+00 : f32
    %68 = vector.broadcast %cst_40 : f32 to vector<128x128xf32>
    %69 = arith.maximumf %67, %68 : vector<128x128xf32>
    %c0_41 = arith.constant 0 : index
    %c0_42 = arith.constant 0 : index
    %70 = vector.load %arg11[%c0_41, %c0_42] : memref<128x128xf32, #tpu.memory_space<vmem>>, vector<128x128xf32>
    %c0_43 = arith.constant 0 : index
    %c0_44 = arith.constant 0 : index
    %71 = vector.load %arg13[%c0_43, %c0_44] : memref<128x128xf32, #tpu.memory_space<vmem>>, vector<128x128xf32>
    %c0_45 = arith.constant 0 : index
    %c0_46 = arith.constant 0 : index
    %72 = vector.load %arg15[%c0_45, %c0_46] : memref<128x128xf32, #tpu.memory_space<vmem>>, vector<128x128xf32>
    %c0_47 = arith.constant 0 : index
    %c0_48 = arith.constant 0 : index
    %73 = vector.load %arg12[%c0_47, %c0_48] : memref<128x1xf32, #tpu.memory_space<vmem>>, vector<128x1xf32>
    %c0_49 = arith.constant 0 : index
    %c0_50 = arith.constant 0 : index
    %74 = vector.load %arg14[%c0_49, %c0_50] : memref<128x1xf32, #tpu.memory_space<vmem>>, vector<128x1xf32>
    %c0_51 = arith.constant 0 : index
    %c0_52 = arith.constant 0 : index
    %75 = vector.load %arg16[%c0_51, %c0_52] : memref<128x1xf32, #tpu.memory_space<vmem>>, vector<128x1xf32>
    %cst_53 = arith.constant dense<0xFF800000> : vector<128xf32>
    %76 = vector.multi_reduction <maximumf>, %61, %cst_53 [1] : vector<128x128xf32> to vector<128xf32>
    %77 = vector.shape_cast %76 : vector<128xf32> to vector<128x1xf32>
    %cst_54 = arith.constant dense<0.000000e+00> : vector<128x1xf32>
    %78 = tpu.matmul %70, %77, %cst_54 {dimension_numbers = #tpu.dot_dimension_numbers<[1], [0], [0], [1], [0, 0, 1, 1], [], []>} : vector<128x128xf32>, vector<128x1xf32>, vector<128x1xf32> -> vector<128x1xf32>
    %79 = arith.addf %78, %73 : vector<128x1xf32>
    %cst_55 = arith.constant 0.000000e+00 : f32
    %80 = vector.broadcast %cst_55 : f32 to vector<128x1xf32>
    %81 = arith.maximumf %79, %80 : vector<128x1xf32>
    %cst_56 = arith.constant dense<0.000000e+00> : vector<128x1xf32>
    %82 = tpu.matmul %71, %81, %cst_56 {dimension_numbers = #tpu.dot_dimension_numbers<[1], [0], [0], [1], [0, 0, 1, 1], [], []>} : vector<128x128xf32>, vector<128x1xf32>, vector<128x1xf32> -> vector<128x1xf32>
    %83 = arith.addf %82, %74 : vector<128x1xf32>
    %cst_57 = arith.constant 0.000000e+00 : f32
    %84 = vector.broadcast %cst_57 : f32 to vector<128x1xf32>
    %85 = arith.maximumf %83, %84 : vector<128x1xf32>
    %cst_58 = arith.constant dense<0.000000e+00> : vector<128x1xf32>
    %86 = tpu.matmul %72, %85, %cst_58 {dimension_numbers = #tpu.dot_dimension_numbers<[1], [0], [0], [1], [0, 0, 1, 1], [], []>} : vector<128x128xf32>, vector<128x1xf32>, vector<128x1xf32> -> vector<128x1xf32>
    %87 = arith.addf %86, %75 : vector<128x1xf32>
    %c0_59 = arith.constant 0 : index
    %c0_60 = arith.constant 0 : index
    %88 = vector.load %arg17[%c0_59, %c0_60] : memref<128x2xf32, #tpu.memory_space<vmem>>, vector<128x1xf32>
    tpu.vector_store %arg17[%c0_59, %c0_60], %87 {strides = array<i32>} : memref<128x2xf32, #tpu.memory_space<vmem>>, vector<128x1xf32>,
    %cst_61 = arith.constant dense<0xFF800000> : vector<128xf32>
    %89 = vector.multi_reduction <maximumf>, %69, %cst_61 [1] : vector<128x128xf32> to vector<128xf32>
    %90 = vector.shape_cast %89 : vector<128xf32> to vector<128x1xf32>
    %cst_62 = arith.constant dense<0.000000e+00> : vector<128x1xf32>
    %91 = tpu.matmul %70, %90, %cst_62 {dimension_numbers = #tpu.dot_dimension_numbers<[1], [0], [0], [1], [0, 0, 1, 1], [], []>} : vector<128x128xf32>, vector<128x1xf32>, vector<128x1xf32> -> vector<128x1xf32>
    %92 = arith.addf %91, %73 : vector<128x1xf32>
    %cst_63 = arith.constant 0.000000e+00 : f32
    %93 = vector.broadcast %cst_63 : f32 to vector<128x1xf32>
    %94 = arith.maximumf %92, %93 : vector<128x1xf32>
    %cst_64 = arith.constant dense<0.000000e+00> : vector<128x1xf32>
    %95 = tpu.matmul %71, %94, %cst_64 {dimension_numbers = #tpu.dot_dimension_numbers<[1], [0], [0], [1], [0, 0, 1, 1], [], []>} : vector<128x128xf32>, vector<128x1xf32>, vector<128x1xf32> -> vector<128x1xf32>
    %96 = arith.addf %95, %74 : vector<128x1xf32>
    %cst_65 = arith.constant 0.000000e+00 : f32
    %97 = vector.broadcast %cst_65 : f32 to vector<128x1xf32>
    %98 = arith.maximumf %96, %97 : vector<128x1xf32>
    %cst_66 = arith.constant dense<0.000000e+00> : vector<128x1xf32>
    %99 = tpu.matmul %72, %98, %cst_66 {dimension_numbers = #tpu.dot_dimension_numbers<[1], [0], [0], [1], [0, 0, 1, 1], [], []>} : vector<128x128xf32>, vector<128x1xf32>, vector<128x1xf32> -> vector<128x1xf32>
    %100 = arith.addf %99, %75 : vector<128x1xf32>
    %c0_67 = arith.constant 0 : index
    %c1 = arith.constant 1 : index
    %101 = vector.load %arg17[%c0_67, %c1] : memref<128x2xf32, #tpu.memory_space<vmem>>, vector<128x1xf32>
    tpu.vector_store %arg17[%c0_67, %c1], %100 {strides = array<i32>} : memref<128x2xf32, #tpu.memory_space<vmem>>, vector<128x1xf32>,
    return
  }
}

</mosaic_0001>

<llo_original>
// kernel: tpu_custom_call.1
$region0: #{tpu_custom_call.1}
  #allocation0 [shape = 'u32[]', space=smem, size = 0x4, offset = 0x4, fixed_abs, tag = 'smem constant byte address 0x4 - core index']
  #allocation1 [shape = 'u32[144,128]{1,0:T(1,128)}', space=vmem, size = 0x12000, scoped, tag = 'internal scratch']
  %s0 = inlined_call_operand.vmem [shape: f32[128,256], index: 0, kind: input, shape index: {}]
  %s1 = inlined_call_operand.vmem [shape: f32[128,128], index: 1, kind: input, shape index: {}]
  %s2 = inlined_call_operand.hbm [shape: f32[128,128], index: 2, kind: input, shape index: {}]
  %s3 = inlined_call_operand.hbm [shape: f32[128,128], index: 3, kind: input, shape index: {}]
  %s4 = inlined_call_operand.hbm [shape: f32[128,128], index: 4, kind: input, shape index: {}]
  %s5 = inlined_call_operand.hbm [shape: f32[128,128], index: 5, kind: input, shape index: {}]
  %s6 = inlined_call_operand.hbm [shape: f32[128,128], index: 6, kind: input, shape index: {}]
  %s7 = inlined_call_operand.hbm [shape: f32[128,128], index: 7, kind: input, shape index: {}]
  %s8 = inlined_call_operand.vmem [shape: f32[1,128], index: 8, kind: input, shape index: {}]
  %s9 = inlined_call_operand.vmem [shape: f32[1,128], index: 9, kind: input, shape index: {}]
  %s10 = inlined_call_operand.vmem [shape: f32[1,128], index: 10, kind: input, shape index: {}]
  %s11 = inlined_call_operand.hbm [shape: f32[128,128], index: 11, kind: input, shape index: {}]
  %s12 = inlined_call_operand.vmem [shape: f32[128,1], index: 12, kind: input, shape index: {}]
  %s13 = inlined_call_operand.hbm [shape: f32[128,128], index: 13, kind: input, shape index: {}]
  %s14 = inlined_call_operand.vmem [shape: f32[128,1], index: 14, kind: input, shape index: {}]
  %s15 = inlined_call_operand.hbm [shape: f32[128,128], index: 15, kind: input, shape index: {}]
  %s16 = inlined_call_operand.vmem [shape: f32[128,1], index: 16, kind: input, shape index: {}]
  %s17 = inlined_call_operand.vmem [shape: f32[128,2], index: 17, kind: output, shape index: {}]
  %s18 = sld [smem:[#allocation0]]
  $region114: #{tpu_custom_call.1} parent=0
    _
  %s20 = ssub.s32 1, %s18
  %s21 = scalar_select 0, %s20, %s18
  $region1: #{tpu_custom_call.1} parent=0
    #allocation2 [shape = 'u8[65536]{0}', space=vmem, size = 0x10000, scoped, tag = 'input window, operand 2, single buffered']
    #allocation3 [shape = 's32[1]{0}', space=sflag, size = 0x4, scoped, tag = 'scoped memory for tpu_custom_call.1']
    #allocation4 [shape = 'u8[65536]{0}', space=vmem, size = 0x10000, scoped, tag = 'input window, operand 3, single buffered']
    #allocation5 [shape = 's32[1]{0}', space=sflag, size = 0x4, scoped, tag = 'scoped memory for tpu_custom_call.1']
    #allocation6 [shape = 'u8[65536]{0}', space=vmem, size = 0x10000, scoped, tag = 'input window, operand 4, single buffered']
    #allocation7 [shape = 'u8[65536]{0}', space=vmem, size = 0x10000, scoped, tag = 'input window, operand 5, single buffered']
    #allocation8 [shape = 's32[1]{0}', space=sflag, size = 0x4, scoped, tag = 'scoped memory for tpu_custom_call.1']
    #allocation9 [shape = 'u8[65536]{0}', space=vmem, size = 0x10000, scoped, tag = 'input window, operand 6, single buffered']
    #allocation10 [shape = 'u8[65536]{0}', space=vmem, size = 0x10000, scoped, tag = 'input window, operand 7, single buffered']
    #allocation11 [shape = 's32[1]{0}', space=sflag, size = 0x4, scoped, tag = 'scoped memory for tpu_custom_call.1']
    #allocation12 [shape = 'u8[65536]{0}', space=vmem, size = 0x10000, scoped, tag = 'input window, operand 11, single buffered']
    #allocation13 [shape = 'u8[65536]{0}', space=vmem, size = 0x10000, scoped, tag = 'input window, operand 13, single buffered']
    #allocation14 [shape = 's32[1]{0}', space=sflag, size = 0x4, scoped, tag = 'scoped memory for tpu_custom_call.1']
    #allocation15 [shape = 'u8[65536]{0}', space=vmem, size = 0x10000, scoped, tag = 'input window, operand 15, single buffered']
    %22 = vsyncpa [#allocation3], 0
    %23 = vsyncpa [#allocation5], 0
    %24 = vsyncpa [#allocation8], 0
    %25 = vsyncpa [#allocation11], 0
    %26 = vsyncpa [#allocation14], 0
    // Predicated region
    $region2: #{tpu_custom_call.1} parent=1 // pred_check
      _
    $region3: #{tpu_custom_call.1} parent=1 // pred_check_branch
      %28 = sbr.rel (0) target = $region5
    $region4: #{tpu_custom_call.1} parent=1 // pred_region
      _
    $region5: #{tpu_custom_call.1} parent=1 // pred_fallthru
      _
    // Predicated region
    $region6: #{tpu_custom_call.1} parent=1 // pred_check
      _
    $region7: #{tpu_custom_call.1} parent=1 // pred_check_branch
      %30 = sbr.rel (0) target = $region9
    $region8: #{tpu_custom_call.1} parent=1 // pred_region
      _
    $region9: #{tpu_custom_call.1} parent=1 // pred_fallthru
      _
    // Predicated region
    $region10: #{tpu_custom_call.1} parent=1 // pred_check
      _
    $region11: #{tpu_custom_call.1} parent=1 // pred_check_branch
      %32 = sbr.rel (0) target = $region13
    $region12: #{tpu_custom_call.1} parent=1 // pred_region
      %s34 = ssub.s32 2048, 2048
      %35 = vsyncadd [#allocation3], %s34
      %s36 = sshll.u32 [#allocation2], 4
      %s37 = int_to_ptr.vmem [resolvable:$true] %s36
      %42 = dma.hbm_to_vmem [thread:$0]  %s2, 2048, %s37, [#allocation3], 128, 128, 8
    $region13: #{tpu_custom_call.1} parent=1 // pred_fallthru
      _
    // Predicated region
    $region14: #{tpu_custom_call.1} parent=1 // pred_check
      _
    $region15: #{tpu_custom_call.1} parent=1 // pred_check_branch
      %44 = sbr.rel (0) target = $region17
    $region16: #{tpu_custom_call.1} parent=1 // pred_region
      %s46 = ssub.s32 2048, 2048
      %47 = vsyncadd [#allocation5], %s46
      %s48 = sshll.u32 [#allocation4], 4
      %s49 = int_to_ptr.vmem [resolvable:$true] %s48
      %54 = dma.hbm_to_vmem [thread:$0]  %s3, 2048, %s49, [#allocation5], 128, 128, 8
    $region17: #{tpu_custom_call.1} parent=1 // pred_fallthru
      _
    // Predicated region
    $region18: #{tpu_custom_call.1} parent=1 // pred_check
      _
    $region19: #{tpu_custom_call.1} parent=1 // pred_check_branch
      %56 = sbr.rel (0) target = $region21
    $region20: #{tpu_custom_call.1} parent=1 // pred_region
      %s58 = ssub.s32 2048, 2048
      %59 = vsyncadd [#allocation5], %s58
      %s60 = sshll.u32 [#allocation6], 4
      %s61 = int_to_ptr.vmem [resolvable:$true] %s60
      %66 = dma.hbm_to_vmem [thread:$0]  %s4, 2048, %s61, [#allocation5], 128, 128, 8
    $region21: #{tpu_custom_call.1} parent=1 // pred_fallthru
      _
    // Predicated region
    $region22: #{tpu_custom_call.1} parent=1 // pred_check
      _
    $region23: #{tpu_custom_call.1} parent=1 // pred_check_branch
      %68 = sbr.rel (0) target = $region25
    $region24: #{tpu_custom_call.1} parent=1 // pred_region
      %s70 = ssub.s32 2048, 2048
      %71 = vsyncadd [#allocation8], %s70
      %s72 = sshll.u32 [#allocation7], 4
      %s73 = int_to_ptr.vmem [resolvable:$true] %s72
      %78 = dma.hbm_to_vmem [thread:$0]  %s5, 2048, %s73, [#allocation8], 128, 128, 8
    $region25: #{tpu_custom_call.1} parent=1 // pred_fallthru
      _
    // Predicated region
    $region26: #{tpu_custom_call.1} parent=1 // pred_check
      _
    $region27: #{tpu_custom_call.1} parent=1 // pred_check_branch
      %80 = sbr.rel (0) target = $region29
    $region28: #{tpu_custom_call.1} parent=1 // pred_region
      %s82 = ssub.s32 2048, 2048
      %83 = vsyncadd [#allocation8], %s82
      %s84 = sshll.u32 [#allocation9], 4
      %s85 = int_to_ptr.vmem [resolvable:$true] %s84
      %90 = dma.hbm_to_vmem [thread:$0]  %s6, 2048, %s85, [#allocation8], 128, 128, 8
    $region29: #{tpu_custom_call.1} parent=1 // pred_fallthru
      _
    // Predicated region
    $region30: #{tpu_custom_call.1} parent=1 // pred_check
      _
    $region31: #{tpu_custom_call.1} parent=1 // pred_check_branch
      %92 = sbr.rel (0) target = $region33
    $region32: #{tpu_custom_call.1} parent=1 // pred_region
      %s94 = ssub.s32 2048, 2048
      %95 = vsyncadd [#allocation11], %s94
      %s96 = sshll.u32 [#allocation10], 4
      %s97 = int_to_ptr.vmem [resolvable:$true] %s96
      %102 = dma.hbm_to_vmem [thread:$0]  %s7, 2048, %s97, [#allocation11], 128, 128, 8
    $region33: #{tpu_custom_call.1} parent=1 // pred_fallthru
      _
    // Predicated region
    $region34: #{tpu_custom_call.1} parent=1 // pred_check
      _
    $region35: #{tpu_custom_call.1} parent=1 // pred_check_branch
      %104 = sbr.rel (0) target = $region37
    $region36: #{tpu_custom_call.1} parent=1 // pred_region
      _
    $region37: #{tpu_custom_call.1} parent=1 // pred_fallthru
      _
    // Predicated region
    $region38: #{tpu_custom_call.1} parent=1 // pred_check
      _
    $region39: #{tpu_custom_call.1} parent=1 // pred_check_branch
      %106 = sbr.rel (0) target = $region41
    $region40: #{tpu_custom_call.1} parent=1 // pred_region
      _
    $region41: #{tpu_custom_call.1} parent=1 // pred_fallthru
      _
    // Predicated region
    $region42: #{tpu_custom_call.1} parent=1 // pred_check
      _
    $region43: #{tpu_custom_call.1} parent=1 // pred_check_branch
      %108 = sbr.rel (0) target = $region45
    $region44: #{tpu_custom_call.1} parent=1 // pred_region
      _
    $region45: #{tpu_custom_call.1} parent=1 // pred_fallthru
      _
    // Predicated region
    $region46: #{tpu_custom_call.1} parent=1 // pred_check
      _
    $region47: #{tpu_custom_call.1} parent=1 // pred_check_branch
      %110 = sbr.rel (0) target = $region49
    $region48: #{tpu_custom_call.1} parent=1 // pred_region
      %s112 = ssub.s32 2048, 2048
      %113 = vsyncadd [#allocation11], %s112
      %s114 = sshll.u32 [#allocation12], 4
      %s115 = int_to_ptr.vmem [resolvable:$true] %s114
      %120 = dma.hbm_to_vmem [thread:$0]  %s11, 2048, %s115, [#allocation11], 128, 128, 8
    $region49: #{tpu_custom_call.1} parent=1 // pred_fallthru
      _
    // Predicated region
    $region50: #{tpu_custom_call.1} parent=1 // pred_check
      _
    $region51: #{tpu_custom_call.1} parent=1 // pred_check_branch
      %122 = sbr.rel (0) target = $region53
    $region52: #{tpu_custom_call.1} parent=1 // pred_region
      _
    $region53: #{tpu_custom_call.1} parent=1 // pred_fallthru
      _
    // Predicated region
    $region54: #{tpu_custom_call.1} parent=1 // pred_check
      _
    $region55: #{tpu_custom_call.1} parent=1 // pred_check_branch
      %124 = sbr.rel (0) target = $region57
    $region56: #{tpu_custom_call.1} parent=1 // pred_region
      %s126 = ssub.s32 2048, 2048
      %127 = vsyncadd [#allocation14], %s126
      %s128 = sshll.u32 [#allocation13], 4
      %s129 = int_to_ptr.vmem [resolvable:$true] %s128
      %134 = dma.hbm_to_vmem [thread:$0]  %s13, 2048, %s129, [#allocation14], 128, 128, 8
    $region57: #{tpu_custom_call.1} parent=1 // pred_fallthru
      _
    // Predicated region
    $region58: #{tpu_custom_call.1} parent=1 // pred_check
      _
    $region59: #{tpu_custom_call.1} parent=1 // pred_check_branch
      %136 = sbr.rel (0) target = $region61
    $region60: #{tpu_custom_call.1} parent=1 // pred_region
      _
    $region61: #{tpu_custom_call.1} parent=1 // pred_fallthru
      _
    // Predicated region
    $region62: #{tpu_custom_call.1} parent=1 // pred_check
      _
    $region63: #{tpu_custom_call.1} parent=1 // pred_check_branch
      %138 = sbr.rel (0) target = $region65
    $region64: #{tpu_custom_call.1} parent=1 // pred_region
      %s140 = ssub.s32 2048, 2048
      %141 = vsyncadd [#allocation14], %s140
      %s142 = sshll.u32 [#allocation15], 4
      %s143 = int_to_ptr.vmem [resolvable:$true] %s142
      %148 = dma.hbm_to_vmem [thread:$0]  %s15, 2048, %s143, [#allocation14], 128, 128, 8
    $region65: #{tpu_custom_call.1} parent=1 // pred_fallthru
      _
    // Predicated region
    $region66: #{tpu_custom_call.1} parent=1 // pred_check
      _
    $region67: #{tpu_custom_call.1} parent=1 // pred_check_branch
      %150 = sbr.rel (0) target = $region69
    $region68: #{tpu_custom_call.1} parent=1 // pred_region
      _
    $region69: #{tpu_custom_call.1} parent=1 // pred_fallthru
      _
    // Predicated region
    $region70: #{tpu_custom_call.1} parent=1 // pred_check
      _
    $region71: #{tpu_custom_call.1} parent=1 // pred_check_branch
      %152 = sbr.rel (0) target = $region73
    $region72: #{tpu_custom_call.1} parent=1 // pred_region
      %153 = dma.done [#allocation3], 2048
    $region73: #{tpu_custom_call.1} parent=1 // pred_fallthru
      _
    // Predicated region
    $region74: #{tpu_custom_call.1} parent=1 // pred_check
      _
    $region75: #{tpu_custom_call.1} parent=1 // pred_check_branch
      %155 = sbr.rel (0) target = $region77
    $region76: #{tpu_custom_call.1} parent=1 // pred_region
      %156 = dma.done [#allocation5], 2048
    $region77: #{tpu_custom_call.1} parent=1 // pred_fallthru
      _
    // Predicated region
    $region78: #{tpu_custom_call.1} parent=1 // pred_check
      _
    $region79: #{tpu_custom_call.1} parent=1 // pred_check_branch
      %158 = sbr.rel (0) target = $region81
    $region80: #{tpu_custom_call.1} parent=1 // pred_region
      %159 = dma.done [#allocation5], 2048
    $region81: #{tpu_custom_call.1} parent=1 // pred_fallthru
      _
    // Predicated region
    $region82: #{tpu_custom_call.1} parent=1 // pred_check
      _
    $region83: #{tpu_custom_call.1} parent=1 // pred_check_branch
      %161 = sbr.rel (0) target = $region85
    $region84: #{tpu_custom_call.1} parent=1 // pred_region
      %162 = dma.done [#allocation8], 2048
    $region85: #{tpu_custom_call.1} parent=1 // pred_fallthru
      _
    // Predicated region
    $region86: #{tpu_custom_call.1} parent=1 // pred_check
      _
    $region87: #{tpu_custom_call.1} parent=1 // pred_check_branch
      %164 = sbr.rel (0) target = $region89
    $region88: #{tpu_custom_call.1} parent=1 // pred_region
      %165 = dma.done [#allocation8], 2048
    $region89: #{tpu_custom_call.1} parent=1 // pred_fallthru
      _
    // Predicated region
    $region90: #{tpu_custom_call.1} parent=1 // pred_check
      _
    $region91: #{tpu_custom_call.1} parent=1 // pred_check_branch
      %167 = sbr.rel (0) target = $region93
    $region92: #{tpu_custom_call.1} parent=1 // pred_region
      %168 = dma.done [#allocation11], 2048
    $region93: #{tpu_custom_call.1} parent=1 // pred_fallthru
      _
    // Predicated region
    $region94: #{tpu_custom_call.1} parent=1 // pred_check
      _
    $region95: #{tpu_custom_call.1} parent=1 // pred_check_branch
      %170 = sbr.rel (0) target = $region97
    $region96: #{tpu_custom_call.1} parent=1 // pred_region
      %171 = dma.done [#allocation11], 2048
    $region97: #{tpu_custom_call.1} parent=1 // pred_fallthru
      _
    // Predicated region
    $region98: #{tpu_custom_call.1} parent=1 // pred_check
      _
    $region99: #{tpu_custom_call.1} parent=1 // pred_check_branch
      %173 = sbr.rel (0) target = $region101
    $region100: #{tpu_custom_call.1} parent=1 // pred_region
      %174 = dma.done [#allocation14], 2048
    $region101: #{tpu_custom_call.1} parent=1 // pred_fallthru
      _
    // Predicated region
    $region102: #{tpu_custom_call.1} parent=1 // pred_check
      _
    $region103: #{tpu_custom_call.1} parent=1 // pred_check_branch
      %176 = sbr.rel (0) target = $region105
    $region104: #{tpu_custom_call.1} parent=1 // pred_region
      %177 = dma.done [#allocation14], 2048
    $region105: #{tpu_custom_call.1} parent=1 // pred_fallthru
      _
    %v178 = vld [vmem:[%s1] sm:$0xff]
    %v179 = vld [vmem:[%s1 + $0x8] sm:$0xff]
    %v180 = vld [vmem:[%s1 + $0x10] sm:$0xff]
    %v181 = vld [vmem:[%s1 + $0x18] sm:$0xff]
    %v182 = vld [vmem:[%s1 + $0x20] sm:$0xff]
    %v183 = vld [vmem:[%s1 + $0x28] sm:$0xff]
    %v184 = vld [vmem:[%s1 + $0x30] sm:$0xff]
    %v185 = vld [vmem:[%s1 + $0x38] sm:$0xff]
    %v186 = vld [vmem:[%s1 + $0x40] sm:$0xff]
    %v187 = vld [vmem:[%s1 + $0x48] sm:$0xff]
    %v188 = vld [vmem:[%s1 + $0x50] sm:$0xff]
    %v189 = vld [vmem:[%s1 + $0x58] sm:$0xff]
    %v190 = vld [vmem:[%s1 + $0x60] sm:$0xff]
    %v191 = vld [vmem:[%s1 + $0x68] sm:$0xff]
    %v192 = vld [vmem:[%s1 + $0x70] sm:$0xff]
    %v193 = vld [vmem:[%s1 + $0x78] sm:$0xff]
    %v194 = vld [vmem:[%s0] sm:$0xff]
    %v195 = vld [vmem:[%s0 + $0x8] sm:$0xff]
    %v196 = vld [vmem:[%s0 + $0x10] sm:$0xff]
    %v197 = vld [vmem:[%s0 + $0x18] sm:$0xff]
    %v198 = vld [vmem:[%s0 + $0x20] sm:$0xff]
    %v199 = vld [vmem:[%s0 + $0x28] sm:$0xff]
    %v200 = vld [vmem:[%s0 + $0x30] sm:$0xff]
    %v201 = vld [vmem:[%s0 + $0x38] sm:$0xff]
    %v202 = vld [vmem:[%s0 + $0x40] sm:$0xff]
    %v203 = vld [vmem:[%s0 + $0x48] sm:$0xff]
    %v204 = vld [vmem:[%s0 + $0x50] sm:$0xff]
    %v205 = vld [vmem:[%s0 + $0x58] sm:$0xff]
    %v206 = vld [vmem:[%s0 + $0x60] sm:$0xff]
    %v207 = vld [vmem:[%s0 + $0x68] sm:$0xff]
    %v208 = vld [vmem:[%s0 + $0x70] sm:$0xff]
    %v209 = vld [vmem:[%s0 + $0x78] sm:$0xff]
    %v210 = vld [vmem:[%s0 + $0x80] sm:$0xff]
    %v211 = vld [vmem:[%s0 + $0x88] sm:$0xff]
    %v212 = vld [vmem:[%s0 + $0x90] sm:$0xff]
    %v213 = vld [vmem:[%s0 + $0x98] sm:$0xff]
    %v214 = vld [vmem:[%s0 + $0xa0] sm:$0xff]
    %v215 = vld [vmem:[%s0 + $0xa8] sm:$0xff]
    %v216 = vld [vmem:[%s0 + $0xb0] sm:$0xff]
    %v217 = vld [vmem:[%s0 + $0xb8] sm:$0xff]
    %v218 = vld [vmem:[%s0 + $0xc0] sm:$0xff]
    %v219 = vld [vmem:[%s0 + $0xc8] sm:$0xff]
    %v220 = vld [vmem:[%s0 + $0xd0] sm:$0xff]
    %v221 = vld [vmem:[%s0 + $0xd8] sm:$0xff]
    %v222 = vld [vmem:[%s0 + $0xe0] sm:$0xff]
    %v223 = vld [vmem:[%s0 + $0xe8] sm:$0xff]
    %v224 = vld [vmem:[%s0 + $0xf0] sm:$0xff]
    %v225 = vld [vmem:[%s0 + $0xf8] sm:$0xff]
    %226 = vmatprep.subr.mxu0 %v225
    %227 = vmatpush1.msra.mxu0 %v224
    %228 = vmatprep.subr.mxu0 %v223
    %229 = vmatpush1.msra.mxu0 %v222
    %230 = vmatprep.subr.mxu0 %v221
    %231 = vmatpush1.msra.mxu0 %v220
    %232 = vmatprep.subr.mxu0 %v219
    %233 = vmatpush1.msra.mxu0 %v218
    %234 = vmatprep.subr.mxu0 %v217
    %235 = vmatpush1.msra.mxu0 %v216
    %236 = vmatprep.subr.mxu0 %v215
    %237 = vmatpush1.msra.mxu0 %v214
    %238 = vmatprep.subr.mxu0 %v213
    %239 = vmatpush1.msra.mxu0 %v212
    %240 = vmatprep.subr.mxu0 %v211
    %241 = vmatpush1.msra.mxu0 %v210
    %242 = vmatprep.subr.mxu0 %v209
    %243 = vmatpush1.msra.mxu0 %v208
    %244 = vmatprep.subr.mxu0 %v207
    %245 = vmatpush1.msra.mxu0 %v206
    %246 = vmatprep.subr.mxu0 %v205
    %247 = vmatpush1.msra.mxu0 %v204
    %248 = vmatprep.subr.mxu0 %v203
    %249 = vmatpush1.msra.mxu0 %v202
    %250 = vmatprep.subr.mxu0 %v201
    %251 = vmatpush1.msra.mxu0 %v200
    %252 = vmatprep.subr.mxu0 %v199
    %253 = vmatpush1.msra.mxu0 %v198
    %254 = vmatprep.subr.mxu0 %v197
    %255 = vmatpush1.msra.mxu0 %v196
    %256 = vmatprep.subr.mxu0 %v195
    %257 = vmatpush1.msra.mxu0 %v194
    %258 = vmatprep.subr.mxu0 0.0
    %259 = vmatpush2.msra.mxu0 0.0
    %260 = vmatprep.subr.mxu0 0.0
    %261 = vmatpush2.msra.mxu0 0.0
    %262 = vmatprep.subr.mxu0 0.0
    %263 = vmatpush2.msra.mxu0 0.0
    %264 = vmatprep.subr.mxu0 0.0
    %265 = vmatpush2.msra.mxu0 0.0
    %266 = vmatprep.subr.mxu0 0.0
    %267 = vmatpush2.msra.mxu0 0.0
    %268 = vmatprep.subr.mxu0 0.0
    %269 = vmatpush2.msra.mxu0 0.0
    %270 = vmatprep.subr.mxu0 0.0
    %271 = vmatpush2.msra.mxu0 0.0
    %272 = vmatprep.subr.mxu0 0.0
    %273 = vmatpush2.msra.mxu0 0.0
    %274 = vmatprep.subr.mxu0 0.0
    %275 = vmatpush2.msra.mxu0 0.0
    %276 = vmatprep.subr.mxu0 0.0
    %277 = vmatpush2.msra.mxu0 0.0
    %278 = vmatprep.subr.mxu0 0.0
    %279 = vmatpush2.msra.mxu0 0.0
    %280 = vmatprep.subr.mxu0 0.0
    %281 = vmatpush2.msra.mxu0 0.0
    %282 = vmatprep.subr.mxu0 0.0
    %283 = vmatpush2.msra.mxu0 0.0
    %284 = vmatprep.subr.mxu0 0.0
    %285 = vmatpush2.msra.mxu0 0.0
    %286 = vmatprep.subr.mxu0 0.0
    %287 = vmatpush2.msra.mxu0 0.0
    %288 = vmatprep.subr.mxu0 0.0
    %289 = vmatpush2.msra.mxu0 0.0
    %290 = vmatprep.mubr.f32.mxu0 0.0
    %291 = vmatmul.mubr.f32.gmra.mxu0 %v178
    %v292 = vpop.f32.mrf.mxu0
    %v293 = vadd.f32 0.0, %v292
    %v294 = vpop.f32.mrf.mxu0
    %v295 = vadd.f32 0.0, %v294
    %296 = vmatprep.mubr.f32.mxu0 0.0
    %297 = vmatmul.mubr.f32.gmra.mxu0 %v179
    %v298 = vpop.f32.mrf.mxu0
    %v299 = vadd.f32 0.0, %v298
    %v300 = vpop.f32.mrf.mxu0
    %v301 = vadd.f32 0.0, %v300
    %302 = vmatprep.mubr.f32.mxu0 0.0
    %303 = vmatmul.mubr.f32.gmra.mxu0 %v180
    %v304 = vpop.f32.mrf.mxu0
    %v305 = vadd.f32 0.0, %v304
    %v306 = vpop.f32.mrf.mxu0
    %v307 = vadd.f32 0.0, %v306
    %308 = vmatprep.mubr.f32.mxu0 0.0
    %309 = vmatmul.mubr.f32.gmra.mxu0 %v181
    %v310 = vpop.f32.mrf.mxu0
    %v311 = vadd.f32 0.0, %v310
    %v312 = vpop.f32.mrf.mxu0
    %v313 = vadd.f32 0.0, %v312
    %314 = vmatprep.mubr.f32.mxu0 0.0
    %315 = vmatmul.mubr.f32.gmra.mxu0 %v182
    %v316 = vpop.f32.mrf.mxu0
    %v317 = vadd.f32 0.0, %v316
    %v318 = vpop.f32.mrf.mxu0
    %v319 = vadd.f32 0.0, %v318
    %320 = vmatprep.mubr.f32.mxu0 0.0
    %321 = vmatmul.mubr.f32.gmra.mxu0 %v183
    %v322 = vpop.f32.mrf.mxu0
    %v323 = vadd.f32 0.0, %v322
    %v324 = vpop.f32.mrf.mxu0
    %v325 = vadd.f32 0.0, %v324
    %326 = vmatprep.mubr.f32.mxu0 0.0
    %327 = vmatmul.mubr.f32.gmra.mxu0 %v184
    %v328 = vpop.f32.mrf.mxu0
    %v329 = vadd.f32 0.0, %v328
    %v330 = vpop.f32.mrf.mxu0
    %v331 = vadd.f32 0.0, %v330
    %332 = vmatprep.mubr.f32.mxu0 0.0
    %333 = vmatmul.mubr.f32.gmra.mxu0 %v185
    %v334 = vpop.f32.mrf.mxu0
    %v335 = vadd.f32 0.0, %v334
    %v336 = vpop.f32.mrf.mxu0
    %v337 = vadd.f32 0.0, %v336
    %338 = vmatprep.mubr.f32.mxu0 0.0
    %339 = vmatmul.mubr.f32.gmra.mxu0 %v186
    %v340 = vpop.f32.mrf.mxu0
    %v341 = vadd.f32 0.0, %v340
    %v342 = vpop.f32.mrf.mxu0
    %v343 = vadd.f32 0.0, %v342
    %344 = vmatprep.mubr.f32.mxu0 0.0
    %345 = vmatmul.mubr.f32.gmra.mxu0 %v187
    %v346 = vpop.f32.mrf.mxu0
    %v347 = vadd.f32 0.0, %v346
    %v348 = vpop.f32.mrf.mxu0
    %v349 = vadd.f32 0.0, %v348
    %350 = vmatprep.mubr.f32.mxu0 0.0
    %351 = vmatmul.mubr.f32.gmra.mxu0 %v188
    %v352 = vpop.f32.mrf.mxu0
    %v353 = vadd.f32 0.0, %v352
    %v354 = vpop.f32.mrf.mxu0
    %v355 = vadd.f32 0.0, %v354
    %356 = vmatprep.mubr.f32.mxu0 0.0
    %357 = vmatmul.mubr.f32.gmra.mxu0 %v189
    %v358 = vpop.f32.mrf.mxu0
    %v359 = vadd.f32 0.0, %v358
    %v360 = vpop.f32.mrf.mxu0
    %v361 = vadd.f32 0.0, %v360
    %362 = vmatprep.mubr.f32.mxu0 0.0
    %363 = vmatmul.mubr.f32.gmra.mxu0 %v190
    %v364 = vpop.f32.mrf.mxu0
    %v365 = vadd.f32 0.0, %v364
    %v366 = vpop.f32.mrf.mxu0
    %v367 = vadd.f32 0.0, %v366
    %368 = vmatprep.mubr.f32.mxu0 0.0
    %369 = vmatmul.mubr.f32.gmra.mxu0 %v191
    %v370 = vpop.f32.mrf.mxu0
    %v371 = vadd.f32 0.0, %v370
    %v372 = vpop.f32.mrf.mxu0
    %v373 = vadd.f32 0.0, %v372
    %374 = vmatprep.mubr.f32.mxu0 0.0
    %375 = vmatmul.mubr.f32.gmra.mxu0 %v192
    %v376 = vpop.f32.mrf.mxu0
    %v377 = vadd.f32 0.0, %v376
    %v378 = vpop.f32.mrf.mxu0
    %v379 = vadd.f32 0.0, %v378
    %380 = vmatprep.mubr.f32.mxu0 0.0
    %381 = vmatmul.mubr.f32.gmra.mxu0 %v193
    %v382 = vpop.f32.mrf.mxu0
    %v383 = vadd.f32 0.0, %v382
    %v384 = vpop.f32.mrf.mxu0
    %v385 = vadd.f32 0.0, %v384
    %386 = vdwg.mxu0
    %v387 = vld [vmem:[#allocation2] sm:$0xff]
    %v388 = vld [vmem:[#allocation2 + $0x8] sm:$0xff]
    %v389 = vld [vmem:[#allocation2 + $0x10] sm:$0xff]
    %v390 = vld [vmem:[#allocation2 + $0x18] sm:$0xff]
    %v391 = vld [vmem:[#allocation2 + $0x20] sm:$0xff]
    %v392 = vld [vmem:[#allocation2 + $0x28] sm:$0xff]
    %v393 = vld [vmem:[#allocation2 + $0x30] sm:$0xff]
    %v394 = vld [vmem:[#allocation2 + $0x38] sm:$0xff]
    %v395 = vld [vmem:[#allocation2 + $0x40] sm:$0xff]
    %v396 = vld [vmem:[#allocation2 + $0x48] sm:$0xff]
    %v397 = vld [vmem:[#allocation2 + $0x50] sm:$0xff]
    %v398 = vld [vmem:[#allocation2 + $0x58] sm:$0xff]
    %v399 = vld [vmem:[#allocation2 + $0x60] sm:$0xff]
    %v400 = vld [vmem:[#allocation2 + $0x68] sm:$0xff]
    %v401 = vld [vmem:[#allocation2 + $0x70] sm:$0xff]
    %v402 = vld [vmem:[#allocation2 + $0x78] sm:$0xff]
    %v403 = vld [vmem:[#allocation7] sm:$0xff]
    %v404 = vld [vmem:[#allocation7 + $0x8] sm:$0xff]
    %v405 = vld [vmem:[#allocation7 + $0x10] sm:$0xff]
    %v406 = vld [vmem:[#allocation7 + $0x18] sm:$0xff]
    %v407 = vld [vmem:[#allocation7 + $0x20] sm:$0xff]
    %v408 = vld [vmem:[#allocation7 + $0x28] sm:$0xff]
    %v409 = vld [vmem:[#allocation7 + $0x30] sm:$0xff]
    %v410 = vld [vmem:[#allocation7 + $0x38] sm:$0xff]
    %v411 = vld [vmem:[#allocation7 + $0x40] sm:$0xff]
    %v412 = vld [vmem:[#allocation7 + $0x48] sm:$0xff]
    %v413 = vld [vmem:[#allocation7 + $0x50] sm:$0xff]
    %v414 = vld [vmem:[#allocation7 + $0x58] sm:$0xff]
    %v415 = vld [vmem:[#allocation7 + $0x60] sm:$0xff]
    %v416 = vld [vmem:[#allocation7 + $0x68] sm:$0xff]
    %v417 = vld [vmem:[#allocation7 + $0x70] sm:$0xff]
    %v418 = vld [vmem:[#allocation7 + $0x78] sm:$0xff]
    %v419 = vld [vmem:[%s8] sm:$0x1]
    %v421 = vlaneseq
    %v422 = vshrl.u32 %v421, 7
    %v423 = vsub.s32 0, %v422
    %v424 = vrot.slane %v419, %v423
    %426 = vmatprep.subr.mxu0 0.0
    %427 = vmatpush1.msra.mxu0 %v418
    %428 = vmatprep.subr.mxu0 0.0
    %429 = vmatpush1.msra.mxu0 %v417
    %430 = vmatprep.subr.mxu0 0.0
    %431 = vmatpush1.msra.mxu0 %v416
    %432 = vmatprep.subr.mxu0 0.0
    %433 = vmatpush1.msra.mxu0 %v415
    %434 = vmatprep.subr.mxu0 0.0
    %435 = vmatpush1.msra.mxu0 %v414
    %436 = vmatprep.subr.mxu0 0.0
    %437 = vmatpush1.msra.mxu0 %v413
    %438 = vmatprep.subr.mxu0 0.0
    %439 = vmatpush1.msra.mxu0 %v412
    %440 = vmatprep.subr.mxu0 0.0
    %441 = vmatpush1.msra.mxu0 %v411
    %442 = vmatprep.subr.mxu0 0.0
    %443 = vmatpush1.msra.mxu0 %v410
    %444 = vmatprep.subr.mxu0 0.0
    %445 = vmatpush1.msra.mxu0 %v409
    %446 = vmatprep.subr.mxu0 0.0
    %447 = vmatpush1.msra.mxu0 %v408
    %448 = vmatprep.subr.mxu0 0.0
    %449 = vmatpush1.msra.mxu0 %v407
    %450 = vmatprep.subr.mxu0 0.0
    %451 = vmatpush1.msra.mxu0 %v406
    %452 = vmatprep.subr.mxu0 0.0
    %453 = vmatpush1.msra.mxu0 %v405
    %454 = vmatprep.subr.mxu0 0.0
    %455 = vmatpush1.msra.mxu0 %v404
    %456 = vmatprep.subr.mxu0 0.0
    %457 = vmatpush1.msra.mxu0 %v403
    %458 = vmatprep.subr.mxu0 0.0
    %459 = vmatpush2.msra.mxu0 0.0
    %460 = vmatprep.subr.mxu0 0.0
    %461 = vmatpush2.msra.mxu0 0.0
    %462 = vmatprep.subr.mxu0 0.0
    %463 = vmatpush2.msra.mxu0 0.0
    %464 = vmatprep.subr.mxu0 0.0
    %465 = vmatpush2.msra.mxu0 0.0
    %466 = vmatprep.subr.mxu0 0.0
    %467 = vmatpush2.msra.mxu0 0.0
    %468 = vmatprep.subr.mxu0 0.0
    %469 = vmatpush2.msra.mxu0 0.0
    %470 = vmatprep.subr.mxu0 0.0
    %471 = vmatpush2.msra.mxu0 0.0
    %472 = vmatprep.subr.mxu0 0.0
    %473 = vmatpush2.msra.mxu0 0.0
    %474 = vmatprep.subr.mxu0 0.0
    %475 = vmatpush2.msra.mxu0 0.0
    %476 = vmatprep.subr.mxu0 0.0
    %477 = vmatpush2.msra.mxu0 0.0
    %478 = vmatprep.subr.mxu0 0.0
    %479 = vmatpush2.msra.mxu0 0.0
    %480 = vmatprep.subr.mxu0 0.0
    %481 = vmatpush2.msra.mxu0 0.0
    %482 = vmatprep.subr.mxu0 0.0
    %483 = vmatpush2.msra.mxu0 0.0
    %484 = vmatprep.subr.mxu0 0.0
    %485 = vmatpush2.msra.mxu0 0.0
    %486 = vmatprep.subr.mxu0 0.0
    %487 = vmatpush2.msra.mxu0 0.0
    %488 = vmatprep.subr.mxu0 0.0
    %489 = vmatpush2.msra.mxu0 0.0
    %490 = vmatprep.mubr.f32.mxu0 0.0
    %491 = vmatmul.mubr.f32.gmra.mxu0 %v293
    %v492 = vpop.f32.mrf.mxu0
    %v493 = vadd.f32 0.0, %v492
    %v494 = vpop.f32.mrf.mxu0
    %495 = vmatprep.mubr.f32.mxu0 0.0
    %496 = vmatmul.mubr.f32.gmra.mxu0 %v299
    %v497 = vpop.f32.mrf.mxu0
    %v498 = vadd.f32 0.0, %v497
    %v499 = vpop.f32.mrf.mxu0
    %500 = vmatprep.mubr.f32.mxu0 0.0
    %501 = vmatmul.mubr.f32.gmra.mxu0 %v305
    %v502 = vpop.f32.mrf.mxu0
    %v503 = vadd.f32 0.0, %v502
    %v504 = vpop.f32.mrf.mxu0
    %505 = vmatprep.mubr.f32.mxu0 0.0
    %506 = vmatmul.mubr.f32.gmra.mxu0 %v311
    %v507 = vpop.f32.mrf.mxu0
    %v508 = vadd.f32 0.0, %v507
    %v509 = vpop.f32.mrf.mxu0
    %510 = vmatprep.mubr.f32.mxu0 0.0
    %511 = vmatmul.mubr.f32.gmra.mxu0 %v317
    %v512 = vpop.f32.mrf.mxu0
    %v513 = vadd.f32 0.0, %v512
    %v514 = vpop.f32.mrf.mxu0
    %515 = vmatprep.mubr.f32.mxu0 0.0
    %516 = vmatmul.mubr.f32.gmra.mxu0 %v323
    %v517 = vpop.f32.mrf.mxu0
    %v518 = vadd.f32 0.0, %v517
    %v519 = vpop.f32.mrf.mxu0
    %520 = vmatprep.mubr.f32.mxu0 0.0
    %521 = vmatmul.mubr.f32.gmra.mxu0 %v329
    %v522 = vpop.f32.mrf.mxu0
    %v523 = vadd.f32 0.0, %v522
    %v524 = vpop.f32.mrf.mxu0
    %525 = vmatprep.mubr.f32.mxu0 0.0
    %526 = vmatmul.mubr.f32.gmra.mxu0 %v335
    %v527 = vpop.f32.mrf.mxu0
    %v528 = vadd.f32 0.0, %v527
    %v529 = vpop.f32.mrf.mxu0
    %530 = vmatprep.mubr.f32.mxu0 0.0
    %531 = vmatmul.mubr.f32.gmra.mxu0 %v341
    %v532 = vpop.f32.mrf.mxu0
    %v533 = vadd.f32 0.0, %v532
    %v534 = vpop.f32.mrf.mxu0
    %535 = vmatprep.mubr.f32.mxu0 0.0
    %536 = vmatmul.mubr.f32.gmra.mxu0 %v347
    %v537 = vpop.f32.mrf.mxu0
    %v538 = vadd.f32 0.0, %v537
    %v539 = vpop.f32.mrf.mxu0
    %540 = vmatprep.mubr.f32.mxu0 0.0
    %541 = vmatmul.mubr.f32.gmra.mxu0 %v353
    %v542 = vpop.f32.mrf.mxu0
    %v543 = vadd.f32 0.0, %v542
    %v544 = vpop.f32.mrf.mxu0
    %545 = vmatprep.mubr.f32.mxu0 0.0
    %546 = vmatmul.mubr.f32.gmra.mxu0 %v359
    %v547 = vpop.f32.mrf.mxu0
    %v548 = vadd.f32 0.0, %v547
    %v549 = vpop.f32.mrf.mxu0
    %550 = vmatprep.mubr.f32.mxu0 0.0
    %551 = vmatmul.mubr.f32.gmra.mxu0 %v365
    %v552 = vpop.f32.mrf.mxu0
    %v553 = vadd.f32 0.0, %v552
    %v554 = vpop.f32.mrf.mxu0
    %555 = vmatprep.mubr.f32.mxu0 0.0
    %556 = vmatmul.mubr.f32.gmra.mxu0 %v371
    %v557 = vpop.f32.mrf.mxu0
    %v558 = vadd.f32 0.0, %v557
    %v559 = vpop.f32.mrf.mxu0
    %560 = vmatprep.mubr.f32.mxu0 0.0
    %561 = vmatmul.mubr.f32.gmra.mxu0 %v377
    %v562 = vpop.f32.mrf.mxu0
    %v563 = vadd.f32 0.0, %v562
    %v564 = vpop.f32.mrf.mxu0
    %565 = vmatprep.mubr.f32.mxu0 0.0
    %566 = vmatmul.mubr.f32.gmra.mxu0 %v383
    %v567 = vpop.f32.mrf.mxu0
    %v568 = vadd.f32 0.0, %v567
    %v569 = vpop.f32.mrf.mxu0
    %570 = vdwg.mxu0
    %571 = vmatprep.subr.mxu0 0.0
    %572 = vmatpush1.msra.mxu0 %v402
    %573 = vmatprep.subr.mxu0 0.0
    %574 = vmatpush1.msra.mxu0 %v401
    %575 = vmatprep.subr.mxu0 0.0
    %576 = vmatpush1.msra.mxu0 %v400
    %577 = vmatprep.subr.mxu0 0.0
    %578 = vmatpush1.msra.mxu0 %v399
    %579 = vmatprep.subr.mxu0 0.0
    %580 = vmatpush1.msra.mxu0 %v398
    %581 = vmatprep.subr.mxu0 0.0
    %582 = vmatpush1.msra.mxu0 %v397
    %583 = vmatprep.subr.mxu0 0.0
    %584 = vmatpush1.msra.mxu0 %v396
    %585 = vmatprep.subr.mxu0 0.0
    %586 = vmatpush1.msra.mxu0 %v395
    %587 = vmatprep.subr.mxu0 0.0
    %588 = vmatpush1.msra.mxu0 %v394
    %589 = vmatprep.subr.mxu0 0.0
    %590 = vmatpush1.msra.mxu0 %v393
    %591 = vmatprep.subr.mxu0 0.0
    %592 = vmatpush1.msra.mxu0 %v392
    %593 = vmatprep.subr.mxu0 0.0
    %594 = vmatpush1.msra.mxu0 %v391
    %595 = vmatprep.subr.mxu0 0.0
    %596 = vmatpush1.msra.mxu0 %v390
    %597 = vmatprep.subr.mxu0 0.0
    %598 = vmatpush1.msra.mxu0 %v389
    %599 = vmatprep.subr.mxu0 0.0
    %600 = vmatpush1.msra.mxu0 %v388
    %601 = vmatprep.subr.mxu0 0.0
    %602 = vmatpush1.msra.mxu0 %v387
    %603 = vmatprep.subr.mxu0 0.0
    %604 = vmatpush2.msra.mxu0 0.0
    %605 = vmatprep.subr.mxu0 0.0
    %606 = vmatpush2.msra.mxu0 0.0
    %607 = vmatprep.subr.mxu0 0.0
    %608 = vmatpush2.msra.mxu0 0.0
    %609 = vmatprep.subr.mxu0 0.0
    %610 = vmatpush2.msra.mxu0 0.0
    %611 = vmatprep.subr.mxu0 0.0
    %612 = vmatpush2.msra.mxu0 0.0
    %613 = vmatprep.subr.mxu0 0.0
    %614 = vmatpush2.msra.mxu0 0.0
    %615 = vmatprep.subr.mxu0 0.0
    %616 = vmatpush2.msra.mxu0 0.0
    %617 = vmatprep.subr.mxu0 0.0
    %618 = vmatpush2.msra.mxu0 0.0
    %619 = vmatprep.subr.mxu0 0.0
    %620 = vmatpush2.msra.mxu0 0.0
    %621 = vmatprep.subr.mxu0 0.0
    %622 = vmatpush2.msra.mxu0 0.0
    %623 = vmatprep.subr.mxu0 0.0
    %624 = vmatpush2.msra.mxu0 0.0
    %625 = vmatprep.subr.mxu0 0.0
    %626 = vmatpush2.msra.mxu0 0.0
    %627 = vmatprep.subr.mxu0 0.0
    %628 = vmatpush2.msra.mxu0 0.0
    %629 = vmatprep.subr.mxu0 0.0
    %630 = vmatpush2.msra.mxu0 0.0
    %631 = vmatprep.subr.mxu0 0.0
    %632 = vmatpush2.msra.mxu0 0.0
    %633 = vmatprep.subr.mxu0 0.0
    %634 = vmatpush2.msra.mxu0 0.0
    %635 = vmatprep.mubr.f32.mxu0 0.0
    %636 = vmatmul.mubr.f32.gmra.mxu0 %v194
    %v637 = vpop.f32.mrf.mxu0
    %v638 = vadd.f32 %v493, %v637
    %v639 = vpop.f32.mrf.mxu0
    %640 = vmatprep.mubr.f32.mxu0 0.0
    %641 = vmatmul.mubr.f32.gmra.mxu0 %v196
    %v642 = vpop.f32.mrf.mxu0
    %v643 = vadd.f32 %v498, %v642
    %v644 = vpop.f32.mrf.mxu0
    %645 = vmatprep.mubr.f32.mxu0 0.0
    %646 = vmatmul.mubr.f32.gmra.mxu0 %v198
    %v647 = vpop.f32.mrf.mxu0
    %v648 = vadd.f32 %v503, %v647
    %v649 = vpop.f32.mrf.mxu0
    %650 = vmatprep.mubr.f32.mxu0 0.0
    %651 = vmatmul.mubr.f32.gmra.mxu0 %v200
    %v652 = vpop.f32.mrf.mxu0
    %v653 = vadd.f32 %v508, %v652
    %v654 = vpop.f32.mrf.mxu0
    %655 = vmatprep.mubr.f32.mxu0 0.0
    %656 = vmatmul.mubr.f32.gmra.mxu0 %v202
    %v657 = vpop.f32.mrf.mxu0
    %v658 = vadd.f32 %v513, %v657
    %v659 = vpop.f32.mrf.mxu0
    %660 = vmatprep.mubr.f32.mxu0 0.0
    %661 = vmatmul.mubr.f32.gmra.mxu0 %v204
    %v662 = vpop.f32.mrf.mxu0
    %v663 = vadd.f32 %v518, %v662
    %v664 = vpop.f32.mrf.mxu0
    %665 = vmatprep.mubr.f32.mxu0 0.0
    %666 = vmatmul.mubr.f32.gmra.mxu0 %v206
    %v667 = vpop.f32.mrf.mxu0
    %v668 = vadd.f32 %v523, %v667
    %v669 = vpop.f32.mrf.mxu0
    %670 = vmatprep.mubr.f32.mxu0 0.0
    %671 = vmatmul.mubr.f32.gmra.mxu0 %v208
    %v672 = vpop.f32.mrf.mxu0
    %v673 = vadd.f32 %v528, %v672
    %v674 = vpop.f32.mrf.mxu0
    %675 = vmatprep.mubr.f32.mxu0 0.0
    %676 = vmatmul.mubr.f32.gmra.mxu0 %v210
    %v677 = vpop.f32.mrf.mxu0
    %v678 = vadd.f32 %v533, %v677
    %v679 = vpop.f32.mrf.mxu0
    %680 = vmatprep.mubr.f32.mxu0 0.0
    %681 = vmatmul.mubr.f32.gmra.mxu0 %v212
    %v682 = vpop.f32.mrf.mxu0
    %v683 = vadd.f32 %v538, %v682
    %v684 = vpop.f32.mrf.mxu0
    %685 = vmatprep.mubr.f32.mxu0 0.0
    %686 = vmatmul.mubr.f32.gmra.mxu0 %v214
    %v687 = vpop.f32.mrf.mxu0
    %v688 = vadd.f32 %v543, %v687
    %v689 = vpop.f32.mrf.mxu0
    %690 = vmatprep.mubr.f32.mxu0 0.0
    %691 = vmatmul.mubr.f32.gmra.mxu0 %v216
    %v692 = vpop.f32.mrf.mxu0
    %v693 = vadd.f32 %v548, %v692
    %v694 = vpop.f32.mrf.mxu0
    %695 = vmatprep.mubr.f32.mxu0 0.0
    %696 = vmatmul.mubr.f32.gmra.mxu0 %v218
    %v697 = vpop.f32.mrf.mxu0
    %v698 = vadd.f32 %v553, %v697
    %v699 = vpop.f32.mrf.mxu0
    %700 = vmatprep.mubr.f32.mxu0 0.0
    %701 = vmatmul.mubr.f32.gmra.mxu0 %v220
    %v702 = vpop.f32.mrf.mxu0
    %v703 = vadd.f32 %v558, %v702
    %v704 = vpop.f32.mrf.mxu0
    %705 = vmatprep.mubr.f32.mxu0 0.0
    %706 = vmatmul.mubr.f32.gmra.mxu0 %v222
    %v707 = vpop.f32.mrf.mxu0
    %v708 = vadd.f32 %v563, %v707
    %v709 = vpop.f32.mrf.mxu0
    %710 = vmatprep.mubr.f32.mxu0 0.0
    %711 = vmatmul.mubr.f32.gmra.mxu0 %v224
    %v712 = vpop.f32.mrf.mxu0
    %v713 = vadd.f32 %v568, %v712
    %v714 = vpop.f32.mrf.mxu0
    %715 = vdwg.mxu0
    %v716 = vadd.f32 %v638, %v424
    %v717 = vadd.f32 %v643, %v424
    %v718 = vadd.f32 %v648, %v424
    %v719 = vadd.f32 %v653, %v424
    %v720 = vadd.f32 %v658, %v424
    %v721 = vadd.f32 %v663, %v424
    %v722 = vadd.f32 %v668, %v424
    %v723 = vadd.f32 %v673, %v424
    %v724 = vadd.f32 %v678, %v424
    %v725 = vadd.f32 %v683, %v424
    %v726 = vadd.f32 %v688, %v424
    %v727 = vadd.f32 %v693, %v424
    %v728 = vadd.f32 %v698, %v424
    %v729 = vadd.f32 %v703, %v424
    %v730 = vadd.f32 %v708, %v424
    %v731 = vadd.f32 %v713, %v424
    %v732 = vmax.f32 %v716, 0.0
    %v733 = vmax.f32 %v717, 0.0
    %v734 = vmax.f32 %v718, 0.0
    %v735 = vmax.f32 %v719, 0.0
    %v736 = vmax.f32 %v720, 0.0
    %v737 = vmax.f32 %v721, 0.0
    %v738 = vmax.f32 %v722, 0.0
    %v739 = vmax.f32 %v723, 0.0
    %v740 = vmax.f32 %v724, 0.0
    %v741 = vmax.f32 %v725, 0.0
    %v742 = vmax.f32 %v726, 0.0
    %v743 = vmax.f32 %v727, 0.0
    %v744 = vmax.f32 %v728, 0.0
    %v745 = vmax.f32 %v729, 0.0
    %v746 = vmax.f32 %v730, 0.0
    %v747 = vmax.f32 %v731, 0.0
    %748 = vmatprep.subr.mxu0 0.0
    %749 = vmatpush1.msra.mxu0 %v418
    %750 = vmatprep.subr.mxu0 0.0
    %751 = vmatpush1.msra.mxu0 %v417
    %752 = vmatprep.subr.mxu0 0.0
    %753 = vmatpush1.msra.mxu0 %v416
    %754 = vmatprep.subr.mxu0 0.0
    %755 = vmatpush1.msra.mxu0 %v415
    %756 = vmatprep.subr.mxu0 0.0
    %757 = vmatpush1.msra.mxu0 %v414
    %758 = vmatprep.subr.mxu0 0.0
    %759 = vmatpush1.msra.mxu0 %v413
    %760 = vmatprep.subr.mxu0 0.0
    %761 = vmatpush1.msra.mxu0 %v412
    %762 = vmatprep.subr.mxu0 0.0
    %763 = vmatpush1.msra.mxu0 %v411
    %764 = vmatprep.subr.mxu0 0.0
    %765 = vmatpush1.msra.mxu0 %v410
    %766 = vmatprep.subr.mxu0 0.0
    %767 = vmatpush1.msra.mxu0 %v409
    %768 = vmatprep.subr.mxu0 0.0
    %769 = vmatpush1.msra.mxu0 %v408
    %770 = vmatprep.subr.mxu0 0.0
    %771 = vmatpush1.msra.mxu0 %v407
    %772 = vmatprep.subr.mxu0 0.0
    %773 = vmatpush1.msra.mxu0 %v406
    %774 = vmatprep.subr.mxu0 0.0
    %775 = vmatpush1.msra.mxu0 %v405
    %776 = vmatprep.subr.mxu0 0.0
    %777 = vmatpush1.msra.mxu0 %v404
    %778 = vmatprep.subr.mxu0 0.0
    %779 = vmatpush1.msra.mxu0 %v403
    %780 = vmatprep.subr.mxu0 0.0
    %781 = vmatpush2.msra.mxu0 0.0
    %782 = vmatprep.subr.mxu0 0.0
    %783 = vmatpush2.msra.mxu0 0.0
    %784 = vmatprep.subr.mxu0 0.0
    %785 = vmatpush2.msra.mxu0 0.0
    %786 = vmatprep.subr.mxu0 0.0
    %787 = vmatpush2.msra.mxu0 0.0
    %788 = vmatprep.subr.mxu0 0.0
    %789 = vmatpush2.msra.mxu0 0.0
    %790 = vmatprep.subr.mxu0 0.0
    %791 = vmatpush2.msra.mxu0 0.0
    %792 = vmatprep.subr.mxu0 0.0
    %793 = vmatpush2.msra.mxu0 0.0
    %794 = vmatprep.subr.mxu0 0.0
    %795 = vmatpush2.msra.mxu0 0.0
    %796 = vmatprep.subr.mxu0 0.0
    %797 = vmatpush2.msra.mxu0 0.0
    %798 = vmatprep.subr.mxu0 0.0
    %799 = vmatpush2.msra.mxu0 0.0
    %800 = vmatprep.subr.mxu0 0.0
    %801 = vmatpush2.msra.mxu0 0.0
    %802 = vmatprep.subr.mxu0 0.0
    %803 = vmatpush2.msra.mxu0 0.0
    %804 = vmatprep.subr.mxu0 0.0
    %805 = vmatpush2.msra.mxu0 0.0
    %806 = vmatprep.subr.mxu0 0.0
    %807 = vmatpush2.msra.mxu0 0.0
    %808 = vmatprep.subr.mxu0 0.0
    %809 = vmatpush2.msra.mxu0 0.0
    %810 = vmatprep.subr.mxu0 0.0
    %811 = vmatpush2.msra.mxu0 0.0
    %812 = vmatprep.mubr.f32.mxu0 0.0
    %813 = vmatmul.mubr.f32.gmra.mxu0 %v295
    %v814 = vpop.f32.mrf.mxu0
    %v815 = vadd.f32 0.0, %v814
    %v816 = vpop.f32.mrf.mxu0
    %817 = vmatprep.mubr.f32.mxu0 0.0
    %818 = vmatmul.mubr.f32.gmra.mxu0 %v301
    %v819 = vpop.f32.mrf.mxu0
    %v820 = vadd.f32 0.0, %v819
    %v821 = vpop.f32.mrf.mxu0
    %822 = vmatprep.mubr.f32.mxu0 0.0
    %823 = vmatmul.mubr.f32.gmra.mxu0 %v307
    %v824 = vpop.f32.mrf.mxu0
    %v825 = vadd.f32 0.0, %v824
    %v826 = vpop.f32.mrf.mxu0
    %827 = vmatprep.mubr.f32.mxu0 0.0
    %828 = vmatmul.mubr.f32.gmra.mxu0 %v313
    %v829 = vpop.f32.mrf.mxu0
    %v830 = vadd.f32 0.0, %v829
    %v831 = vpop.f32.mrf.mxu0
    %832 = vmatprep.mubr.f32.mxu0 0.0
    %833 = vmatmul.mubr.f32.gmra.mxu0 %v319
    %v834 = vpop.f32.mrf.mxu0
    %v835 = vadd.f32 0.0, %v834
    %v836 = vpop.f32.mrf.mxu0
    %837 = vmatprep.mubr.f32.mxu0 0.0
    %838 = vmatmul.mubr.f32.gmra.mxu0 %v325
    %v839 = vpop.f32.mrf.mxu0
    %v840 = vadd.f32 0.0, %v839
    %v841 = vpop.f32.mrf.mxu0
    %842 = vmatprep.mubr.f32.mxu0 0.0
    %843 = vmatmul.mubr.f32.gmra.mxu0 %v331
    %v844 = vpop.f32.mrf.mxu0
    %v845 = vadd.f32 0.0, %v844
    %v846 = vpop.f32.mrf.mxu0
    %847 = vmatprep.mubr.f32.mxu0 0.0
    %848 = vmatmul.mubr.f32.gmra.mxu0 %v337
    %v849 = vpop.f32.mrf.mxu0
    %v850 = vadd.f32 0.0, %v849
    %v851 = vpop.f32.mrf.mxu0
    %852 = vmatprep.mubr.f32.mxu0 0.0
    %853 = vmatmul.mubr.f32.gmra.mxu0 %v343
    %v854 = vpop.f32.mrf.mxu0
    %v855 = vadd.f32 0.0, %v854
    %v856 = vpop.f32.mrf.mxu0
    %857 = vmatprep.mubr.f32.mxu0 0.0
    %858 = vmatmul.mubr.f32.gmra.mxu0 %v349
    %v859 = vpop.f32.mrf.mxu0
    %v860 = vadd.f32 0.0, %v859
    %v861 = vpop.f32.mrf.mxu0
    %862 = vmatprep.mubr.f32.mxu0 0.0
    %863 = vmatmul.mubr.f32.gmra.mxu0 %v355
    %v864 = vpop.f32.mrf.mxu0
    %v865 = vadd.f32 0.0, %v864
    %v866 = vpop.f32.mrf.mxu0
    %867 = vmatprep.mubr.f32.mxu0 0.0
    %868 = vmatmul.mubr.f32.gmra.mxu0 %v361
    %v869 = vpop.f32.mrf.mxu0
    %v870 = vadd.f32 0.0, %v869
    %v871 = vpop.f32.mrf.mxu0
    %872 = vmatprep.mubr.f32.mxu0 0.0
    %873 = vmatmul.mubr.f32.gmra.mxu0 %v367
    %v874 = vpop.f32.mrf.mxu0
    %v875 = vadd.f32 0.0, %v874
    %v876 = vpop.f32.mrf.mxu0
    %877 = vmatprep.mubr.f32.mxu0 0.0
    %878 = vmatmul.mubr.f32.gmra.mxu0 %v373
    %v879 = vpop.f32.mrf.mxu0
    %v880 = vadd.f32 0.0, %v879
    %v881 = vpop.f32.mrf.mxu0
    %882 = vmatprep.mubr.f32.mxu0 0.0
    %883 = vmatmul.mubr.f32.gmra.mxu0 %v379
    %v884 = vpop.f32.mrf.mxu0
    %v885 = vadd.f32 0.0, %v884
    %v886 = vpop.f32.mrf.mxu0
    %887 = vmatprep.mubr.f32.mxu0 0.0
    %888 = vmatmul.mubr.f32.gmra.mxu0 %v385
    %v889 = vpop.f32.mrf.mxu0
    %v890 = vadd.f32 0.0, %v889
    %v891 = vpop.f32.mrf.mxu0
    %892 = vdwg.mxu0
    %893 = vmatprep.subr.mxu0 0.0
    %894 = vmatpush1.msra.mxu0 %v402
    %895 = vmatprep.subr.mxu0 0.0
    %896 = vmatpush1.msra.mxu0 %v401
    %897 = vmatprep.subr.mxu0 0.0
    %898 = vmatpush1.msra.mxu0 %v400
    %899 = vmatprep.subr.mxu0 0.0
    %900 = vmatpush1.msra.mxu0 %v399
    %901 = vmatprep.subr.mxu0 0.0
    %902 = vmatpush1.msra.mxu0 %v398
    %903 = vmatprep.subr.mxu0 0.0
    %904 = vmatpush1.msra.mxu0 %v397
    %905 = vmatprep.subr.mxu0 0.0
    %906 = vmatpush1.msra.mxu0 %v396
    %907 = vmatprep.subr.mxu0 0.0
    %908 = vmatpush1.msra.mxu0 %v395
    %909 = vmatprep.subr.mxu0 0.0
    %910 = vmatpush1.msra.mxu0 %v394
    %911 = vmatprep.subr.mxu0 0.0
    %912 = vmatpush1.msra.mxu0 %v393
    %913 = vmatprep.subr.mxu0 0.0
    %914 = vmatpush1.msra.mxu0 %v392
    %915 = vmatprep.subr.mxu0 0.0
    %916 = vmatpush1.msra.mxu0 %v391
    %917 = vmatprep.subr.mxu0 0.0
    %918 = vmatpush1.msra.mxu0 %v390
    %919 = vmatprep.subr.mxu0 0.0
    %920 = vmatpush1.msra.mxu0 %v389
    %921 = vmatprep.subr.mxu0 0.0
    %922 = vmatpush1.msra.mxu0 %v388
    %923 = vmatprep.subr.mxu0 0.0
    %924 = vmatpush1.msra.mxu0 %v387
    %925 = vmatprep.subr.mxu0 0.0
    %926 = vmatpush2.msra.mxu0 0.0
    %927 = vmatprep.subr.mxu0 0.0
    %928 = vmatpush2.msra.mxu0 0.0
    %929 = vmatprep.subr.mxu0 0.0
    %930 = vmatpush2.msra.mxu0 0.0
    %931 = vmatprep.subr.mxu0 0.0
    %932 = vmatpush2.msra.mxu0 0.0
    %933 = vmatprep.subr.mxu0 0.0
    %934 = vmatpush2.msra.mxu0 0.0
    %935 = vmatprep.subr.mxu0 0.0
    %936 = vmatpush2.msra.mxu0 0.0
    %937 = vmatprep.subr.mxu0 0.0
    %938 = vmatpush2.msra.mxu0 0.0
    %939 = vmatprep.subr.mxu0 0.0
    %940 = vmatpush2.msra.mxu0 0.0
    %941 = vmatprep.subr.mxu0 0.0
    %942 = vmatpush2.msra.mxu0 0.0
    %943 = vmatprep.subr.mxu0 0.0
    %944 = vmatpush2.msra.mxu0 0.0
    %945 = vmatprep.subr.mxu0 0.0
    %946 = vmatpush2.msra.mxu0 0.0
    %947 = vmatprep.subr.mxu0 0.0
    %948 = vmatpush2.msra.mxu0 0.0
    %949 = vmatprep.subr.mxu0 0.0
    %950 = vmatpush2.msra.mxu0 0.0
    %951 = vmatprep.subr.mxu0 0.0
    %952 = vmatpush2.msra.mxu0 0.0
    %953 = vmatprep.subr.mxu0 0.0
    %954 = vmatpush2.msra.mxu0 0.0
    %955 = vmatprep.subr.mxu0 0.0
    %956 = vmatpush2.msra.mxu0 0.0
    %957 = vmatprep.mubr.f32.mxu0 0.0
    %958 = vmatmul.mubr.f32.gmra.mxu0 %v195
    %v959 = vpop.f32.mrf.mxu0
    %v960 = vadd.f32 %v815, %v959
    %v961 = vpop.f32.mrf.mxu0
    %962 = vmatprep.mubr.f32.mxu0 0.0
    %963 = vmatmul.mubr.f32.gmra.mxu0 %v197
    %v964 = vpop.f32.mrf.mxu0
    %v965 = vadd.f32 %v820, %v964
    %v966 = vpop.f32.mrf.mxu0
    %967 = vmatprep.mubr.f32.mxu0 0.0
    %968 = vmatmul.mubr.f32.gmra.mxu0 %v199
    %v969 = vpop.f32.mrf.mxu0
    %v970 = vadd.f32 %v825, %v969
    %v971 = vpop.f32.mrf.mxu0
    %972 = vmatprep.mubr.f32.mxu0 0.0
    %973 = vmatmul.mubr.f32.gmra.mxu0 %v201
    %v974 = vpop.f32.mrf.mxu0
    %v975 = vadd.f32 %v830, %v974
    %v976 = vpop.f32.mrf.mxu0
    %977 = vmatprep.mubr.f32.mxu0 0.0
    %978 = vmatmul.mubr.f32.gmra.mxu0 %v203
    %v979 = vpop.f32.mrf.mxu0
    %v980 = vadd.f32 %v835, %v979
    %v981 = vpop.f32.mrf.mxu0
    %982 = vmatprep.mubr.f32.mxu0 0.0
    %983 = vmatmul.mubr.f32.gmra.mxu0 %v205
    %v984 = vpop.f32.mrf.mxu0
    %v985 = vadd.f32 %v840, %v984
    %v986 = vpop.f32.mrf.mxu0
    %987 = vmatprep.mubr.f32.mxu0 0.0
    %988 = vmatmul.mubr.f32.gmra.mxu0 %v207
    %v989 = vpop.f32.mrf.mxu0
    %v990 = vadd.f32 %v845, %v989
    %v991 = vpop.f32.mrf.mxu0
    %992 = vmatprep.mubr.f32.mxu0 0.0
    %993 = vmatmul.mubr.f32.gmra.mxu0 %v209
    %v994 = vpop.f32.mrf.mxu0
    %v995 = vadd.f32 %v850, %v994
    %v996 = vpop.f32.mrf.mxu0
    %997 = vmatprep.mubr.f32.mxu0 0.0
    %998 = vmatmul.mubr.f32.gmra.mxu0 %v211
    %v999 = vpop.f32.mrf.mxu0
    %v1000 = vadd.f32 %v855, %v999
    %v1001 = vpop.f32.mrf.mxu0
    %1002 = vmatprep.mubr.f32.mxu0 0.0
    %1003 = vmatmul.mubr.f32.gmra.mxu0 %v213
    %v1004 = vpop.f32.mrf.mxu0
    %v1005 = vadd.f32 %v860, %v1004
    %v1006 = vpop.f32.mrf.mxu0
    %1007 = vmatprep.mubr.f32.mxu0 0.0
    %1008 = vmatmul.mubr.f32.gmra.mxu0 %v215
    %v1009 = vpop.f32.mrf.mxu0
    %v1010 = vadd.f32 %v865, %v1009
    %v1011 = vpop.f32.mrf.mxu0
    %1012 = vmatprep.mubr.f32.mxu0 0.0
    %1013 = vmatmul.mubr.f32.gmra.mxu0 %v217
    %v1014 = vpop.f32.mrf.mxu0
    %v1015 = vadd.f32 %v870, %v1014
    %v1016 = vpop.f32.mrf.mxu0
    %1017 = vmatprep.mubr.f32.mxu0 0.0
    %1018 = vmatmul.mubr.f32.gmra.mxu0 %v219
    %v1019 = vpop.f32.mrf.mxu0
    %v1020 = vadd.f32 %v875, %v1019
    %v1021 = vpop.f32.mrf.mxu0
    %1022 = vmatprep.mubr.f32.mxu0 0.0
    %1023 = vmatmul.mubr.f32.gmra.mxu0 %v221
    %v1024 = vpop.f32.mrf.mxu0
    %v1025 = vadd.f32 %v880, %v1024
    %v1026 = vpop.f32.mrf.mxu0
    %1027 = vmatprep.mubr.f32.mxu0 0.0
    %1028 = vmatmul.mubr.f32.gmra.mxu0 %v223
    %v1029 = vpop.f32.mrf.mxu0
    %v1030 = vadd.f32 %v885, %v1029
    %v1031 = vpop.f32.mrf.mxu0
    %1032 = vmatprep.mubr.f32.mxu0 0.0
    %1033 = vmatmul.mubr.f32.gmra.mxu0 %v225
    %v1034 = vpop.f32.mrf.mxu0
    %v1035 = vadd.f32 %v890, %v1034
    %v1036 = vpop.f32.mrf.mxu0
    %1037 = vdwg.mxu0
    %v1038 = vadd.f32 %v960, %v424
    %v1039 = vadd.f32 %v965, %v424
    %v1040 = vadd.f32 %v970, %v424
    %v1041 = vadd.f32 %v975, %v424
    %v1042 = vadd.f32 %v980, %v424
    %v1043 = vadd.f32 %v985, %v424
    %v1044 = vadd.f32 %v990, %v424
    %v1045 = vadd.f32 %v995, %v424
    %v1046 = vadd.f32 %v1000, %v424
    %v1047 = vadd.f32 %v1005, %v424
    %v1048 = vadd.f32 %v1010, %v424
    %v1049 = vadd.f32 %v1015, %v424
    %v1050 = vadd.f32 %v1020, %v424
    %v1051 = vadd.f32 %v1025, %v424
    %v1052 = vadd.f32 %v1030, %v424
    %v1053 = vadd.f32 %v1035, %v424
    %v1054 = vmax.f32 %v1038, 0.0
    %v1055 = vmax.f32 %v1039, 0.0
    %v1056 = vmax.f32 %v1040, 0.0
    %v1057 = vmax.f32 %v1041, 0.0
    %v1058 = vmax.f32 %v1042, 0.0
    %v1059 = vmax.f32 %v1043, 0.0
    %v1060 = vmax.f32 %v1044, 0.0
    %v1061 = vmax.f32 %v1045, 0.0
    %v1062 = vmax.f32 %v1046, 0.0
    %v1063 = vmax.f32 %v1047, 0.0
    %v1064 = vmax.f32 %v1048, 0.0
    %v1065 = vmax.f32 %v1049, 0.0
    %v1066 = vmax.f32 %v1050, 0.0
    %v1067 = vmax.f32 %v1051, 0.0
    %v1068 = vmax.f32 %v1052, 0.0
    %v1069 = vmax.f32 %v1053, 0.0
    %1070 = vmatprep.subr.mxu0 %v1069
    %1071 = vmatpush1.msra.mxu0 %v747
    %1072 = vmatprep.subr.mxu0 %v1068
    %1073 = vmatpush1.msra.mxu0 %v746
    %1074 = vmatprep.subr.mxu0 %v1067
    %1075 = vmatpush1.msra.mxu0 %v745
    %1076 = vmatprep.subr.mxu0 %v1066
    %1077 = vmatpush1.msra.mxu0 %v744
    %1078 = vmatprep.subr.mxu0 %v1065
    %1079 = vmatpush1.msra.mxu0 %v743
    %1080 = vmatprep.subr.mxu0 %v1064
    %1081 = vmatpush1.msra.mxu0 %v742
    %1082 = vmatprep.subr.mxu0 %v1063
    %1083 = vmatpush1.msra.mxu0 %v741
    %1084 = vmatprep.subr.mxu0 %v1062
    %1085 = vmatpush1.msra.mxu0 %v740
    %1086 = vmatprep.subr.mxu0 %v1061
    %1087 = vmatpush1.msra.mxu0 %v739
    %1088 = vmatprep.subr.mxu0 %v1060
    %1089 = vmatpush1.msra.mxu0 %v738
    %1090 = vmatprep.subr.mxu0 %v1059
    %1091 = vmatpush1.msra.mxu0 %v737
    %1092 = vmatprep.subr.mxu0 %v1058
    %1093 = vmatpush1.msra.mxu0 %v736
    %1094 = vmatprep.subr.mxu0 %v1057
    %1095 = vmatpush1.msra.mxu0 %v735
    %1096 = vmatprep.subr.mxu0 %v1056
    %1097 = vmatpush1.msra.mxu0 %v734
    %1098 = vmatprep.subr.mxu0 %v1055
    %1099 = vmatpush1.msra.mxu0 %v733
    %1100 = vmatprep.subr.mxu0 %v1054
    %1101 = vmatpush1.msra.mxu0 %v732
    %1102 = vmatprep.subr.mxu0 0.0
    %1103 = vmatpush2.msra.mxu0 0.0
    %1104 = vmatprep.subr.mxu0 0.0
    %1105 = vmatpush2.msra.mxu0 0.0
    %1106 = vmatprep.subr.mxu0 0.0
    %1107 = vmatpush2.msra.mxu0 0.0
    %1108 = vmatprep.subr.mxu0 0.0
    %1109 = vmatpush2.msra.mxu0 0.0
    %1110 = vmatprep.subr.mxu0 0.0
    %1111 = vmatpush2.msra.mxu0 0.0
    %1112 = vmatprep.subr.mxu0 0.0
    %1113 = vmatpush2.msra.mxu0 0.0
    %1114 = vmatprep.subr.mxu0 0.0
    %1115 = vmatpush2.msra.mxu0 0.0
    %1116 = vmatprep.subr.mxu0 0.0
    %1117 = vmatpush2.msra.mxu0 0.0
    %1118 = vmatprep.subr.mxu0 0.0
    %1119 = vmatpush2.msra.mxu0 0.0
    %1120 = vmatprep.subr.mxu0 0.0
    %1121 = vmatpush2.msra.mxu0 0.0
    %1122 = vmatprep.subr.mxu0 0.0
    %1123 = vmatpush2.msra.mxu0 0.0
    %1124 = vmatprep.subr.mxu0 0.0
    %1125 = vmatpush2.msra.mxu0 0.0
    %1126 = vmatprep.subr.mxu0 0.0
    %1127 = vmatpush2.msra.mxu0 0.0
    %1128 = vmatprep.subr.mxu0 0.0
    %1129 = vmatpush2.msra.mxu0 0.0
    %1130 = vmatprep.subr.mxu0 0.0
    %1131 = vmatpush2.msra.mxu0 0.0
    %1132 = vmatprep.subr.mxu0 0.0
    %1133 = vmatpush2.msra.mxu0 0.0
    %1134 = vmatprep.mubr.f32.mxu0 0.0
    %1135 = vmatmul.mubr.f32.gmra.mxu0 %v178
    %v1136 = vpop.f32.mrf.mxu0
    %v1137 = vadd.f32 0.0, %v1136
    %v1138 = vpop.f32.mrf.mxu0
    %v1139 = vadd.f32 0.0, %v1138
    %1140 = vmatprep.mubr.f32.mxu0 0.0
    %1141 = vmatmul.mubr.f32.gmra.mxu0 %v179
    %v1142 = vpop.f32.mrf.mxu0
    %v1143 = vadd.f32 0.0, %v1142
    %v1144 = vpop.f32.mrf.mxu0
    %v1145 = vadd.f32 0.0, %v1144
    %1146 = vmatprep.mubr.f32.mxu0 0.0
    %1147 = vmatmul.mubr.f32.gmra.mxu0 %v180
    %v1148 = vpop.f32.mrf.mxu0
    %v1149 = vadd.f32 0.0, %v1148
    %v1150 = vpop.f32.mrf.mxu0
    %v1151 = vadd.f32 0.0, %v1150
    %1152 = vmatprep.mubr.f32.mxu0 0.0
    %1153 = vmatmul.mubr.f32.gmra.mxu0 %v181
    %v1154 = vpop.f32.mrf.mxu0
    %v1155 = vadd.f32 0.0, %v1154
    %v1156 = vpop.f32.mrf.mxu0
    %v1157 = vadd.f32 0.0, %v1156
    %1158 = vmatprep.mubr.f32.mxu0 0.0
    %1159 = vmatmul.mubr.f32.gmra.mxu0 %v182
    %v1160 = vpop.f32.mrf.mxu0
    %v1161 = vadd.f32 0.0, %v1160
    %v1162 = vpop.f32.mrf.mxu0
    %v1163 = vadd.f32 0.0, %v1162
    %1164 = vmatprep.mubr.f32.mxu0 0.0
    %1165 = vmatmul.mubr.f32.gmra.mxu0 %v183
    %v1166 = vpop.f32.mrf.mxu0
    %v1167 = vadd.f32 0.0, %v1166
    %v1168 = vpop.f32.mrf.mxu0
    %v1169 = vadd.f32 0.0, %v1168
    %1170 = vmatprep.mubr.f32.mxu0 0.0
    %1171 = vmatmul.mubr.f32.gmra.mxu0 %v184
    %v1172 = vpop.f32.mrf.mxu0
    %v1173 = vadd.f32 0.0, %v1172
    %v1174 = vpop.f32.mrf.mxu0
    %v1175 = vadd.f32 0.0, %v1174
    %1176 = vmatprep.mubr.f32.mxu0 0.0
    %1177 = vmatmul.mubr.f32.gmra.mxu0 %v185
    %v1178 = vpop.f32.mrf.mxu0
    %v1179 = vadd.f32 0.0, %v1178
    %v1180 = vpop.f32.mrf.mxu0
    %v1181 = vadd.f32 0.0, %v1180
    %1182 = vmatprep.mubr.f32.mxu0 0.0
    %1183 = vmatmul.mubr.f32.gmra.mxu0 %v186
    %v1184 = vpop.f32.mrf.mxu0
    %v1185 = vadd.f32 0.0, %v1184
    %v1186 = vpop.f32.mrf.mxu0
    %v1187 = vadd.f32 0.0, %v1186
    %1188 = vmatprep.mubr.f32.mxu0 0.0
    %1189 = vmatmul.mubr.f32.gmra.mxu0 %v187
    %v1190 = vpop.f32.mrf.mxu0
    %v1191 = vadd.f32 0.0, %v1190
    %v1192 = vpop.f32.mrf.mxu0
    %v1193 = vadd.f32 0.0, %v1192
    %1194 = vmatprep.mubr.f32.mxu0 0.0
    %1195 = vmatmul.mubr.f32.gmra.mxu0 %v188
    %v1196 = vpop.f32.mrf.mxu0
    %v1197 = vadd.f32 0.0, %v1196
    %v1198 = vpop.f32.mrf.mxu0
    %v1199 = vadd.f32 0.0, %v1198
    %1200 = vmatprep.mubr.f32.mxu0 0.0
    %1201 = vmatmul.mubr.f32.gmra.mxu0 %v189
    %v1202 = vpop.f32.mrf.mxu0
    %v1203 = vadd.f32 0.0, %v1202
    %v1204 = vpop.f32.mrf.mxu0
    %v1205 = vadd.f32 0.0, %v1204
    %1206 = vmatprep.mubr.f32.mxu0 0.0
    %1207 = vmatmul.mubr.f32.gmra.mxu0 %v190
    %v1208 = vpop.f32.mrf.mxu0
    %v1209 = vadd.f32 0.0, %v1208
    %v1210 = vpop.f32.mrf.mxu0
    %v1211 = vadd.f32 0.0, %v1210
    %1212 = vmatprep.mubr.f32.mxu0 0.0
    %1213 = vmatmul.mubr.f32.gmra.mxu0 %v191
    %v1214 = vpop.f32.mrf.mxu0
    %v1215 = vadd.f32 0.0, %v1214
    %v1216 = vpop.f32.mrf.mxu0
    %v1217 = vadd.f32 0.0, %v1216
    %1218 = vmatprep.mubr.f32.mxu0 0.0
    %1219 = vmatmul.mubr.f32.gmra.mxu0 %v192
    %v1220 = vpop.f32.mrf.mxu0
    %v1221 = vadd.f32 0.0, %v1220
    %v1222 = vpop.f32.mrf.mxu0
    %v1223 = vadd.f32 0.0, %v1222
    %1224 = vmatprep.mubr.f32.mxu0 0.0
    %1225 = vmatmul.mubr.f32.gmra.mxu0 %v193
    %v1226 = vpop.f32.mrf.mxu0
    %v1227 = vadd.f32 0.0, %v1226
    %v1228 = vpop.f32.mrf.mxu0
    %v1229 = vadd.f32 0.0, %v1228
    %1230 = vdwg.mxu0
    %v1231 = vld [vmem:[#allocation4] sm:$0xff]
    %v1232 = vld [vmem:[#allocation4 + $0x8] sm:$0xff]
    %v1233 = vld [vmem:[#allocation4 + $0x10] sm:$0xff]
    %v1234 = vld [vmem:[#allocation4 + $0x18] sm:$0xff]
    %v1235 = vld [vmem:[#allocation4 + $0x20] sm:$0xff]
    %v1236 = vld [vmem:[#allocation4 + $0x28] sm:$0xff]
    %v1237 = vld [vmem:[#allocation4 + $0x30] sm:$0xff]
    %v1238 = vld [vmem:[#allocation4 + $0x38] sm:$0xff]
    %v1239 = vld [vmem:[#allocation4 + $0x40] sm:$0xff]
    %v1240 = vld [vmem:[#allocation4 + $0x48] sm:$0xff]
    %v1241 = vld [vmem:[#allocation4 + $0x50] sm:$0xff]
    %v1242 = vld [vmem:[#allocation4 + $0x58] sm:$0xff]
    %v1243 = vld [vmem:[#allocation4 + $0x60] sm:$0xff]
    %v1244 = vld [vmem:[#allocation4 + $0x68] sm:$0xff]
    %v1245 = vld [vmem:[#allocation4 + $0x70] sm:$0xff]
    %v1246 = vld [vmem:[#allocation4 + $0x78] sm:$0xff]
    %v1247 = vld [vmem:[#allocation9] sm:$0xff]
    %v1248 = vld [vmem:[#allocation9 + $0x8] sm:$0xff]
    %v1249 = vld [vmem:[#allocation9 + $0x10] sm:$0xff]
    %v1250 = vld [vmem:[#allocation9 + $0x18] sm:$0xff]
    %v1251 = vld [vmem:[#allocation9 + $0x20] sm:$0xff]
    %v1252 = vld [vmem:[#allocation9 + $0x28] sm:$0xff]
    %v1253 = vld [vmem:[#allocation9 + $0x30] sm:$0xff]
    %v1254 = vld [vmem:[#allocation9 + $0x38] sm:$0xff]
    %v1255 = vld [vmem:[#allocation9 + $0x40] sm:$0xff]
    %v1256 = vld [vmem:[#allocation9 + $0x48] sm:$0xff]
    %v1257 = vld [vmem:[#allocation9 + $0x50] sm:$0xff]
    %v1258 = vld [vmem:[#allocation9 + $0x58] sm:$0xff]
    %v1259 = vld [vmem:[#allocation9 + $0x60] sm:$0xff]
    %v1260 = vld [vmem:[#allocation9 + $0x68] sm:$0xff]
    %v1261 = vld [vmem:[#allocation9 + $0x70] sm:$0xff]
    %v1262 = vld [vmem:[#allocation9 + $0x78] sm:$0xff]
    %v1263 = vld [vmem:[%s9] sm:$0x1]
    %v1265 = vlaneseq
    %v1266 = vshrl.u32 %v1265, 7
    %v1267 = vsub.s32 0, %v1266
    %v1268 = vrot.slane %v1263, %v1267
    %1270 = vmatprep.subr.mxu0 0.0
    %1271 = vmatpush1.msra.mxu0 %v1262
    %1272 = vmatprep.subr.mxu0 0.0
    %1273 = vmatpush1.msra.mxu0 %v1261
    %1274 = vmatprep.subr.mxu0 0.0
    %1275 = vmatpush1.msra.mxu0 %v1260
    %1276 = vmatprep.subr.mxu0 0.0
    %1277 = vmatpush1.msra.mxu0 %v1259
    %1278 = vmatprep.subr.mxu0 0.0
    %1279 = vmatpush1.msra.mxu0 %v1258
    %1280 = vmatprep.subr.mxu0 0.0
    %1281 = vmatpush1.msra.mxu0 %v1257
    %1282 = vmatprep.subr.mxu0 0.0
    %1283 = vmatpush1.msra.mxu0 %v1256
    %1284 = vmatprep.subr.mxu0 0.0
    %1285 = vmatpush1.msra.mxu0 %v1255
    %1286 = vmatprep.subr.mxu0 0.0
    %1287 = vmatpush1.msra.mxu0 %v1254
    %1288 = vmatprep.subr.mxu0 0.0
    %1289 = vmatpush1.msra.mxu0 %v1253
    %1290 = vmatprep.subr.mxu0 0.0
    %1291 = vmatpush1.msra.mxu0 %v1252
    %1292 = vmatprep.subr.mxu0 0.0
    %1293 = vmatpush1.msra.mxu0 %v1251
    %1294 = vmatprep.subr.mxu0 0.0
    %1295 = vmatpush1.msra.mxu0 %v1250
    %1296 = vmatprep.subr.mxu0 0.0
    %1297 = vmatpush1.msra.mxu0 %v1249
    %1298 = vmatprep.subr.mxu0 0.0
    %1299 = vmatpush1.msra.mxu0 %v1248
    %1300 = vmatprep.subr.mxu0 0.0
    %1301 = vmatpush1.msra.mxu0 %v1247
    %1302 = vmatprep.subr.mxu0 0.0
    %1303 = vmatpush2.msra.mxu0 0.0
    %1304 = vmatprep.subr.mxu0 0.0
    %1305 = vmatpush2.msra.mxu0 0.0
    %1306 = vmatprep.subr.mxu0 0.0
    %1307 = vmatpush2.msra.mxu0 0.0
    %1308 = vmatprep.subr.mxu0 0.0
    %1309 = vmatpush2.msra.mxu0 0.0
    %1310 = vmatprep.subr.mxu0 0.0
    %1311 = vmatpush2.msra.mxu0 0.0
    %1312 = vmatprep.subr.mxu0 0.0
    %1313 = vmatpush2.msra.mxu0 0.0
    %1314 = vmatprep.subr.mxu0 0.0
    %1315 = vmatpush2.msra.mxu0 0.0
    %1316 = vmatprep.subr.mxu0 0.0
    %1317 = vmatpush2.msra.mxu0 0.0
    %1318 = vmatprep.subr.mxu0 0.0
    %1319 = vmatpush2.msra.mxu0 0.0
    %1320 = vmatprep.subr.mxu0 0.0
    %1321 = vmatpush2.msra.mxu0 0.0
    %1322 = vmatprep.subr.mxu0 0.0
    %1323 = vmatpush2.msra.mxu0 0.0
    %1324 = vmatprep.subr.mxu0 0.0
    %1325 = vmatpush2.msra.mxu0 0.0
    %1326 = vmatprep.subr.mxu0 0.0
    %1327 = vmatpush2.msra.mxu0 0.0
    %1328 = vmatprep.subr.mxu0 0.0
    %1329 = vmatpush2.msra.mxu0 0.0
    %1330 = vmatprep.subr.mxu0 0.0
    %1331 = vmatpush2.msra.mxu0 0.0
    %1332 = vmatprep.subr.mxu0 0.0
    %1333 = vmatpush2.msra.mxu0 0.0
    %1334 = vmatprep.mubr.f32.mxu0 0.0
    %1335 = vmatmul.mubr.f32.gmra.mxu0 %v1137
    %v1336 = vpop.f32.mrf.mxu0
    %v1337 = vadd.f32 0.0, %v1336
    %v1338 = vpop.f32.mrf.mxu0
    %1339 = vmatprep.mubr.f32.mxu0 0.0
    %1340 = vmatmul.mubr.f32.gmra.mxu0 %v1143
    %v1341 = vpop.f32.mrf.mxu0
    %v1342 = vadd.f32 0.0, %v1341
    %v1343 = vpop.f32.mrf.mxu0
    %1344 = vmatprep.mubr.f32.mxu0 0.0
    %1345 = vmatmul.mubr.f32.gmra.mxu0 %v1149
    %v1346 = vpop.f32.mrf.mxu0
    %v1347 = vadd.f32 0.0, %v1346
    %v1348 = vpop.f32.mrf.mxu0
    %1349 = vmatprep.mubr.f32.mxu0 0.0
    %1350 = vmatmul.mubr.f32.gmra.mxu0 %v1155
    %v1351 = vpop.f32.mrf.mxu0
    %v1352 = vadd.f32 0.0, %v1351
    %v1353 = vpop.f32.mrf.mxu0
    %1354 = vmatprep.mubr.f32.mxu0 0.0
    %1355 = vmatmul.mubr.f32.gmra.mxu0 %v1161
    %v1356 = vpop.f32.mrf.mxu0
    %v1357 = vadd.f32 0.0, %v1356
    %v1358 = vpop.f32.mrf.mxu0
    %1359 = vmatprep.mubr.f32.mxu0 0.0
    %1360 = vmatmul.mubr.f32.gmra.mxu0 %v1167
    %v1361 = vpop.f32.mrf.mxu0
    %v1362 = vadd.f32 0.0, %v1361
    %v1363 = vpop.f32.mrf.mxu0
    %1364 = vmatprep.mubr.f32.mxu0 0.0
    %1365 = vmatmul.mubr.f32.gmra.mxu0 %v1173
    %v1366 = vpop.f32.mrf.mxu0
    %v1367 = vadd.f32 0.0, %v1366
    %v1368 = vpop.f32.mrf.mxu0
    %1369 = vmatprep.mubr.f32.mxu0 0.0
    %1370 = vmatmul.mubr.f32.gmra.mxu0 %v1179
    %v1371 = vpop.f32.mrf.mxu0
    %v1372 = vadd.f32 0.0, %v1371
    %v1373 = vpop.f32.mrf.mxu0
    %1374 = vmatprep.mubr.f32.mxu0 0.0
    %1375 = vmatmul.mubr.f32.gmra.mxu0 %v1185
    %v1376 = vpop.f32.mrf.mxu0
    %v1377 = vadd.f32 0.0, %v1376
    %v1378 = vpop.f32.mrf.mxu0
    %1379 = vmatprep.mubr.f32.mxu0 0.0
    %1380 = vmatmul.mubr.f32.gmra.mxu0 %v1191
    %v1381 = vpop.f32.mrf.mxu0
    %v1382 = vadd.f32 0.0, %v1381
    %v1383 = vpop.f32.mrf.mxu0
    %1384 = vmatprep.mubr.f32.mxu0 0.0
    %1385 = vmatmul.mubr.f32.gmra.mxu0 %v1197
    %v1386 = vpop.f32.mrf.mxu0
    %v1387 = vadd.f32 0.0, %v1386
    %v1388 = vpop.f32.mrf.mxu0
    %1389 = vmatprep.mubr.f32.mxu0 0.0
    %1390 = vmatmul.mubr.f32.gmra.mxu0 %v1203
    %v1391 = vpop.f32.mrf.mxu0
    %v1392 = vadd.f32 0.0, %v1391
    %v1393 = vpop.f32.mrf.mxu0
    %1394 = vmatprep.mubr.f32.mxu0 0.0
    %1395 = vmatmul.mubr.f32.gmra.mxu0 %v1209
    %v1396 = vpop.f32.mrf.mxu0
    %v1397 = vadd.f32 0.0, %v1396
    %v1398 = vpop.f32.mrf.mxu0
    %1399 = vmatprep.mubr.f32.mxu0 0.0
    %1400 = vmatmul.mubr.f32.gmra.mxu0 %v1215
    %v1401 = vpop.f32.mrf.mxu0
    %v1402 = vadd.f32 0.0, %v1401
    %v1403 = vpop.f32.mrf.mxu0
    %1404 = vmatprep.mubr.f32.mxu0 0.0
    %1405 = vmatmul.mubr.f32.gmra.mxu0 %v1221
    %v1406 = vpop.f32.mrf.mxu0
    %v1407 = vadd.f32 0.0, %v1406
    %v1408 = vpop.f32.mrf.mxu0
    %1409 = vmatprep.mubr.f32.mxu0 0.0
    %1410 = vmatmul.mubr.f32.gmra.mxu0 %v1227
    %v1411 = vpop.f32.mrf.mxu0
    %v1412 = vadd.f32 0.0, %v1411
    %v1413 = vpop.f32.mrf.mxu0
    %1414 = vdwg.mxu0
    %1415 = vmatprep.subr.mxu0 0.0
    %1416 = vmatpush1.msra.mxu0 %v1246
    %1417 = vmatprep.subr.mxu0 0.0
    %1418 = vmatpush1.msra.mxu0 %v1245
    %1419 = vmatprep.subr.mxu0 0.0
    %1420 = vmatpush1.msra.mxu0 %v1244
    %1421 = vmatprep.subr.mxu0 0.0
    %1422 = vmatpush1.msra.mxu0 %v1243
    %1423 = vmatprep.subr.mxu0 0.0
    %1424 = vmatpush1.msra.mxu0 %v1242
    %1425 = vmatprep.subr.mxu0 0.0
    %1426 = vmatpush1.msra.mxu0 %v1241
    %1427 = vmatprep.subr.mxu0 0.0
    %1428 = vmatpush1.msra.mxu0 %v1240
    %1429 = vmatprep.subr.mxu0 0.0
    %1430 = vmatpush1.msra.mxu0 %v1239
    %1431 = vmatprep.subr.mxu0 0.0
    %1432 = vmatpush1.msra.mxu0 %v1238
    %1433 = vmatprep.subr.mxu0 0.0
    %1434 = vmatpush1.msra.mxu0 %v1237
    %1435 = vmatprep.subr.mxu0 0.0
    %1436 = vmatpush1.msra.mxu0 %v1236
    %1437 = vmatprep.subr.mxu0 0.0
    %1438 = vmatpush1.msra.mxu0 %v1235
    %1439 = vmatprep.subr.mxu0 0.0
    %1440 = vmatpush1.msra.mxu0 %v1234
    %1441 = vmatprep.subr.mxu0 0.0
    %1442 = vmatpush1.msra.mxu0 %v1233
    %1443 = vmatprep.subr.mxu0 0.0
    %1444 = vmatpush1.msra.mxu0 %v1232
    %1445 = vmatprep.subr.mxu0 0.0
    %1446 = vmatpush1.msra.mxu0 %v1231
    %1447 = vmatprep.subr.mxu0 0.0
    %1448 = vmatpush2.msra.mxu0 0.0
    %1449 = vmatprep.subr.mxu0 0.0
    %1450 = vmatpush2.msra.mxu0 0.0
    %1451 = vmatprep.subr.mxu0 0.0
    %1452 = vmatpush2.msra.mxu0 0.0
    %1453 = vmatprep.subr.mxu0 0.0
    %1454 = vmatpush2.msra.mxu0 0.0
    %1455 = vmatprep.subr.mxu0 0.0
    %1456 = vmatpush2.msra.mxu0 0.0
    %1457 = vmatprep.subr.mxu0 0.0
    %1458 = vmatpush2.msra.mxu0 0.0
    %1459 = vmatprep.subr.mxu0 0.0
    %1460 = vmatpush2.msra.mxu0 0.0
    %1461 = vmatprep.subr.mxu0 0.0
    %1462 = vmatpush2.msra.mxu0 0.0
    %1463 = vmatprep.subr.mxu0 0.0
    %1464 = vmatpush2.msra.mxu0 0.0
    %1465 = vmatprep.subr.mxu0 0.0
    %1466 = vmatpush2.msra.mxu0 0.0
    %1467 = vmatprep.subr.mxu0 0.0
    %1468 = vmatpush2.msra.mxu0 0.0
    %1469 = vmatprep.subr.mxu0 0.0
    %1470 = vmatpush2.msra.mxu0 0.0
    %1471 = vmatprep.subr.mxu0 0.0
    %1472 = vmatpush2.msra.mxu0 0.0
    %1473 = vmatprep.subr.mxu0 0.0
    %1474 = vmatpush2.msra.mxu0 0.0
    %1475 = vmatprep.subr.mxu0 0.0
    %1476 = vmatpush2.msra.mxu0 0.0
    %1477 = vmatprep.subr.mxu0 0.0
    %1478 = vmatpush2.msra.mxu0 0.0
    %1479 = vmatprep.mubr.f32.mxu0 0.0
    %1480 = vmatmul.mubr.f32.gmra.mxu0 %v732
    %v1481 = vpop.f32.mrf.mxu0
    %v1482 = vadd.f32 %v1337, %v1481
    %v1483 = vpop.f32.mrf.mxu0
    %1484 = vmatprep.mubr.f32.mxu0 0.0
    %1485 = vmatmul.mubr.f32.gmra.mxu0 %v733
    %v1486 = vpop.f32.mrf.mxu0
    %v1487 = vadd.f32 %v1342, %v1486
    %v1488 = vpop.f32.mrf.mxu0
    %1489 = vmatprep.mubr.f32.mxu0 0.0
    %1490 = vmatmul.mubr.f32.gmra.mxu0 %v734
    %v1491 = vpop.f32.mrf.mxu0
    %v1492 = vadd.f32 %v1347, %v1491
    %v1493 = vpop.f32.mrf.mxu0
    %1494 = vmatprep.mubr.f32.mxu0 0.0
    %1495 = vmatmul.mubr.f32.gmra.mxu0 %v735
    %v1496 = vpop.f32.mrf.mxu0
    %v1497 = vadd.f32 %v1352, %v1496
    %v1498 = vpop.f32.mrf.mxu0
    %1499 = vmatprep.mubr.f32.mxu0 0.0
    %1500 = vmatmul.mubr.f32.gmra.mxu0 %v736
    %v1501 = vpop.f32.mrf.mxu0
    %v1502 = vadd.f32 %v1357, %v1501
    %v1503 = vpop.f32.mrf.mxu0
    %1504 = vmatprep.mubr.f32.mxu0 0.0
    %1505 = vmatmul.mubr.f32.gmra.mxu0 %v737
    %v1506 = vpop.f32.mrf.mxu0
    %v1507 = vadd.f32 %v1362, %v1506
    %v1508 = vpop.f32.mrf.mxu0
    %1509 = vmatprep.mubr.f32.mxu0 0.0
    %1510 = vmatmul.mubr.f32.gmra.mxu0 %v738
    %v1511 = vpop.f32.mrf.mxu0
    %v1512 = vadd.f32 %v1367, %v1511
    %v1513 = vpop.f32.mrf.mxu0
    %1514 = vmatprep.mubr.f32.mxu0 0.0
    %1515 = vmatmul.mubr.f32.gmra.mxu0 %v739
    %v1516 = vpop.f32.mrf.mxu0
    %v1517 = vadd.f32 %v1372, %v1516
    %v1518 = vpop.f32.mrf.mxu0
    %1519 = vmatprep.mubr.f32.mxu0 0.0
    %1520 = vmatmul.mubr.f32.gmra.mxu0 %v740
    %v1521 = vpop.f32.mrf.mxu0
    %v1522 = vadd.f32 %v1377, %v1521
    %v1523 = vpop.f32.mrf.mxu0
    %1524 = vmatprep.mubr.f32.mxu0 0.0
    %1525 = vmatmul.mubr.f32.gmra.mxu0 %v741
    %v1526 = vpop.f32.mrf.mxu0
    %v1527 = vadd.f32 %v1382, %v1526
    %v1528 = vpop.f32.mrf.mxu0
    %1529 = vmatprep.mubr.f32.mxu0 0.0
    %1530 = vmatmul.mubr.f32.gmra.mxu0 %v742
    %v1531 = vpop.f32.mrf.mxu0
    %v1532 = vadd.f32 %v1387, %v1531
    %v1533 = vpop.f32.mrf.mxu0
    %1534 = vmatprep.mubr.f32.mxu0 0.0
    %1535 = vmatmul.mubr.f32.gmra.mxu0 %v743
    %v1536 = vpop.f32.mrf.mxu0
    %v1537 = vadd.f32 %v1392, %v1536
    %v1538 = vpop.f32.mrf.mxu0
    %1539 = vmatprep.mubr.f32.mxu0 0.0
    %1540 = vmatmul.mubr.f32.gmra.mxu0 %v744
    %v1541 = vpop.f32.mrf.mxu0
    %v1542 = vadd.f32 %v1397, %v1541
    %v1543 = vpop.f32.mrf.mxu0
    %1544 = vmatprep.mubr.f32.mxu0 0.0
    %1545 = vmatmul.mubr.f32.gmra.mxu0 %v745
    %v1546 = vpop.f32.mrf.mxu0
    %v1547 = vadd.f32 %v1402, %v1546
    %v1548 = vpop.f32.mrf.mxu0
    %1549 = vmatprep.mubr.f32.mxu0 0.0
    %1550 = vmatmul.mubr.f32.gmra.mxu0 %v746
    %v1551 = vpop.f32.mrf.mxu0
    %v1552 = vadd.f32 %v1407, %v1551
    %v1553 = vpop.f32.mrf.mxu0
    %1554 = vmatprep.mubr.f32.mxu0 0.0
    %1555 = vmatmul.mubr.f32.gmra.mxu0 %v747
    %v1556 = vpop.f32.mrf.mxu0
    %v1557 = vadd.f32 %v1412, %v1556
    %v1558 = vpop.f32.mrf.mxu0
    %1559 = vdwg.mxu0
    %v1560 = vadd.f32 %v1482, %v1268
    %v1561 = vadd.f32 %v1487, %v1268
    %v1562 = vadd.f32 %v1492, %v1268
    %v1563 = vadd.f32 %v1497, %v1268
    %v1564 = vadd.f32 %v1502, %v1268
    %v1565 = vadd.f32 %v1507, %v1268
    %v1566 = vadd.f32 %v1512, %v1268
    %v1567 = vadd.f32 %v1517, %v1268
    %v1568 = vadd.f32 %v1522, %v1268
    %v1569 = vadd.f32 %v1527, %v1268
    %v1570 = vadd.f32 %v1532, %v1268
    %v1571 = vadd.f32 %v1537, %v1268
    %v1572 = vadd.f32 %v1542, %v1268
    %v1573 = vadd.f32 %v1547, %v1268
    %v1574 = vadd.f32 %v1552, %v1268
    %v1575 = vadd.f32 %v1557, %v1268
    %v1576 = vmax.f32 %v1560, 0.0
    %v1577 = vmax.f32 %v1561, 0.0
    %v1578 = vmax.f32 %v1562, 0.0
    %v1579 = vmax.f32 %v1563, 0.0
    %v1580 = vmax.f32 %v1564, 0.0
    %v1581 = vmax.f32 %v1565, 0.0
    %v1582 = vmax.f32 %v1566, 0.0
    %v1583 = vmax.f32 %v1567, 0.0
    %v1584 = vmax.f32 %v1568, 0.0
    %v1585 = vmax.f32 %v1569, 0.0
    %v1586 = vmax.f32 %v1570, 0.0
    %v1587 = vmax.f32 %v1571, 0.0
    %v1588 = vmax.f32 %v1572, 0.0
    %v1589 = vmax.f32 %v1573, 0.0
    %v1590 = vmax.f32 %v1574, 0.0
    %v1591 = vmax.f32 %v1575, 0.0
    %1592 = vmatprep.subr.mxu0 0.0
    %1593 = vmatpush1.msra.mxu0 %v1262
    %1594 = vmatprep.subr.mxu0 0.0
    %1595 = vmatpush1.msra.mxu0 %v1261
    %1596 = vmatprep.subr.mxu0 0.0
    %1597 = vmatpush1.msra.mxu0 %v1260
    %1598 = vmatprep.subr.mxu0 0.0
    %1599 = vmatpush1.msra.mxu0 %v1259
    %1600 = vmatprep.subr.mxu0 0.0
    %1601 = vmatpush1.msra.mxu0 %v1258
    %1602 = vmatprep.subr.mxu0 0.0
    %1603 = vmatpush1.msra.mxu0 %v1257
    %1604 = vmatprep.subr.mxu0 0.0
    %1605 = vmatpush1.msra.mxu0 %v1256
    %1606 = vmatprep.subr.mxu0 0.0
    %1607 = vmatpush1.msra.mxu0 %v1255
    %1608 = vmatprep.subr.mxu0 0.0
    %1609 = vmatpush1.msra.mxu0 %v1254
    %1610 = vmatprep.subr.mxu0 0.0
    %1611 = vmatpush1.msra.mxu0 %v1253
    %1612 = vmatprep.subr.mxu0 0.0
    %1613 = vmatpush1.msra.mxu0 %v1252
    %1614 = vmatprep.subr.mxu0 0.0
    %1615 = vmatpush1.msra.mxu0 %v1251
    %1616 = vmatprep.subr.mxu0 0.0
    %1617 = vmatpush1.msra.mxu0 %v1250
    %1618 = vmatprep.subr.mxu0 0.0
    %1619 = vmatpush1.msra.mxu0 %v1249
    %1620 = vmatprep.subr.mxu0 0.0
    %1621 = vmatpush1.msra.mxu0 %v1248
    %1622 = vmatprep.subr.mxu0 0.0
    %1623 = vmatpush1.msra.mxu0 %v1247
    %1624 = vmatprep.subr.mxu0 0.0
    %1625 = vmatpush2.msra.mxu0 0.0
    %1626 = vmatprep.subr.mxu0 0.0
    %1627 = vmatpush2.msra.mxu0 0.0
    %1628 = vmatprep.subr.mxu0 0.0
    %1629 = vmatpush2.msra.mxu0 0.0
    %1630 = vmatprep.subr.mxu0 0.0
    %1631 = vmatpush2.msra.mxu0 0.0
    %1632 = vmatprep.subr.mxu0 0.0
    %1633 = vmatpush2.msra.mxu0 0.0
    %1634 = vmatprep.subr.mxu0 0.0
    %1635 = vmatpush2.msra.mxu0 0.0
    %1636 = vmatprep.subr.mxu0 0.0
    %1637 = vmatpush2.msra.mxu0 0.0
    %1638 = vmatprep.subr.mxu0 0.0
    %1639 = vmatpush2.msra.mxu0 0.0
    %1640 = vmatprep.subr.mxu0 0.0
    %1641 = vmatpush2.msra.mxu0 0.0
    %1642 = vmatprep.subr.mxu0 0.0
    %1643 = vmatpush2.msra.mxu0 0.0
    %1644 = vmatprep.subr.mxu0 0.0
    %1645 = vmatpush2.msra.mxu0 0.0
    %1646 = vmatprep.subr.mxu0 0.0
    %1647 = vmatpush2.msra.mxu0 0.0
    %1648 = vmatprep.subr.mxu0 0.0
    %1649 = vmatpush2.msra.mxu0 0.0
    %1650 = vmatprep.subr.mxu0 0.0
    %1651 = vmatpush2.msra.mxu0 0.0
    %1652 = vmatprep.subr.mxu0 0.0
    %1653 = vmatpush2.msra.mxu0 0.0
    %1654 = vmatprep.subr.mxu0 0.0
    %1655 = vmatpush2.msra.mxu0 0.0
    %1656 = vmatprep.mubr.f32.mxu0 0.0
    %1657 = vmatmul.mubr.f32.gmra.mxu0 %v1139
    %v1658 = vpop.f32.mrf.mxu0
    %v1659 = vadd.f32 0.0, %v1658
    %v1660 = vpop.f32.mrf.mxu0
    %1661 = vmatprep.mubr.f32.mxu0 0.0
    %1662 = vmatmul.mubr.f32.gmra.mxu0 %v1145
    %v1663 = vpop.f32.mrf.mxu0
    %v1664 = vadd.f32 0.0, %v1663
    %v1665 = vpop.f32.mrf.mxu0
    %1666 = vmatprep.mubr.f32.mxu0 0.0
    %1667 = vmatmul.mubr.f32.gmra.mxu0 %v1151
    %v1668 = vpop.f32.mrf.mxu0
    %v1669 = vadd.f32 0.0, %v1668
    %v1670 = vpop.f32.mrf.mxu0
    %1671 = vmatprep.mubr.f32.mxu0 0.0
    %1672 = vmatmul.mubr.f32.gmra.mxu0 %v1157
    %v1673 = vpop.f32.mrf.mxu0
    %v1674 = vadd.f32 0.0, %v1673
    %v1675 = vpop.f32.mrf.mxu0
    %1676 = vmatprep.mubr.f32.mxu0 0.0
    %1677 = vmatmul.mubr.f32.gmra.mxu0 %v1163
    %v1678 = vpop.f32.mrf.mxu0
    %v1679 = vadd.f32 0.0, %v1678
    %v1680 = vpop.f32.mrf.mxu0
    %1681 = vmatprep.mubr.f32.mxu0 0.0
    %1682 = vmatmul.mubr.f32.gmra.mxu0 %v1169
    %v1683 = vpop.f32.mrf.mxu0
    %v1684 = vadd.f32 0.0, %v1683
    %v1685 = vpop.f32.mrf.mxu0
    %1686 = vmatprep.mubr.f32.mxu0 0.0
    %1687 = vmatmul.mubr.f32.gmra.mxu0 %v1175
    %v1688 = vpop.f32.mrf.mxu0
    %v1689 = vadd.f32 0.0, %v1688
    %v1690 = vpop.f32.mrf.mxu0
    %1691 = vmatprep.mubr.f32.mxu0 0.0
    %1692 = vmatmul.mubr.f32.gmra.mxu0 %v1181
    %v1693 = vpop.f32.mrf.mxu0
    %v1694 = vadd.f32 0.0, %v1693
    %v1695 = vpop.f32.mrf.mxu0
    %1696 = vmatprep.mubr.f32.mxu0 0.0
    %1697 = vmatmul.mubr.f32.gmra.mxu0 %v1187
    %v1698 = vpop.f32.mrf.mxu0
    %v1699 = vadd.f32 0.0, %v1698
    %v1700 = vpop.f32.mrf.mxu0
    %1701 = vmatprep.mubr.f32.mxu0 0.0
    %1702 = vmatmul.mubr.f32.gmra.mxu0 %v1193
    %v1703 = vpop.f32.mrf.mxu0
    %v1704 = vadd.f32 0.0, %v1703
    %v1705 = vpop.f32.mrf.mxu0
    %1706 = vmatprep.mubr.f32.mxu0 0.0
    %1707 = vmatmul.mubr.f32.gmra.mxu0 %v1199
    %v1708 = vpop.f32.mrf.mxu0
    %v1709 = vadd.f32 0.0, %v1708
    %v1710 = vpop.f32.mrf.mxu0
    %1711 = vmatprep.mubr.f32.mxu0 0.0
    %1712 = vmatmul.mubr.f32.gmra.mxu0 %v1205
    %v1713 = vpop.f32.mrf.mxu0
    %v1714 = vadd.f32 0.0, %v1713
    %v1715 = vpop.f32.mrf.mxu0
    %1716 = vmatprep.mubr.f32.mxu0 0.0
    %1717 = vmatmul.mubr.f32.gmra.mxu0 %v1211
    %v1718 = vpop.f32.mrf.mxu0
    %v1719 = vadd.f32 0.0, %v1718
    %v1720 = vpop.f32.mrf.mxu0
    %1721 = vmatprep.mubr.f32.mxu0 0.0
    %1722 = vmatmul.mubr.f32.gmra.mxu0 %v1217
    %v1723 = vpop.f32.mrf.mxu0
    %v1724 = vadd.f32 0.0, %v1723
    %v1725 = vpop.f32.mrf.mxu0
    %1726 = vmatprep.mubr.f32.mxu0 0.0
    %1727 = vmatmul.mubr.f32.gmra.mxu0 %v1223
    %v1728 = vpop.f32.mrf.mxu0
    %v1729 = vadd.f32 0.0, %v1728
    %v1730 = vpop.f32.mrf.mxu0
    %1731 = vmatprep.mubr.f32.mxu0 0.0
    %1732 = vmatmul.mubr.f32.gmra.mxu0 %v1229
    %v1733 = vpop.f32.mrf.mxu0
    %v1734 = vadd.f32 0.0, %v1733
    %v1735 = vpop.f32.mrf.mxu0
    %1736 = vdwg.mxu0
    %1737 = vmatprep.subr.mxu0 0.0
    %1738 = vmatpush1.msra.mxu0 %v1246
    %1739 = vmatprep.subr.mxu0 0.0
    %1740 = vmatpush1.msra.mxu0 %v1245
    %1741 = vmatprep.subr.mxu0 0.0
    %1742 = vmatpush1.msra.mxu0 %v1244
    %1743 = vmatprep.subr.mxu0 0.0
    %1744 = vmatpush1.msra.mxu0 %v1243
    %1745 = vmatprep.subr.mxu0 0.0
    %1746 = vmatpush1.msra.mxu0 %v1242
    %1747 = vmatprep.subr.mxu0 0.0
    %1748 = vmatpush1.msra.mxu0 %v1241
    %1749 = vmatprep.subr.mxu0 0.0
    %1750 = vmatpush1.msra.mxu0 %v1240
    %1751 = vmatprep.subr.mxu0 0.0
    %1752 = vmatpush1.msra.mxu0 %v1239
    %1753 = vmatprep.subr.mxu0 0.0
    %1754 = vmatpush1.msra.mxu0 %v1238
    %1755 = vmatprep.subr.mxu0 0.0
    %1756 = vmatpush1.msra.mxu0 %v1237
    %1757 = vmatprep.subr.mxu0 0.0
    %1758 = vmatpush1.msra.mxu0 %v1236
    %1759 = vmatprep.subr.mxu0 0.0
    %1760 = vmatpush1.msra.mxu0 %v1235
    %1761 = vmatprep.subr.mxu0 0.0
    %1762 = vmatpush1.msra.mxu0 %v1234
    %1763 = vmatprep.subr.mxu0 0.0
    %1764 = vmatpush1.msra.mxu0 %v1233
    %1765 = vmatprep.subr.mxu0 0.0
    %1766 = vmatpush1.msra.mxu0 %v1232
    %1767 = vmatprep.subr.mxu0 0.0
    %1768 = vmatpush1.msra.mxu0 %v1231
    %1769 = vmatprep.subr.mxu0 0.0
    %1770 = vmatpush2.msra.mxu0 0.0
    %1771 = vmatprep.subr.mxu0 0.0
    %1772 = vmatpush2.msra.mxu0 0.0
    %1773 = vmatprep.subr.mxu0 0.0
    %1774 = vmatpush2.msra.mxu0 0.0
    %1775 = vmatprep.subr.mxu0 0.0
    %1776 = vmatpush2.msra.mxu0 0.0
    %1777 = vmatprep.subr.mxu0 0.0
    %1778 = vmatpush2.msra.mxu0 0.0
    %1779 = vmatprep.subr.mxu0 0.0
    %1780 = vmatpush2.msra.mxu0 0.0
    %1781 = vmatprep.subr.mxu0 0.0
    %1782 = vmatpush2.msra.mxu0 0.0
    %1783 = vmatprep.subr.mxu0 0.0
    %1784 = vmatpush2.msra.mxu0 0.0
    %1785 = vmatprep.subr.mxu0 0.0
    %1786 = vmatpush2.msra.mxu0 0.0
    %1787 = vmatprep.subr.mxu0 0.0
    %1788 = vmatpush2.msra.mxu0 0.0
    %1789 = vmatprep.subr.mxu0 0.0
    %1790 = vmatpush2.msra.mxu0 0.0
    %1791 = vmatprep.subr.mxu0 0.0
    %1792 = vmatpush2.msra.mxu0 0.0
    %1793 = vmatprep.subr.mxu0 0.0
    %1794 = vmatpush2.msra.mxu0 0.0
    %1795 = vmatprep.subr.mxu0 0.0
    %1796 = vmatpush2.msra.mxu0 0.0
    %1797 = vmatprep.subr.mxu0 0.0
    %1798 = vmatpush2.msra.mxu0 0.0
    %1799 = vmatprep.subr.mxu0 0.0
    %1800 = vmatpush2.msra.mxu0 0.0
    %1801 = vmatprep.mubr.f32.mxu0 0.0
    %1802 = vmatmul.mubr.f32.gmra.mxu0 %v1054
    %v1803 = vpop.f32.mrf.mxu0
    %v1804 = vadd.f32 %v1659, %v1803
    %v1805 = vpop.f32.mrf.mxu0
    %1806 = vmatprep.mubr.f32.mxu0 0.0
    %1807 = vmatmul.mubr.f32.gmra.mxu0 %v1055
    %v1808 = vpop.f32.mrf.mxu0
    %v1809 = vadd.f32 %v1664, %v1808
    %v1810 = vpop.f32.mrf.mxu0
    %1811 = vmatprep.mubr.f32.mxu0 0.0
    %1812 = vmatmul.mubr.f32.gmra.mxu0 %v1056
    %v1813 = vpop.f32.mrf.mxu0
    %v1814 = vadd.f32 %v1669, %v1813
    %v1815 = vpop.f32.mrf.mxu0
    %1816 = vmatprep.mubr.f32.mxu0 0.0
    %1817 = vmatmul.mubr.f32.gmra.mxu0 %v1057
    %v1818 = vpop.f32.mrf.mxu0
    %v1819 = vadd.f32 %v1674, %v1818
    %v1820 = vpop.f32.mrf.mxu0
    %1821 = vmatprep.mubr.f32.mxu0 0.0
    %1822 = vmatmul.mubr.f32.gmra.mxu0 %v1058
    %v1823 = vpop.f32.mrf.mxu0
    %v1824 = vadd.f32 %v1679, %v1823
    %v1825 = vpop.f32.mrf.mxu0
    %1826 = vmatprep.mubr.f32.mxu0 0.0
    %1827 = vmatmul.mubr.f32.gmra.mxu0 %v1059
    %v1828 = vpop.f32.mrf.mxu0
    %v1829 = vadd.f32 %v1684, %v1828
    %v1830 = vpop.f32.mrf.mxu0
    %1831 = vmatprep.mubr.f32.mxu0 0.0
    %1832 = vmatmul.mubr.f32.gmra.mxu0 %v1060
    %v1833 = vpop.f32.mrf.mxu0
    %v1834 = vadd.f32 %v1689, %v1833
    %v1835 = vpop.f32.mrf.mxu0
    %1836 = vmatprep.mubr.f32.mxu0 0.0
    %1837 = vmatmul.mubr.f32.gmra.mxu0 %v1061
    %v1838 = vpop.f32.mrf.mxu0
    %v1839 = vadd.f32 %v1694, %v1838
    %v1840 = vpop.f32.mrf.mxu0
    %1841 = vmatprep.mubr.f32.mxu0 0.0
    %1842 = vmatmul.mubr.f32.gmra.mxu0 %v1062
    %v1843 = vpop.f32.mrf.mxu0
    %v1844 = vadd.f32 %v1699, %v1843
    %v1845 = vpop.f32.mrf.mxu0
    %1846 = vmatprep.mubr.f32.mxu0 0.0
    %1847 = vmatmul.mubr.f32.gmra.mxu0 %v1063
    %v1848 = vpop.f32.mrf.mxu0
    %v1849 = vadd.f32 %v1704, %v1848
    %v1850 = vpop.f32.mrf.mxu0
    %1851 = vmatprep.mubr.f32.mxu0 0.0
    %1852 = vmatmul.mubr.f32.gmra.mxu0 %v1064
    %v1853 = vpop.f32.mrf.mxu0
    %v1854 = vadd.f32 %v1709, %v1853
    %v1855 = vpop.f32.mrf.mxu0
    %1856 = vmatprep.mubr.f32.mxu0 0.0
    %1857 = vmatmul.mubr.f32.gmra.mxu0 %v1065
    %v1858 = vpop.f32.mrf.mxu0
    %v1859 = vadd.f32 %v1714, %v1858
    %v1860 = vpop.f32.mrf.mxu0
    %1861 = vmatprep.mubr.f32.mxu0 0.0
    %1862 = vmatmul.mubr.f32.gmra.mxu0 %v1066
    %v1863 = vpop.f32.mrf.mxu0
    %v1864 = vadd.f32 %v1719, %v1863
    %v1865 = vpop.f32.mrf.mxu0
    %1866 = vmatprep.mubr.f32.mxu0 0.0
    %1867 = vmatmul.mubr.f32.gmra.mxu0 %v1067
    %v1868 = vpop.f32.mrf.mxu0
    %v1869 = vadd.f32 %v1724, %v1868
    %v1870 = vpop.f32.mrf.mxu0
    %1871 = vmatprep.mubr.f32.mxu0 0.0
    %1872 = vmatmul.mubr.f32.gmra.mxu0 %v1068
    %v1873 = vpop.f32.mrf.mxu0
    %v1874 = vadd.f32 %v1729, %v1873
    %v1875 = vpop.f32.mrf.mxu0
    %1876 = vmatprep.mubr.f32.mxu0 0.0
    %1877 = vmatmul.mubr.f32.gmra.mxu0 %v1069
    %v1878 = vpop.f32.mrf.mxu0
    %v1879 = vadd.f32 %v1734, %v1878
    %v1880 = vpop.f32.mrf.mxu0
    %1881 = vdwg.mxu0
    %v1882 = vadd.f32 %v1804, %v1268
    %v1883 = vadd.f32 %v1809, %v1268
    %v1884 = vadd.f32 %v1814, %v1268
    %v1885 = vadd.f32 %v1819, %v1268
    %v1886 = vadd.f32 %v1824, %v1268
    %v1887 = vadd.f32 %v1829, %v1268
    %v1888 = vadd.f32 %v1834, %v1268
    %v1889 = vadd.f32 %v1839, %v1268
    %v1890 = vadd.f32 %v1844, %v1268
    %v1891 = vadd.f32 %v1849, %v1268
    %v1892 = vadd.f32 %v1854, %v1268
    %v1893 = vadd.f32 %v1859, %v1268
    %v1894 = vadd.f32 %v1864, %v1268
    %v1895 = vadd.f32 %v1869, %v1268
    %v1896 = vadd.f32 %v1874, %v1268
    %v1897 = vadd.f32 %v1879, %v1268
    %v1898 = vmax.f32 %v1882, 0.0
    %v1899 = vmax.f32 %v1883, 0.0
    %v1900 = vmax.f32 %v1884, 0.0
    %v1901 = vmax.f32 %v1885, 0.0
    %v1902 = vmax.f32 %v1886, 0.0
    %v1903 = vmax.f32 %v1887, 0.0
    %v1904 = vmax.f32 %v1888, 0.0
    %v1905 = vmax.f32 %v1889, 0.0
    %v1906 = vmax.f32 %v1890, 0.0
    %v1907 = vmax.f32 %v1891, 0.0
    %v1908 = vmax.f32 %v1892, 0.0
    %v1909 = vmax.f32 %v1893, 0.0
    %v1910 = vmax.f32 %v1894, 0.0
    %v1911 = vmax.f32 %v1895, 0.0
    %v1912 = vmax.f32 %v1896, 0.0
    %v1913 = vmax.f32 %v1897, 0.0
    %1914 = vmatprep.subr.mxu0 %v1913
    %1915 = vmatpush1.msra.mxu0 %v1591
    %1916 = vmatprep.subr.mxu0 %v1912
    %1917 = vmatpush1.msra.mxu0 %v1590
    %1918 = vmatprep.subr.mxu0 %v1911
    %1919 = vmatpush1.msra.mxu0 %v1589
    %1920 = vmatprep.subr.mxu0 %v1910
    %1921 = vmatpush1.msra.mxu0 %v1588
    %1922 = vmatprep.subr.mxu0 %v1909
    %1923 = vmatpush1.msra.mxu0 %v1587
    %1924 = vmatprep.subr.mxu0 %v1908
    %1925 = vmatpush1.msra.mxu0 %v1586
    %1926 = vmatprep.subr.mxu0 %v1907
    %1927 = vmatpush1.msra.mxu0 %v1585
    %1928 = vmatprep.subr.mxu0 %v1906
    %1929 = vmatpush1.msra.mxu0 %v1584
    %1930 = vmatprep.subr.mxu0 %v1905
    %1931 = vmatpush1.msra.mxu0 %v1583
    %1932 = vmatprep.subr.mxu0 %v1904
    %1933 = vmatpush1.msra.mxu0 %v1582
    %1934 = vmatprep.subr.mxu0 %v1903
    %1935 = vmatpush1.msra.mxu0 %v1581
    %1936 = vmatprep.subr.mxu0 %v1902
    %1937 = vmatpush1.msra.mxu0 %v1580
    %1938 = vmatprep.subr.mxu0 %v1901
    %1939 = vmatpush1.msra.mxu0 %v1579
    %1940 = vmatprep.subr.mxu0 %v1900
    %1941 = vmatpush1.msra.mxu0 %v1578
    %1942 = vmatprep.subr.mxu0 %v1899
    %1943 = vmatpush1.msra.mxu0 %v1577
    %1944 = vmatprep.subr.mxu0 %v1898
    %1945 = vmatpush1.msra.mxu0 %v1576
    %1946 = vmatprep.subr.mxu0 0.0
    %1947 = vmatpush2.msra.mxu0 0.0
    %1948 = vmatprep.subr.mxu0 0.0
    %1949 = vmatpush2.msra.mxu0 0.0
    %1950 = vmatprep.subr.mxu0 0.0
    %1951 = vmatpush2.msra.mxu0 0.0
    %1952 = vmatprep.subr.mxu0 0.0
    %1953 = vmatpush2.msra.mxu0 0.0
    %1954 = vmatprep.subr.mxu0 0.0
    %1955 = vmatpush2.msra.mxu0 0.0
    %1956 = vmatprep.subr.mxu0 0.0
    %1957 = vmatpush2.msra.mxu0 0.0
    %1958 = vmatprep.subr.mxu0 0.0
    %1959 = vmatpush2.msra.mxu0 0.0
    %1960 = vmatprep.subr.mxu0 0.0
    %1961 = vmatpush2.msra.mxu0 0.0
    %1962 = vmatprep.subr.mxu0 0.0
    %1963 = vmatpush2.msra.mxu0 0.0
    %1964 = vmatprep.subr.mxu0 0.0
    %1965 = vmatpush2.msra.mxu0 0.0
    %1966 = vmatprep.subr.mxu0 0.0
    %1967 = vmatpush2.msra.mxu0 0.0
    %1968 = vmatprep.subr.mxu0 0.0
    %1969 = vmatpush2.msra.mxu0 0.0
    %1970 = vmatprep.subr.mxu0 0.0
    %1971 = vmatpush2.msra.mxu0 0.0
    %1972 = vmatprep.subr.mxu0 0.0
    %1973 = vmatpush2.msra.mxu0 0.0
    %1974 = vmatprep.subr.mxu0 0.0
    %1975 = vmatpush2.msra.mxu0 0.0
    %1976 = vmatprep.subr.mxu0 0.0
    %1977 = vmatpush2.msra.mxu0 0.0
    %1978 = vmatprep.mubr.f32.mxu0 0.0
    %1979 = vmatmul.mubr.f32.gmra.mxu0 %v178
    %v1980 = vpop.f32.mrf.mxu0
    %v1981 = vadd.f32 0.0, %v1980
    %v1982 = vpop.f32.mrf.mxu0
    %v1983 = vadd.f32 0.0, %v1982
    %1984 = vmatprep.mubr.f32.mxu0 0.0
    %1985 = vmatmul.mubr.f32.gmra.mxu0 %v179
    %v1986 = vpop.f32.mrf.mxu0
    %v1987 = vadd.f32 0.0, %v1986
    %v1988 = vpop.f32.mrf.mxu0
    %v1989 = vadd.f32 0.0, %v1988
    %1990 = vmatprep.mubr.f32.mxu0 0.0
    %1991 = vmatmul.mubr.f32.gmra.mxu0 %v180
    %v1992 = vpop.f32.mrf.mxu0
    %v1993 = vadd.f32 0.0, %v1992
    %v1994 = vpop.f32.mrf.mxu0
    %v1995 = vadd.f32 0.0, %v1994
    %1996 = vmatprep.mubr.f32.mxu0 0.0
    %1997 = vmatmul.mubr.f32.gmra.mxu0 %v181
    %v1998 = vpop.f32.mrf.mxu0
    %v1999 = vadd.f32 0.0, %v1998
    %v2000 = vpop.f32.mrf.mxu0
    %v2001 = vadd.f32 0.0, %v2000
    %2002 = vmatprep.mubr.f32.mxu0 0.0
    %2003 = vmatmul.mubr.f32.gmra.mxu0 %v182
    %v2004 = vpop.f32.mrf.mxu0
    %v2005 = vadd.f32 0.0, %v2004
    %v2006 = vpop.f32.mrf.mxu0
    %v2007 = vadd.f32 0.0, %v2006
    %2008 = vmatprep.mubr.f32.mxu0 0.0
    %2009 = vmatmul.mubr.f32.gmra.mxu0 %v183
    %v2010 = vpop.f32.mrf.mxu0
    %v2011 = vadd.f32 0.0, %v2010
    %v2012 = vpop.f32.mrf.mxu0
    %v2013 = vadd.f32 0.0, %v2012
    %2014 = vmatprep.mubr.f32.mxu0 0.0
    %2015 = vmatmul.mubr.f32.gmra.mxu0 %v184
    %v2016 = vpop.f32.mrf.mxu0
    %v2017 = vadd.f32 0.0, %v2016
    %v2018 = vpop.f32.mrf.mxu0
    %v2019 = vadd.f32 0.0, %v2018
    %2020 = vmatprep.mubr.f32.mxu0 0.0
    %2021 = vmatmul.mubr.f32.gmra.mxu0 %v185
    %v2022 = vpop.f32.mrf.mxu0
    %v2023 = vadd.f32 0.0, %v2022
    %v2024 = vpop.f32.mrf.mxu0
    %v2025 = vadd.f32 0.0, %v2024
    %2026 = vmatprep.mubr.f32.mxu0 0.0
    %2027 = vmatmul.mubr.f32.gmra.mxu0 %v186
    %v2028 = vpop.f32.mrf.mxu0
    %v2029 = vadd.f32 0.0, %v2028
    %v2030 = vpop.f32.mrf.mxu0
    %v2031 = vadd.f32 0.0, %v2030
    %2032 = vmatprep.mubr.f32.mxu0 0.0
    %2033 = vmatmul.mubr.f32.gmra.mxu0 %v187
    %v2034 = vpop.f32.mrf.mxu0
    %v2035 = vadd.f32 0.0, %v2034
    %v2036 = vpop.f32.mrf.mxu0
    %v2037 = vadd.f32 0.0, %v2036
    %2038 = vmatprep.mubr.f32.mxu0 0.0
    %2039 = vmatmul.mubr.f32.gmra.mxu0 %v188
    %v2040 = vpop.f32.mrf.mxu0
    %v2041 = vadd.f32 0.0, %v2040
    %v2042 = vpop.f32.mrf.mxu0
    %v2043 = vadd.f32 0.0, %v2042
    %2044 = vmatprep.mubr.f32.mxu0 0.0
    %2045 = vmatmul.mubr.f32.gmra.mxu0 %v189
    %v2046 = vpop.f32.mrf.mxu0
    %v2047 = vadd.f32 0.0, %v2046
    %v2048 = vpop.f32.mrf.mxu0
    %v2049 = vadd.f32 0.0, %v2048
    %2050 = vmatprep.mubr.f32.mxu0 0.0
    %2051 = vmatmul.mubr.f32.gmra.mxu0 %v190
    %v2052 = vpop.f32.mrf.mxu0
    %v2053 = vadd.f32 0.0, %v2052
    %v2054 = vpop.f32.mrf.mxu0
    %v2055 = vadd.f32 0.0, %v2054
    %2056 = vmatprep.mubr.f32.mxu0 0.0
    %2057 = vmatmul.mubr.f32.gmra.mxu0 %v191
    %v2058 = vpop.f32.mrf.mxu0
    %v2059 = vadd.f32 0.0, %v2058
    %v2060 = vpop.f32.mrf.mxu0
    %v2061 = vadd.f32 0.0, %v2060
    %2062 = vmatprep.mubr.f32.mxu0 0.0
    %2063 = vmatmul.mubr.f32.gmra.mxu0 %v192
    %v2064 = vpop.f32.mrf.mxu0
    %v2065 = vadd.f32 0.0, %v2064
    %v2066 = vpop.f32.mrf.mxu0
    %v2067 = vadd.f32 0.0, %v2066
    %2068 = vmatprep.mubr.f32.mxu0 0.0
    %2069 = vmatmul.mubr.f32.gmra.mxu0 %v193
    %v2070 = vpop.f32.mrf.mxu0
    %v2071 = vadd.f32 0.0, %v2070
    %v2072 = vpop.f32.mrf.mxu0
    %v2073 = vadd.f32 0.0, %v2072
    %2074 = vdwg.mxu0
    %v2075 = vld [vmem:[#allocation6] sm:$0xff]
    %v2076 = vld [vmem:[#allocation6 + $0x8] sm:$0xff]
    %v2077 = vld [vmem:[#allocation6 + $0x10] sm:$0xff]
    %v2078 = vld [vmem:[#allocation6 + $0x18] sm:$0xff]
    %v2079 = vld [vmem:[#allocation6 + $0x20] sm:$0xff]
    %v2080 = vld [vmem:[#allocation6 + $0x28] sm:$0xff]
    %v2081 = vld [vmem:[#allocation6 + $0x30] sm:$0xff]
    %v2082 = vld [vmem:[#allocation6 + $0x38] sm:$0xff]
    %v2083 = vld [vmem:[#allocation6 + $0x40] sm:$0xff]
    %v2084 = vld [vmem:[#allocation6 + $0x48] sm:$0xff]
    %v2085 = vld [vmem:[#allocation6 + $0x50] sm:$0xff]
    %v2086 = vld [vmem:[#allocation6 + $0x58] sm:$0xff]
    %v2087 = vld [vmem:[#allocation6 + $0x60] sm:$0xff]
    %v2088 = vld [vmem:[#allocation6 + $0x68] sm:$0xff]
    %v2089 = vld [vmem:[#allocation6 + $0x70] sm:$0xff]
    %v2090 = vld [vmem:[#allocation6 + $0x78] sm:$0xff]
    %v2091 = vld [vmem:[#allocation10] sm:$0xff]
    %v2092 = vld [vmem:[#allocation10 + $0x8] sm:$0xff]
    %v2093 = vld [vmem:[#allocation10 + $0x10] sm:$0xff]
    %v2094 = vld [vmem:[#allocation10 + $0x18] sm:$0xff]
    %v2095 = vld [vmem:[#allocation10 + $0x20] sm:$0xff]
    %v2096 = vld [vmem:[#allocation10 + $0x28] sm:$0xff]
    %v2097 = vld [vmem:[#allocation10 + $0x30] sm:$0xff]
    %v2098 = vld [vmem:[#allocation10 + $0x38] sm:$0xff]
    %v2099 = vld [vmem:[#allocation10 + $0x40] sm:$0xff]
    %v2100 = vld [vmem:[#allocation10 + $0x48] sm:$0xff]
    %v2101 = vld [vmem:[#allocation10 + $0x50] sm:$0xff]
    %v2102 = vld [vmem:[#allocation10 + $0x58] sm:$0xff]
    %v2103 = vld [vmem:[#allocation10 + $0x60] sm:$0xff]
    %v2104 = vld [vmem:[#allocation10 + $0x68] sm:$0xff]
    %v2105 = vld [vmem:[#allocation10 + $0x70] sm:$0xff]
    %v2106 = vld [vmem:[#allocation10 + $0x78] sm:$0xff]
    %v2107 = vld [vmem:[%s10] sm:$0x1]
    %v2109 = vlaneseq
    %v2110 = vshrl.u32 %v2109, 7
    %v2111 = vsub.s32 0, %v2110
    %v2112 = vrot.slane %v2107, %v2111
    %2114 = vmatprep.subr.mxu0 0.0
    %2115 = vmatpush1.msra.mxu0 %v2106
    %2116 = vmatprep.subr.mxu0 0.0
    %2117 = vmatpush1.msra.mxu0 %v2105
    %2118 = vmatprep.subr.mxu0 0.0
    %2119 = vmatpush1.msra.mxu0 %v2104
    %2120 = vmatprep.subr.mxu0 0.0
    %2121 = vmatpush1.msra.mxu0 %v2103
    %2122 = vmatprep.subr.mxu0 0.0
    %2123 = vmatpush1.msra.mxu0 %v2102
    %2124 = vmatprep.subr.mxu0 0.0
    %2125 = vmatpush1.msra.mxu0 %v2101
    %2126 = vmatprep.subr.mxu0 0.0
    %2127 = vmatpush1.msra.mxu0 %v2100
    %2128 = vmatprep.subr.mxu0 0.0
    %2129 = vmatpush1.msra.mxu0 %v2099
    %2130 = vmatprep.subr.mxu0 0.0
    %2131 = vmatpush1.msra.mxu0 %v2098
    %2132 = vmatprep.subr.mxu0 0.0
    %2133 = vmatpush1.msra.mxu0 %v2097
    %2134 = vmatprep.subr.mxu0 0.0
    %2135 = vmatpush1.msra.mxu0 %v2096
    %2136 = vmatprep.subr.mxu0 0.0
    %2137 = vmatpush1.msra.mxu0 %v2095
    %2138 = vmatprep.subr.mxu0 0.0
    %2139 = vmatpush1.msra.mxu0 %v2094
    %2140 = vmatprep.subr.mxu0 0.0
    %2141 = vmatpush1.msra.mxu0 %v2093
    %2142 = vmatprep.subr.mxu0 0.0
    %2143 = vmatpush1.msra.mxu0 %v2092
    %2144 = vmatprep.subr.mxu0 0.0
    %2145 = vmatpush1.msra.mxu0 %v2091
    %2146 = vmatprep.subr.mxu0 0.0
    %2147 = vmatpush2.msra.mxu0 0.0
    %2148 = vmatprep.subr.mxu0 0.0
    %2149 = vmatpush2.msra.mxu0 0.0
    %2150 = vmatprep.subr.mxu0 0.0
    %2151 = vmatpush2.msra.mxu0 0.0
    %2152 = vmatprep.subr.mxu0 0.0
    %2153 = vmatpush2.msra.mxu0 0.0
    %2154 = vmatprep.subr.mxu0 0.0
    %2155 = vmatpush2.msra.mxu0 0.0
    %2156 = vmatprep.subr.mxu0 0.0
    %2157 = vmatpush2.msra.mxu0 0.0
    %2158 = vmatprep.subr.mxu0 0.0
    %2159 = vmatpush2.msra.mxu0 0.0
    %2160 = vmatprep.subr.mxu0 0.0
    %2161 = vmatpush2.msra.mxu0 0.0
    %2162 = vmatprep.subr.mxu0 0.0
    %2163 = vmatpush2.msra.mxu0 0.0
    %2164 = vmatprep.subr.mxu0 0.0
    %2165 = vmatpush2.msra.mxu0 0.0
    %2166 = vmatprep.subr.mxu0 0.0
    %2167 = vmatpush2.msra.mxu0 0.0
    %2168 = vmatprep.subr.mxu0 0.0
    %2169 = vmatpush2.msra.mxu0 0.0
    %2170 = vmatprep.subr.mxu0 0.0
    %2171 = vmatpush2.msra.mxu0 0.0
    %2172 = vmatprep.subr.mxu0 0.0
    %2173 = vmatpush2.msra.mxu0 0.0
    %2174 = vmatprep.subr.mxu0 0.0
    %2175 = vmatpush2.msra.mxu0 0.0
    %2176 = vmatprep.subr.mxu0 0.0
    %2177 = vmatpush2.msra.mxu0 0.0
    %2178 = vmatprep.mubr.f32.mxu0 0.0
    %2179 = vmatmul.mubr.f32.gmra.mxu0 %v1981
    %v2180 = vpop.f32.mrf.mxu0
    %v2181 = vadd.f32 0.0, %v2180
    %v2182 = vpop.f32.mrf.mxu0
    %2183 = vmatprep.mubr.f32.mxu0 0.0
    %2184 = vmatmul.mubr.f32.gmra.mxu0 %v1987
    %v2185 = vpop.f32.mrf.mxu0
    %v2186 = vadd.f32 0.0, %v2185
    %v2187 = vpop.f32.mrf.mxu0
    %2188 = vmatprep.mubr.f32.mxu0 0.0
    %2189 = vmatmul.mubr.f32.gmra.mxu0 %v1993
    %v2190 = vpop.f32.mrf.mxu0
    %v2191 = vadd.f32 0.0, %v2190
    %v2192 = vpop.f32.mrf.mxu0
    %2193 = vmatprep.mubr.f32.mxu0 0.0
    %2194 = vmatmul.mubr.f32.gmra.mxu0 %v1999
    %v2195 = vpop.f32.mrf.mxu0
    %v2196 = vadd.f32 0.0, %v2195
    %v2197 = vpop.f32.mrf.mxu0
    %2198 = vmatprep.mubr.f32.mxu0 0.0
    %2199 = vmatmul.mubr.f32.gmra.mxu0 %v2005
    %v2200 = vpop.f32.mrf.mxu0
    %v2201 = vadd.f32 0.0, %v2200
    %v2202 = vpop.f32.mrf.mxu0
    %2203 = vmatprep.mubr.f32.mxu0 0.0
    %2204 = vmatmul.mubr.f32.gmra.mxu0 %v2011
    %v2205 = vpop.f32.mrf.mxu0
    %v2206 = vadd.f32 0.0, %v2205
    %v2207 = vpop.f32.mrf.mxu0
    %2208 = vmatprep.mubr.f32.mxu0 0.0
    %2209 = vmatmul.mubr.f32.gmra.mxu0 %v2017
    %v2210 = vpop.f32.mrf.mxu0
    %v2211 = vadd.f32 0.0, %v2210
    %v2212 = vpop.f32.mrf.mxu0
    %2213 = vmatprep.mubr.f32.mxu0 0.0
    %2214 = vmatmul.mubr.f32.gmra.mxu0 %v2023
    %v2215 = vpop.f32.mrf.mxu0
    %v2216 = vadd.f32 0.0, %v2215
    %v2217 = vpop.f32.mrf.mxu0
    %2218 = vmatprep.mubr.f32.mxu0 0.0
    %2219 = vmatmul.mubr.f32.gmra.mxu0 %v2029
    %v2220 = vpop.f32.mrf.mxu0
    %v2221 = vadd.f32 0.0, %v2220
    %v2222 = vpop.f32.mrf.mxu0
    %2223 = vmatprep.mubr.f32.mxu0 0.0
    %2224 = vmatmul.mubr.f32.gmra.mxu0 %v2035
    %v2225 = vpop.f32.mrf.mxu0
    %v2226 = vadd.f32 0.0, %v2225
    %v2227 = vpop.f32.mrf.mxu0
    %2228 = vmatprep.mubr.f32.mxu0 0.0
    %2229 = vmatmul.mubr.f32.gmra.mxu0 %v2041
    %v2230 = vpop.f32.mrf.mxu0
    %v2231 = vadd.f32 0.0, %v2230
    %v2232 = vpop.f32.mrf.mxu0
    %2233 = vmatprep.mubr.f32.mxu0 0.0
    %2234 = vmatmul.mubr.f32.gmra.mxu0 %v2047
    %v2235 = vpop.f32.mrf.mxu0
    %v2236 = vadd.f32 0.0, %v2235
    %v2237 = vpop.f32.mrf.mxu0
    %2238 = vmatprep.mubr.f32.mxu0 0.0
    %2239 = vmatmul.mubr.f32.gmra.mxu0 %v2053
    %v2240 = vpop.f32.mrf.mxu0
    %v2241 = vadd.f32 0.0, %v2240
    %v2242 = vpop.f32.mrf.mxu0
    %2243 = vmatprep.mubr.f32.mxu0 0.0
    %2244 = vmatmul.mubr.f32.gmra.mxu0 %v2059
    %v2245 = vpop.f32.mrf.mxu0
    %v2246 = vadd.f32 0.0, %v2245
    %v2247 = vpop.f32.mrf.mxu0
    %2248 = vmatprep.mubr.f32.mxu0 0.0
    %2249 = vmatmul.mubr.f32.gmra.mxu0 %v2065
    %v2250 = vpop.f32.mrf.mxu0
    %v2251 = vadd.f32 0.0, %v2250
    %v2252 = vpop.f32.mrf.mxu0
    %2253 = vmatprep.mubr.f32.mxu0 0.0
    %2254 = vmatmul.mubr.f32.gmra.mxu0 %v2071
    %v2255 = vpop.f32.mrf.mxu0
    %v2256 = vadd.f32 0.0, %v2255
    %v2257 = vpop.f32.mrf.mxu0
    %2258 = vdwg.mxu0
    %2259 = vmatprep.subr.mxu0 0.0
    %2260 = vmatpush1.msra.mxu0 %v2090
    %2261 = vmatprep.subr.mxu0 0.0
    %2262 = vmatpush1.msra.mxu0 %v2089
    %2263 = vmatprep.subr.mxu0 0.0
    %2264 = vmatpush1.msra.mxu0 %v2088
    %2265 = vmatprep.subr.mxu0 0.0
    %2266 = vmatpush1.msra.mxu0 %v2087
    %2267 = vmatprep.subr.mxu0 0.0
    %2268 = vmatpush1.msra.mxu0 %v2086
    %2269 = vmatprep.subr.mxu0 0.0
    %2270 = vmatpush1.msra.mxu0 %v2085
    %2271 = vmatprep.subr.mxu0 0.0
    %2272 = vmatpush1.msra.mxu0 %v2084
    %2273 = vmatprep.subr.mxu0 0.0
    %2274 = vmatpush1.msra.mxu0 %v2083
    %2275 = vmatprep.subr.mxu0 0.0
    %2276 = vmatpush1.msra.mxu0 %v2082
    %2277 = vmatprep.subr.mxu0 0.0
    %2278 = vmatpush1.msra.mxu0 %v2081
    %2279 = vmatprep.subr.mxu0 0.0
    %2280 = vmatpush1.msra.mxu0 %v2080
    %2281 = vmatprep.subr.mxu0 0.0
    %2282 = vmatpush1.msra.mxu0 %v2079
    %2283 = vmatprep.subr.mxu0 0.0
    %2284 = vmatpush1.msra.mxu0 %v2078
    %2285 = vmatprep.subr.mxu0 0.0
    %2286 = vmatpush1.msra.mxu0 %v2077
    %2287 = vmatprep.subr.mxu0 0.0
    %2288 = vmatpush1.msra.mxu0 %v2076
    %2289 = vmatprep.subr.mxu0 0.0
    %2290 = vmatpush1.msra.mxu0 %v2075
    %2291 = vmatprep.subr.mxu0 0.0
    %2292 = vmatpush2.msra.mxu0 0.0
    %2293 = vmatprep.subr.mxu0 0.0
    %2294 = vmatpush2.msra.mxu0 0.0
    %2295 = vmatprep.subr.mxu0 0.0
    %2296 = vmatpush2.msra.mxu0 0.0
    %2297 = vmatprep.subr.mxu0 0.0
    %2298 = vmatpush2.msra.mxu0 0.0
    %2299 = vmatprep.subr.mxu0 0.0
    %2300 = vmatpush2.msra.mxu0 0.0
    %2301 = vmatprep.subr.mxu0 0.0
    %2302 = vmatpush2.msra.mxu0 0.0
    %2303 = vmatprep.subr.mxu0 0.0
    %2304 = vmatpush2.msra.mxu0 0.0
    %2305 = vmatprep.subr.mxu0 0.0
    %2306 = vmatpush2.msra.mxu0 0.0
    %2307 = vmatprep.subr.mxu0 0.0
    %2308 = vmatpush2.msra.mxu0 0.0
    %2309 = vmatprep.subr.mxu0 0.0
    %2310 = vmatpush2.msra.mxu0 0.0
    %2311 = vmatprep.subr.mxu0 0.0
    %2312 = vmatpush2.msra.mxu0 0.0
    %2313 = vmatprep.subr.mxu0 0.0
    %2314 = vmatpush2.msra.mxu0 0.0
    %2315 = vmatprep.subr.mxu0 0.0
    %2316 = vmatpush2.msra.mxu0 0.0
    %2317 = vmatprep.subr.mxu0 0.0
    %2318 = vmatpush2.msra.mxu0 0.0
    %2319 = vmatprep.subr.mxu0 0.0
    %2320 = vmatpush2.msra.mxu0 0.0
    %2321 = vmatprep.subr.mxu0 0.0
    %2322 = vmatpush2.msra.mxu0 0.0
    %2323 = vmatprep.mubr.f32.mxu0 0.0
    %2324 = vmatmul.mubr.f32.gmra.mxu0 %v1576
    %v2325 = vpop.f32.mrf.mxu0
    %v2326 = vadd.f32 %v2181, %v2325
    %v2327 = vpop.f32.mrf.mxu0
    %2328 = vmatprep.mubr.f32.mxu0 0.0
    %2329 = vmatmul.mubr.f32.gmra.mxu0 %v1577
    %v2330 = vpop.f32.mrf.mxu0
    %v2331 = vadd.f32 %v2186, %v2330
    %v2332 = vpop.f32.mrf.mxu0
    %2333 = vmatprep.mubr.f32.mxu0 0.0
    %2334 = vmatmul.mubr.f32.gmra.mxu0 %v1578
    %v2335 = vpop.f32.mrf.mxu0
    %v2336 = vadd.f32 %v2191, %v2335
    %v2337 = vpop.f32.mrf.mxu0
    %2338 = vmatprep.mubr.f32.mxu0 0.0
    %2339 = vmatmul.mubr.f32.gmra.mxu0 %v1579
    %v2340 = vpop.f32.mrf.mxu0
    %v2341 = vadd.f32 %v2196, %v2340
    %v2342 = vpop.f32.mrf.mxu0
    %2343 = vmatprep.mubr.f32.mxu0 0.0
    %2344 = vmatmul.mubr.f32.gmra.mxu0 %v1580
    %v2345 = vpop.f32.mrf.mxu0
    %v2346 = vadd.f32 %v2201, %v2345
    %v2347 = vpop.f32.mrf.mxu0
    %2348 = vmatprep.mubr.f32.mxu0 0.0
    %2349 = vmatmul.mubr.f32.gmra.mxu0 %v1581
    %v2350 = vpop.f32.mrf.mxu0
    %v2351 = vadd.f32 %v2206, %v2350
    %v2352 = vpop.f32.mrf.mxu0
    %2353 = vmatprep.mubr.f32.mxu0 0.0
    %2354 = vmatmul.mubr.f32.gmra.mxu0 %v1582
    %v2355 = vpop.f32.mrf.mxu0
    %v2356 = vadd.f32 %v2211, %v2355
    %v2357 = vpop.f32.mrf.mxu0
    %2358 = vmatprep.mubr.f32.mxu0 0.0
    %2359 = vmatmul.mubr.f32.gmra.mxu0 %v1583
    %v2360 = vpop.f32.mrf.mxu0
    %v2361 = vadd.f32 %v2216, %v2360
    %v2362 = vpop.f32.mrf.mxu0
    %2363 = vmatprep.mubr.f32.mxu0 0.0
    %2364 = vmatmul.mubr.f32.gmra.mxu0 %v1584
    %v2365 = vpop.f32.mrf.mxu0
    %v2366 = vadd.f32 %v2221, %v2365
    %v2367 = vpop.f32.mrf.mxu0
    %2368 = vmatprep.mubr.f32.mxu0 0.0
    %2369 = vmatmul.mubr.f32.gmra.mxu0 %v1585
    %v2370 = vpop.f32.mrf.mxu0
    %v2371 = vadd.f32 %v2226, %v2370
    %v2372 = vpop.f32.mrf.mxu0
    %2373 = vmatprep.mubr.f32.mxu0 0.0
    %2374 = vmatmul.mubr.f32.gmra.mxu0 %v1586
    %v2375 = vpop.f32.mrf.mxu0
    %v2376 = vadd.f32 %v2231, %v2375
    %v2377 = vpop.f32.mrf.mxu0
    %2378 = vmatprep.mubr.f32.mxu0 0.0
    %2379 = vmatmul.mubr.f32.gmra.mxu0 %v1587
    %v2380 = vpop.f32.mrf.mxu0
    %v2381 = vadd.f32 %v2236, %v2380
    %v2382 = vpop.f32.mrf.mxu0
    %2383 = vmatprep.mubr.f32.mxu0 0.0
    %2384 = vmatmul.mubr.f32.gmra.mxu0 %v1588
    %v2385 = vpop.f32.mrf.mxu0
    %v2386 = vadd.f32 %v2241, %v2385
    %v2387 = vpop.f32.mrf.mxu0
    %2388 = vmatprep.mubr.f32.mxu0 0.0
    %2389 = vmatmul.mubr.f32.gmra.mxu0 %v1589
    %v2390 = vpop.f32.mrf.mxu0
    %v2391 = vadd.f32 %v2246, %v2390
    %v2392 = vpop.f32.mrf.mxu0
    %2393 = vmatprep.mubr.f32.mxu0 0.0
    %2394 = vmatmul.mubr.f32.gmra.mxu0 %v1590
    %v2395 = vpop.f32.mrf.mxu0
    %v2396 = vadd.f32 %v2251, %v2395
    %v2397 = vpop.f32.mrf.mxu0
    %2398 = vmatprep.mubr.f32.mxu0 0.0
    %2399 = vmatmul.mubr.f32.gmra.mxu0 %v1591
    %v2400 = vpop.f32.mrf.mxu0
    %v2401 = vadd.f32 %v2256, %v2400
    %v2402 = vpop.f32.mrf.mxu0
    %2403 = vdwg.mxu0
    %v2404 = vadd.f32 %v2326, %v2112
    %v2405 = vadd.f32 %v2331, %v2112
    %v2406 = vadd.f32 %v2336, %v2112
    %v2407 = vadd.f32 %v2341, %v2112
    %v2408 = vadd.f32 %v2346, %v2112
    %v2409 = vadd.f32 %v2351, %v2112
    %v2410 = vadd.f32 %v2356, %v2112
    %v2411 = vadd.f32 %v2361, %v2112
    %v2412 = vadd.f32 %v2366, %v2112
    %v2413 = vadd.f32 %v2371, %v2112
    %v2414 = vadd.f32 %v2376, %v2112
    %v2415 = vadd.f32 %v2381, %v2112
    %v2416 = vadd.f32 %v2386, %v2112
    %v2417 = vadd.f32 %v2391, %v2112
    %v2418 = vadd.f32 %v2396, %v2112
    %v2419 = vadd.f32 %v2401, %v2112
    %v2420 = vmax.f32 %v2404, 0.0
    %v2421 = vmax.f32 %v2405, 0.0
    %v2422 = vmax.f32 %v2406, 0.0
    %v2423 = vmax.f32 %v2407, 0.0
    %v2424 = vmax.f32 %v2408, 0.0
    %v2425 = vmax.f32 %v2409, 0.0
    %v2426 = vmax.f32 %v2410, 0.0
    %v2427 = vmax.f32 %v2411, 0.0
    %v2428 = vmax.f32 %v2412, 0.0
    %v2429 = vmax.f32 %v2413, 0.0
    %v2430 = vmax.f32 %v2414, 0.0
    %v2431 = vmax.f32 %v2415, 0.0
    %v2432 = vmax.f32 %v2416, 0.0
    %v2433 = vmax.f32 %v2417, 0.0
    %v2434 = vmax.f32 %v2418, 0.0
    %v2435 = vmax.f32 %v2419, 0.0
    %2436 = vmatprep.subr.mxu0 0.0
    %2437 = vmatpush1.msra.mxu0 %v2106
    %2438 = vmatprep.subr.mxu0 0.0
    %2439 = vmatpush1.msra.mxu0 %v2105
    %2440 = vmatprep.subr.mxu0 0.0
    %2441 = vmatpush1.msra.mxu0 %v2104
    %2442 = vmatprep.subr.mxu0 0.0
    %2443 = vmatpush1.msra.mxu0 %v2103
    %2444 = vmatprep.subr.mxu0 0.0
    %2445 = vmatpush1.msra.mxu0 %v2102
    %2446 = vmatprep.subr.mxu0 0.0
    %2447 = vmatpush1.msra.mxu0 %v2101
    %2448 = vmatprep.subr.mxu0 0.0
    %2449 = vmatpush1.msra.mxu0 %v2100
    %2450 = vmatprep.subr.mxu0 0.0
    %2451 = vmatpush1.msra.mxu0 %v2099
    %2452 = vmatprep.subr.mxu0 0.0
    %2453 = vmatpush1.msra.mxu0 %v2098
    %2454 = vmatprep.subr.mxu0 0.0
    %2455 = vmatpush1.msra.mxu0 %v2097
    %2456 = vmatprep.subr.mxu0 0.0
    %2457 = vmatpush1.msra.mxu0 %v2096
    %2458 = vmatprep.subr.mxu0 0.0
    %2459 = vmatpush1.msra.mxu0 %v2095
    %2460 = vmatprep.subr.mxu0 0.0
    %2461 = vmatpush1.msra.mxu0 %v2094
    %2462 = vmatprep.subr.mxu0 0.0
    %2463 = vmatpush1.msra.mxu0 %v2093
    %2464 = vmatprep.subr.mxu0 0.0
    %2465 = vmatpush1.msra.mxu0 %v2092
    %2466 = vmatprep.subr.mxu0 0.0
    %2467 = vmatpush1.msra.mxu0 %v2091
    %2468 = vmatprep.subr.mxu0 0.0
    %2469 = vmatpush2.msra.mxu0 0.0
    %2470 = vmatprep.subr.mxu0 0.0
    %2471 = vmatpush2.msra.mxu0 0.0
    %2472 = vmatprep.subr.mxu0 0.0
    %2473 = vmatpush2.msra.mxu0 0.0
    %2474 = vmatprep.subr.mxu0 0.0
    %2475 = vmatpush2.msra.mxu0 0.0
    %2476 = vmatprep.subr.mxu0 0.0
    %2477 = vmatpush2.msra.mxu0 0.0
    %2478 = vmatprep.subr.mxu0 0.0
    %2479 = vmatpush2.msra.mxu0 0.0
    %2480 = vmatprep.subr.mxu0 0.0
    %2481 = vmatpush2.msra.mxu0 0.0
    %2482 = vmatprep.subr.mxu0 0.0
    %2483 = vmatpush2.msra.mxu0 0.0
    %2484 = vmatprep.subr.mxu0 0.0
    %2485 = vmatpush2.msra.mxu0 0.0
    %2486 = vmatprep.subr.mxu0 0.0
    %2487 = vmatpush2.msra.mxu0 0.0
    %2488 = vmatprep.subr.mxu0 0.0
    %2489 = vmatpush2.msra.mxu0 0.0
    %2490 = vmatprep.subr.mxu0 0.0
    %2491 = vmatpush2.msra.mxu0 0.0
    %2492 = vmatprep.subr.mxu0 0.0
    %2493 = vmatpush2.msra.mxu0 0.0
    %2494 = vmatprep.subr.mxu0 0.0
    %2495 = vmatpush2.msra.mxu0 0.0
    %2496 = vmatprep.subr.mxu0 0.0
    %2497 = vmatpush2.msra.mxu0 0.0
    %2498 = vmatprep.subr.mxu0 0.0
    %2499 = vmatpush2.msra.mxu0 0.0
    %2500 = vmatprep.mubr.f32.mxu0 0.0
    %2501 = vmatmul.mubr.f32.gmra.mxu0 %v1983
    %v2502 = vpop.f32.mrf.mxu0
    %v2503 = vadd.f32 0.0, %v2502
    %v2504 = vpop.f32.mrf.mxu0
    %2505 = vmatprep.mubr.f32.mxu0 0.0
    %2506 = vmatmul.mubr.f32.gmra.mxu0 %v1989
    %v2507 = vpop.f32.mrf.mxu0
    %v2508 = vadd.f32 0.0, %v2507
    %v2509 = vpop.f32.mrf.mxu0
    %2510 = vmatprep.mubr.f32.mxu0 0.0
    %2511 = vmatmul.mubr.f32.gmra.mxu0 %v1995
    %v2512 = vpop.f32.mrf.mxu0
    %v2513 = vadd.f32 0.0, %v2512
    %v2514 = vpop.f32.mrf.mxu0
    %2515 = vmatprep.mubr.f32.mxu0 0.0
    %2516 = vmatmul.mubr.f32.gmra.mxu0 %v2001
    %v2517 = vpop.f32.mrf.mxu0
    %v2518 = vadd.f32 0.0, %v2517
    %v2519 = vpop.f32.mrf.mxu0
    %2520 = vmatprep.mubr.f32.mxu0 0.0
    %2521 = vmatmul.mubr.f32.gmra.mxu0 %v2007
    %v2522 = vpop.f32.mrf.mxu0
    %v2523 = vadd.f32 0.0, %v2522
    %v2524 = vpop.f32.mrf.mxu0
    %2525 = vmatprep.mubr.f32.mxu0 0.0
    %2526 = vmatmul.mubr.f32.gmra.mxu0 %v2013
    %v2527 = vpop.f32.mrf.mxu0
    %v2528 = vadd.f32 0.0, %v2527
    %v2529 = vpop.f32.mrf.mxu0
    %2530 = vmatprep.mubr.f32.mxu0 0.0
    %2531 = vmatmul.mubr.f32.gmra.mxu0 %v2019
    %v2532 = vpop.f32.mrf.mxu0
    %v2533 = vadd.f32 0.0, %v2532
    %v2534 = vpop.f32.mrf.mxu0
    %2535 = vmatprep.mubr.f32.mxu0 0.0
    %2536 = vmatmul.mubr.f32.gmra.mxu0 %v2025
    %v2537 = vpop.f32.mrf.mxu0
    %v2538 = vadd.f32 0.0, %v2537
    %v2539 = vpop.f32.mrf.mxu0
    %2540 = vmatprep.mubr.f32.mxu0 0.0
    %2541 = vmatmul.mubr.f32.gmra.mxu0 %v2031
    %v2542 = vpop.f32.mrf.mxu0
    %v2543 = vadd.f32 0.0, %v2542
    %v2544 = vpop.f32.mrf.mxu0
    %2545 = vmatprep.mubr.f32.mxu0 0.0
    %2546 = vmatmul.mubr.f32.gmra.mxu0 %v2037
    %v2547 = vpop.f32.mrf.mxu0
    %v2548 = vadd.f32 0.0, %v2547
    %v2549 = vpop.f32.mrf.mxu0
    %2550 = vmatprep.mubr.f32.mxu0 0.0
    %2551 = vmatmul.mubr.f32.gmra.mxu0 %v2043
    %v2552 = vpop.f32.mrf.mxu0
    %v2553 = vadd.f32 0.0, %v2552
    %v2554 = vpop.f32.mrf.mxu0
    %2555 = vmatprep.mubr.f32.mxu0 0.0
    %2556 = vmatmul.mubr.f32.gmra.mxu0 %v2049
    %v2557 = vpop.f32.mrf.mxu0
    %v2558 = vadd.f32 0.0, %v2557
    %v2559 = vpop.f32.mrf.mxu0
    %2560 = vmatprep.mubr.f32.mxu0 0.0
    %2561 = vmatmul.mubr.f32.gmra.mxu0 %v2055
    %v2562 = vpop.f32.mrf.mxu0
    %v2563 = vadd.f32 0.0, %v2562
    %v2564 = vpop.f32.mrf.mxu0
    %2565 = vmatprep.mubr.f32.mxu0 0.0
    %2566 = vmatmul.mubr.f32.gmra.mxu0 %v2061
    %v2567 = vpop.f32.mrf.mxu0
    %v2568 = vadd.f32 0.0, %v2567
    %v2569 = vpop.f32.mrf.mxu0
    %2570 = vmatprep.mubr.f32.mxu0 0.0
    %2571 = vmatmul.mubr.f32.gmra.mxu0 %v2067
    %v2572 = vpop.f32.mrf.mxu0
    %v2573 = vadd.f32 0.0, %v2572
    %v2574 = vpop.f32.mrf.mxu0
    %2575 = vmatprep.mubr.f32.mxu0 0.0
    %2576 = vmatmul.mubr.f32.gmra.mxu0 %v2073
    %v2577 = vpop.f32.mrf.mxu0
    %v2578 = vadd.f32 0.0, %v2577
    %v2579 = vpop.f32.mrf.mxu0
    %2580 = vdwg.mxu0
    %2581 = vmatprep.subr.mxu0 0.0
    %2582 = vmatpush1.msra.mxu0 %v2090
    %2583 = vmatprep.subr.mxu0 0.0
    %2584 = vmatpush1.msra.mxu0 %v2089
    %2585 = vmatprep.subr.mxu0 0.0
    %2586 = vmatpush1.msra.mxu0 %v2088
    %2587 = vmatprep.subr.mxu0 0.0
    %2588 = vmatpush1.msra.mxu0 %v2087
    %2589 = vmatprep.subr.mxu0 0.0
    %2590 = vmatpush1.msra.mxu0 %v2086
    %2591 = vmatprep.subr.mxu0 0.0
    %2592 = vmatpush1.msra.mxu0 %v2085
    %2593 = vmatprep.subr.mxu0 0.0
    %2594 = vmatpush1.msra.mxu0 %v2084
    %2595 = vmatprep.subr.mxu0 0.0
    %2596 = vmatpush1.msra.mxu0 %v2083
    %2597 = vmatprep.subr.mxu0 0.0
    %2598 = vmatpush1.msra.mxu0 %v2082
    %2599 = vmatprep.subr.mxu0 0.0
    %2600 = vmatpush1.msra.mxu0 %v2081
    %2601 = vmatprep.subr.mxu0 0.0
    %2602 = vmatpush1.msra.mxu0 %v2080
    %2603 = vmatprep.subr.mxu0 0.0
    %2604 = vmatpush1.msra.mxu0 %v2079
    %2605 = vmatprep.subr.mxu0 0.0
    %2606 = vmatpush1.msra.mxu0 %v2078
    %2607 = vmatprep.subr.mxu0 0.0
    %2608 = vmatpush1.msra.mxu0 %v2077
    %2609 = vmatprep.subr.mxu0 0.0
    %2610 = vmatpush1.msra.mxu0 %v2076
    %2611 = vmatprep.subr.mxu0 0.0
    %2612 = vmatpush1.msra.mxu0 %v2075
    %2613 = vmatprep.subr.mxu0 0.0
    %2614 = vmatpush2.msra.mxu0 0.0
    %2615 = vmatprep.subr.mxu0 0.0
    %2616 = vmatpush2.msra.mxu0 0.0
    %2617 = vmatprep.subr.mxu0 0.0
    %2618 = vmatpush2.msra.mxu0 0.0
    %2619 = vmatprep.subr.mxu0 0.0
    %2620 = vmatpush2.msra.mxu0 0.0
    %2621 = vmatprep.subr.mxu0 0.0
    %2622 = vmatpush2.msra.mxu0 0.0
    %2623 = vmatprep.subr.mxu0 0.0
    %2624 = vmatpush2.msra.mxu0 0.0
    %2625 = vmatprep.subr.mxu0 0.0
    %2626 = vmatpush2.msra.mxu0 0.0
    %2627 = vmatprep.subr.mxu0 0.0
    %2628 = vmatpush2.msra.mxu0 0.0
    %2629 = vmatprep.subr.mxu0 0.0
    %2630 = vmatpush2.msra.mxu0 0.0
    %2631 = vmatprep.subr.mxu0 0.0
    %2632 = vmatpush2.msra.mxu0 0.0
    %2633 = vmatprep.subr.mxu0 0.0
    %2634 = vmatpush2.msra.mxu0 0.0
    %2635 = vmatprep.subr.mxu0 0.0
    %2636 = vmatpush2.msra.mxu0 0.0
    %2637 = vmatprep.subr.mxu0 0.0
    %2638 = vmatpush2.msra.mxu0 0.0
    %2639 = vmatprep.subr.mxu0 0.0
    %2640 = vmatpush2.msra.mxu0 0.0
    %2641 = vmatprep.subr.mxu0 0.0
    %2642 = vmatpush2.msra.mxu0 0.0
    %2643 = vmatprep.subr.mxu0 0.0
    %2644 = vmatpush2.msra.mxu0 0.0
    %2645 = vmatprep.mubr.f32.mxu0 0.0
    %2646 = vmatmul.mubr.f32.gmra.mxu0 %v1898
    %v2647 = vpop.f32.mrf.mxu0
    %v2648 = vadd.f32 %v2503, %v2647
    %v2649 = vpop.f32.mrf.mxu0
    %2650 = vmatprep.mubr.f32.mxu0 0.0
    %2651 = vmatmul.mubr.f32.gmra.mxu0 %v1899
    %v2652 = vpop.f32.mrf.mxu0
    %v2653 = vadd.f32 %v2508, %v2652
    %v2654 = vpop.f32.mrf.mxu0
    %2655 = vmatprep.mubr.f32.mxu0 0.0
    %2656 = vmatmul.mubr.f32.gmra.mxu0 %v1900
    %v2657 = vpop.f32.mrf.mxu0
    %v2658 = vadd.f32 %v2513, %v2657
    %v2659 = vpop.f32.mrf.mxu0
    %2660 = vmatprep.mubr.f32.mxu0 0.0
    %2661 = vmatmul.mubr.f32.gmra.mxu0 %v1901
    %v2662 = vpop.f32.mrf.mxu0
    %v2663 = vadd.f32 %v2518, %v2662
    %v2664 = vpop.f32.mrf.mxu0
    %2665 = vmatprep.mubr.f32.mxu0 0.0
    %2666 = vmatmul.mubr.f32.gmra.mxu0 %v1902
    %v2667 = vpop.f32.mrf.mxu0
    %v2668 = vadd.f32 %v2523, %v2667
    %v2669 = vpop.f32.mrf.mxu0
    %2670 = vmatprep.mubr.f32.mxu0 0.0
    %2671 = vmatmul.mubr.f32.gmra.mxu0 %v1903
    %v2672 = vpop.f32.mrf.mxu0
    %v2673 = vadd.f32 %v2528, %v2672
    %v2674 = vpop.f32.mrf.mxu0
    %2675 = vmatprep.mubr.f32.mxu0 0.0
    %2676 = vmatmul.mubr.f32.gmra.mxu0 %v1904
    %v2677 = vpop.f32.mrf.mxu0
    %v2678 = vadd.f32 %v2533, %v2677
    %v2679 = vpop.f32.mrf.mxu0
    %2680 = vmatprep.mubr.f32.mxu0 0.0
    %2681 = vmatmul.mubr.f32.gmra.mxu0 %v1905
    %v2682 = vpop.f32.mrf.mxu0
    %v2683 = vadd.f32 %v2538, %v2682
    %v2684 = vpop.f32.mrf.mxu0
    %2685 = vmatprep.mubr.f32.mxu0 0.0
    %2686 = vmatmul.mubr.f32.gmra.mxu0 %v1906
    %v2687 = vpop.f32.mrf.mxu0
    %v2688 = vadd.f32 %v2543, %v2687
    %v2689 = vpop.f32.mrf.mxu0
    %2690 = vmatprep.mubr.f32.mxu0 0.0
    %2691 = vmatmul.mubr.f32.gmra.mxu0 %v1907
    %v2692 = vpop.f32.mrf.mxu0
    %v2693 = vadd.f32 %v2548, %v2692
    %v2694 = vpop.f32.mrf.mxu0
    %2695 = vmatprep.mubr.f32.mxu0 0.0
    %2696 = vmatmul.mubr.f32.gmra.mxu0 %v1908
    %v2697 = vpop.f32.mrf.mxu0
    %v2698 = vadd.f32 %v2553, %v2697
    %v2699 = vpop.f32.mrf.mxu0
    %2700 = vmatprep.mubr.f32.mxu0 0.0
    %2701 = vmatmul.mubr.f32.gmra.mxu0 %v1909
    %v2702 = vpop.f32.mrf.mxu0
    %v2703 = vadd.f32 %v2558, %v2702
    %v2704 = vpop.f32.mrf.mxu0
    %2705 = vmatprep.mubr.f32.mxu0 0.0
    %2706 = vmatmul.mubr.f32.gmra.mxu0 %v1910
    %v2707 = vpop.f32.mrf.mxu0
    %v2708 = vadd.f32 %v2563, %v2707
    %v2709 = vpop.f32.mrf.mxu0
    %2710 = vmatprep.mubr.f32.mxu0 0.0
    %2711 = vmatmul.mubr.f32.gmra.mxu0 %v1911
    %v2712 = vpop.f32.mrf.mxu0
    %v2713 = vadd.f32 %v2568, %v2712
    %v2714 = vpop.f32.mrf.mxu0
    %2715 = vmatprep.mubr.f32.mxu0 0.0
    %2716 = vmatmul.mubr.f32.gmra.mxu0 %v1912
    %v2717 = vpop.f32.mrf.mxu0
    %v2718 = vadd.f32 %v2573, %v2717
    %v2719 = vpop.f32.mrf.mxu0
    %2720 = vmatprep.mubr.f32.mxu0 0.0
    %2721 = vmatmul.mubr.f32.gmra.mxu0 %v1913
    %v2722 = vpop.f32.mrf.mxu0
    %v2723 = vadd.f32 %v2578, %v2722
    %v2724 = vpop.f32.mrf.mxu0
    %2725 = vdwg.mxu0
    %v2726 = vadd.f32 %v2648, %v2112
    %v2727 = vadd.f32 %v2653, %v2112
    %v2728 = vadd.f32 %v2658, %v2112
    %v2729 = vadd.f32 %v2663, %v2112
    %v2730 = vadd.f32 %v2668, %v2112
    %v2731 = vadd.f32 %v2673, %v2112
    %v2732 = vadd.f32 %v2678, %v2112
    %v2733 = vadd.f32 %v2683, %v2112
    %v2734 = vadd.f32 %v2688, %v2112
    %v2735 = vadd.f32 %v2693, %v2112
    %v2736 = vadd.f32 %v2698, %v2112
    %v2737 = vadd.f32 %v2703, %v2112
    %v2738 = vadd.f32 %v2708, %v2112
    %v2739 = vadd.f32 %v2713, %v2112
    %v2740 = vadd.f32 %v2718, %v2112
    %v2741 = vadd.f32 %v2723, %v2112
    %v2742 = vmax.f32 %v2726, 0.0
    %v2743 = vmax.f32 %v2727, 0.0
    %v2744 = vmax.f32 %v2728, 0.0
    %v2745 = vmax.f32 %v2729, 0.0
    %v2746 = vmax.f32 %v2730, 0.0
    %v2747 = vmax.f32 %v2731, 0.0
    %v2748 = vmax.f32 %v2732, 0.0
    %v2749 = vmax.f32 %v2733, 0.0
    %v2750 = vmax.f32 %v2734, 0.0
    %v2751 = vmax.f32 %v2735, 0.0
    %v2752 = vmax.f32 %v2736, 0.0
    %v2753 = vmax.f32 %v2737, 0.0
    %v2754 = vmax.f32 %v2738, 0.0
    %v2755 = vmax.f32 %v2739, 0.0
    %v2756 = vmax.f32 %v2740, 0.0
    %v2757 = vmax.f32 %v2741, 0.0
    %v2758 = vld [vmem:[#allocation12] sm:$0xff]
    %v2759 = vld [vmem:[#allocation12 + $0x8] sm:$0xff]
    %v2760 = vld [vmem:[#allocation12 + $0x10] sm:$0xff]
    %v2761 = vld [vmem:[#allocation12 + $0x18] sm:$0xff]
    %v2762 = vld [vmem:[#allocation12 + $0x20] sm:$0xff]
    %v2763 = vld [vmem:[#allocation12 + $0x28] sm:$0xff]
    %v2764 = vld [vmem:[#allocation12 + $0x30] sm:$0xff]
    %v2765 = vld [vmem:[#allocation12 + $0x38] sm:$0xff]
    %v2766 = vld [vmem:[#allocation12 + $0x40] sm:$0xff]
    %v2767 = vld [vmem:[#allocation12 + $0x48] sm:$0xff]
    %v2768 = vld [vmem:[#allocation12 + $0x50] sm:$0xff]
    %v2769 = vld [vmem:[#allocation12 + $0x58] sm:$0xff]
    %v2770 = vld [vmem:[#allocation12 + $0x60] sm:$0xff]
    %v2771 = vld [vmem:[#allocation12 + $0x68] sm:$0xff]
    %v2772 = vld [vmem:[#allocation12 + $0x70] sm:$0xff]
    %v2773 = vld [vmem:[#allocation12 + $0x78] sm:$0xff]
    %v2774 = vld [vmem:[#allocation13] sm:$0xff]
    %v2775 = vld [vmem:[#allocation13 + $0x8] sm:$0xff]
    %v2776 = vld [vmem:[#allocation13 + $0x10] sm:$0xff]
    %v2777 = vld [vmem:[#allocation13 + $0x18] sm:$0xff]
    %v2778 = vld [vmem:[#allocation13 + $0x20] sm:$0xff]
    %v2779 = vld [vmem:[#allocation13 + $0x28] sm:$0xff]
    %v2780 = vld [vmem:[#allocation13 + $0x30] sm:$0xff]
    %v2781 = vld [vmem:[#allocation13 + $0x38] sm:$0xff]
    %v2782 = vld [vmem:[#allocation13 + $0x40] sm:$0xff]
    %v2783 = vld [vmem:[#allocation13 + $0x48] sm:$0xff]
    %v2784 = vld [vmem:[#allocation13 + $0x50] sm:$0xff]
    %v2785 = vld [vmem:[#allocation13 + $0x58] sm:$0xff]
    %v2786 = vld [vmem:[#allocation13 + $0x60] sm:$0xff]
    %v2787 = vld [vmem:[#allocation13 + $0x68] sm:$0xff]
    %v2788 = vld [vmem:[#allocation13 + $0x70] sm:$0xff]
    %v2789 = vld [vmem:[#allocation13 + $0x78] sm:$0xff]
    %v2790 = vld [vmem:[#allocation15] sm:$0xff]
    %v2791 = vld [vmem:[#allocation15 + $0x8] sm:$0xff]
    %v2792 = vld [vmem:[#allocation15 + $0x10] sm:$0xff]
    %v2793 = vld [vmem:[#allocation15 + $0x18] sm:$0xff]
    %v2794 = vld [vmem:[#allocation15 + $0x20] sm:$0xff]
    %v2795 = vld [vmem:[#allocation15 + $0x28] sm:$0xff]
    %v2796 = vld [vmem:[#allocation15 + $0x30] sm:$0xff]
    %v2797 = vld [vmem:[#allocation15 + $0x38] sm:$0xff]
    %v2798 = vld [vmem:[#allocation15 + $0x40] sm:$0xff]
    %v2799 = vld [vmem:[#allocation15 + $0x48] sm:$0xff]
    %v2800 = vld [vmem:[#allocation15 + $0x50] sm:$0xff]
    %v2801 = vld [vmem:[#allocation15 + $0x58] sm:$0xff]
    %v2802 = vld [vmem:[#allocation15 + $0x60] sm:$0xff]
    %v2803 = vld [vmem:[#allocation15 + $0x68] sm:$0xff]
    %v2804 = vld [vmem:[#allocation15 + $0x70] sm:$0xff]
    %v2805 = vld [vmem:[#allocation15 + $0x78] sm:$0xff]
    %v2806 = vld [vmem:[%s12] sm:$0xff]
    %v2807 = vld [vmem:[%s12 + $0x8] sm:$0xff]
    %v2808 = vld [vmem:[%s12 + $0x10] sm:$0xff]
    %v2809 = vld [vmem:[%s12 + $0x18] sm:$0xff]
    %v2810 = vld [vmem:[%s12 + $0x20] sm:$0xff]
    %v2811 = vld [vmem:[%s12 + $0x28] sm:$0xff]
    %v2812 = vld [vmem:[%s12 + $0x30] sm:$0xff]
    %v2813 = vld [vmem:[%s12 + $0x38] sm:$0xff]
    %v2814 = vld [vmem:[%s12 + $0x40] sm:$0xff]
    %v2815 = vld [vmem:[%s12 + $0x48] sm:$0xff]
    %v2816 = vld [vmem:[%s12 + $0x50] sm:$0xff]
    %v2817 = vld [vmem:[%s12 + $0x58] sm:$0xff]
    %v2818 = vld [vmem:[%s12 + $0x60] sm:$0xff]
    %v2819 = vld [vmem:[%s12 + $0x68] sm:$0xff]
    %v2820 = vld [vmem:[%s12 + $0x70] sm:$0xff]
    %v2821 = vld [vmem:[%s12 + $0x78] sm:$0xff]
    %v2822 = vld [vmem:[%s14] sm:$0xff]
    %v2823 = vld [vmem:[%s14 + $0x8] sm:$0xff]
    %v2824 = vld [vmem:[%s14 + $0x10] sm:$0xff]
    %v2825 = vld [vmem:[%s14 + $0x18] sm:$0xff]
    %v2826 = vld [vmem:[%s14 + $0x20] sm:$0xff]
    %v2827 = vld [vmem:[%s14 + $0x28] sm:$0xff]
    %v2828 = vld [vmem:[%s14 + $0x30] sm:$0xff]
    %v2829 = vld [vmem:[%s14 + $0x38] sm:$0xff]
    %v2830 = vld [vmem:[%s14 + $0x40] sm:$0xff]
    %v2831 = vld [vmem:[%s14 + $0x48] sm:$0xff]
    %v2832 = vld [vmem:[%s14 + $0x50] sm:$0xff]
    %v2833 = vld [vmem:[%s14 + $0x58] sm:$0xff]
    %v2834 = vld [vmem:[%s14 + $0x60] sm:$0xff]
    %v2835 = vld [vmem:[%s14 + $0x68] sm:$0xff]
    %v2836 = vld [vmem:[%s14 + $0x70] sm:$0xff]
    %v2837 = vld [vmem:[%s14 + $0x78] sm:$0xff]
    %v2838 = vld [vmem:[%s16] sm:$0xff]
    %v2839 = vld [vmem:[%s16 + $0x8] sm:$0xff]
    %v2840 = vld [vmem:[%s16 + $0x10] sm:$0xff]
    %v2841 = vld [vmem:[%s16 + $0x18] sm:$0xff]
    %v2842 = vld [vmem:[%s16 + $0x20] sm:$0xff]
    %v2843 = vld [vmem:[%s16 + $0x28] sm:$0xff]
    %v2844 = vld [vmem:[%s16 + $0x30] sm:$0xff]
    %v2845 = vld [vmem:[%s16 + $0x38] sm:$0xff]
    %v2846 = vld [vmem:[%s16 + $0x40] sm:$0xff]
    %v2847 = vld [vmem:[%s16 + $0x48] sm:$0xff]
    %v2848 = vld [vmem:[%s16 + $0x50] sm:$0xff]
    %v2849 = vld [vmem:[%s16 + $0x58] sm:$0xff]
    %v2850 = vld [vmem:[%s16 + $0x60] sm:$0xff]
    %v2851 = vld [vmem:[%s16 + $0x68] sm:$0xff]
    %v2852 = vld [vmem:[%s16 + $0x70] sm:$0xff]
    %v2853 = vld [vmem:[%s16 + $0x78] sm:$0xff]
    %2854 = vmax.xlane.f32.xlu0 %v2420
    %v2855 = vpop.xlane.xlu0 %2854
    %2856 = vmax.xlane.f32.xlu0 %v2421
    %v2857 = vpop.xlane.xlu0 %2856
    %2858 = vmax.xlane.f32.xlu0 %v2422
    %v2859 = vpop.xlane.xlu0 %2858
    %2860 = vmax.xlane.f32.xlu0 %v2423
    %v2861 = vpop.xlane.xlu0 %2860
    %2862 = vmax.xlane.f32.xlu0 %v2424
    %v2863 = vpop.xlane.xlu0 %2862
    %2864 = vmax.xlane.f32.xlu0 %v2425
    %v2865 = vpop.xlane.xlu0 %2864
    %2866 = vmax.xlane.f32.xlu0 %v2426
    %v2867 = vpop.xlane.xlu0 %2866
    %2868 = vmax.xlane.f32.xlu0 %v2427
    %v2869 = vpop.xlane.xlu0 %2868
    %2870 = vmax.xlane.f32.xlu0 %v2428
    %v2871 = vpop.xlane.xlu0 %2870
    %2872 = vmax.xlane.f32.xlu0 %v2429
    %v2873 = vpop.xlane.xlu0 %2872
    %2874 = vmax.xlane.f32.xlu0 %v2430
    %v2875 = vpop.xlane.xlu0 %2874
    %2876 = vmax.xlane.f32.xlu0 %v2431
    %v2877 = vpop.xlane.xlu0 %2876
    %2878 = vmax.xlane.f32.xlu0 %v2432
    %v2879 = vpop.xlane.xlu0 %2878
    %2880 = vmax.xlane.f32.xlu0 %v2433
    %v2881 = vpop.xlane.xlu0 %2880
    %2882 = vmax.xlane.f32.xlu0 %v2434
    %v2883 = vpop.xlane.xlu0 %2882
    %2884 = vmax.xlane.f32.xlu0 %v2435
    %v2885 = vpop.xlane.xlu0 %2884
    %2886 = vmatprep.subr.mxu0 0.0
    %2887 = vmatpush1.msra.mxu0 %v2885
    %2888 = vmatprep.subr.mxu0 0.0
    %2889 = vmatpush1.msra.mxu0 %v2883
    %2890 = vmatprep.subr.mxu0 0.0
    %2891 = vmatpush1.msra.mxu0 %v2881
    %2892 = vmatprep.subr.mxu0 0.0
    %2893 = vmatpush1.msra.mxu0 %v2879
    %2894 = vmatprep.subr.mxu0 0.0
    %2895 = vmatpush1.msra.mxu0 %v2877
    %2896 = vmatprep.subr.mxu0 0.0
    %2897 = vmatpush1.msra.mxu0 %v2875
    %2898 = vmatprep.subr.mxu0 0.0
    %2899 = vmatpush1.msra.mxu0 %v2873
    %2900 = vmatprep.subr.mxu0 0.0
    %2901 = vmatpush1.msra.mxu0 %v2871
    %2902 = vmatprep.subr.mxu0 0.0
    %2903 = vmatpush1.msra.mxu0 %v2869
    %2904 = vmatprep.subr.mxu0 0.0
    %2905 = vmatpush1.msra.mxu0 %v2867
    %2906 = vmatprep.subr.mxu0 0.0
    %2907 = vmatpush1.msra.mxu0 %v2865
    %2908 = vmatprep.subr.mxu0 0.0
    %2909 = vmatpush1.msra.mxu0 %v2863
    %2910 = vmatprep.subr.mxu0 0.0
    %2911 = vmatpush1.msra.mxu0 %v2861
    %2912 = vmatprep.subr.mxu0 0.0
    %2913 = vmatpush1.msra.mxu0 %v2859
    %2914 = vmatprep.subr.mxu0 0.0
    %2915 = vmatpush1.msra.mxu0 %v2857
    %2916 = vmatprep.subr.mxu0 0.0
    %2917 = vmatpush1.msra.mxu0 %v2855
    %2918 = vmatprep.subr.mxu0 0.0
    %2919 = vmatpush2.msra.mxu0 0.0
    %2920 = vmatprep.subr.mxu0 0.0
    %2921 = vmatpush2.msra.mxu0 0.0
    %2922 = vmatprep.subr.mxu0 0.0
    %2923 = vmatpush2.msra.mxu0 0.0
    %2924 = vmatprep.subr.mxu0 0.0
    %2925 = vmatpush2.msra.mxu0 0.0
    %2926 = vmatprep.subr.mxu0 0.0
    %2927 = vmatpush2.msra.mxu0 0.0
    %2928 = vmatprep.subr.mxu0 0.0
    %2929 = vmatpush2.msra.mxu0 0.0
    %2930 = vmatprep.subr.mxu0 0.0
    %2931 = vmatpush2.msra.mxu0 0.0
    %2932 = vmatprep.subr.mxu0 0.0
    %2933 = vmatpush2.msra.mxu0 0.0
    %2934 = vmatprep.subr.mxu0 0.0
    %2935 = vmatpush2.msra.mxu0 0.0
    %2936 = vmatprep.subr.mxu0 0.0
    %2937 = vmatpush2.msra.mxu0 0.0
    %2938 = vmatprep.subr.mxu0 0.0
    %2939 = vmatpush2.msra.mxu0 0.0
    %2940 = vmatprep.subr.mxu0 0.0
    %2941 = vmatpush2.msra.mxu0 0.0
    %2942 = vmatprep.subr.mxu0 0.0
    %2943 = vmatpush2.msra.mxu0 0.0
    %2944 = vmatprep.subr.mxu0 0.0
    %2945 = vmatpush2.msra.mxu0 0.0
    %2946 = vmatprep.subr.mxu0 0.0
    %2947 = vmatpush2.msra.mxu0 0.0
    %2948 = vmatprep.subr.mxu0 0.0
    %2949 = vmatpush2.msra.mxu0 0.0
    %2950 = vmatprep.mubr.f32.mxu0 0.0
    %2951 = vmatmul.mubr.f32.gmra.mxu0 %v2758
    %v2952 = vpop.f32.mrf.mxu0
    %v2953 = vadd.f32 %v2806, %v2952
    %v2954 = vpop.f32.mrf.mxu0
    %2955 = vmatprep.mubr.f32.mxu0 0.0
    %2956 = vmatmul.mubr.f32.gmra.mxu0 %v2759
    %v2957 = vpop.f32.mrf.mxu0
    %v2958 = vadd.f32 %v2807, %v2957
    %v2959 = vpop.f32.mrf.mxu0
    %2960 = vmatprep.mubr.f32.mxu0 0.0
    %2961 = vmatmul.mubr.f32.gmra.mxu0 %v2760
    %v2962 = vpop.f32.mrf.mxu0
    %v2963 = vadd.f32 %v2808, %v2962
    %v2964 = vpop.f32.mrf.mxu0
    %2965 = vmatprep.mubr.f32.mxu0 0.0
    %2966 = vmatmul.mubr.f32.gmra.mxu0 %v2761
    %v2967 = vpop.f32.mrf.mxu0
    %v2968 = vadd.f32 %v2809, %v2967
    %v2969 = vpop.f32.mrf.mxu0
    %2970 = vmatprep.mubr.f32.mxu0 0.0
    %2971 = vmatmul.mubr.f32.gmra.mxu0 %v2762
    %v2972 = vpop.f32.mrf.mxu0
    %v2973 = vadd.f32 %v2810, %v2972
    %v2974 = vpop.f32.mrf.mxu0
    %2975 = vmatprep.mubr.f32.mxu0 0.0
    %2976 = vmatmul.mubr.f32.gmra.mxu0 %v2763
    %v2977 = vpop.f32.mrf.mxu0
    %v2978 = vadd.f32 %v2811, %v2977
    %v2979 = vpop.f32.mrf.mxu0
    %2980 = vmatprep.mubr.f32.mxu0 0.0
    %2981 = vmatmul.mubr.f32.gmra.mxu0 %v2764
    %v2982 = vpop.f32.mrf.mxu0
    %v2983 = vadd.f32 %v2812, %v2982
    %v2984 = vpop.f32.mrf.mxu0
    %2985 = vmatprep.mubr.f32.mxu0 0.0
    %2986 = vmatmul.mubr.f32.gmra.mxu0 %v2765
    %v2987 = vpop.f32.mrf.mxu0
    %v2988 = vadd.f32 %v2813, %v2987
    %v2989 = vpop.f32.mrf.mxu0
    %2990 = vmatprep.mubr.f32.mxu0 0.0
    %2991 = vmatmul.mubr.f32.gmra.mxu0 %v2766
    %v2992 = vpop.f32.mrf.mxu0
    %v2993 = vadd.f32 %v2814, %v2992
    %v2994 = vpop.f32.mrf.mxu0
    %2995 = vmatprep.mubr.f32.mxu0 0.0
    %2996 = vmatmul.mubr.f32.gmra.mxu0 %v2767
    %v2997 = vpop.f32.mrf.mxu0
    %v2998 = vadd.f32 %v2815, %v2997
    %v2999 = vpop.f32.mrf.mxu0
    %3000 = vmatprep.mubr.f32.mxu0 0.0
    %3001 = vmatmul.mubr.f32.gmra.mxu0 %v2768
    %v3002 = vpop.f32.mrf.mxu0
    %v3003 = vadd.f32 %v2816, %v3002
    %v3004 = vpop.f32.mrf.mxu0
    %3005 = vmatprep.mubr.f32.mxu0 0.0
    %3006 = vmatmul.mubr.f32.gmra.mxu0 %v2769
    %v3007 = vpop.f32.mrf.mxu0
    %v3008 = vadd.f32 %v2817, %v3007
    %v3009 = vpop.f32.mrf.mxu0
    %3010 = vmatprep.mubr.f32.mxu0 0.0
    %3011 = vmatmul.mubr.f32.gmra.mxu0 %v2770
    %v3012 = vpop.f32.mrf.mxu0
    %v3013 = vadd.f32 %v2818, %v3012
    %v3014 = vpop.f32.mrf.mxu0
    %3015 = vmatprep.mubr.f32.mxu0 0.0
    %3016 = vmatmul.mubr.f32.gmra.mxu0 %v2771
    %v3017 = vpop.f32.mrf.mxu0
    %v3018 = vadd.f32 %v2819, %v3017
    %v3019 = vpop.f32.mrf.mxu0
    %3020 = vmatprep.mubr.f32.mxu0 0.0
    %3021 = vmatmul.mubr.f32.gmra.mxu0 %v2772
    %v3022 = vpop.f32.mrf.mxu0
    %v3023 = vadd.f32 %v2820, %v3022
    %v3024 = vpop.f32.mrf.mxu0
    %3025 = vmatprep.mubr.f32.mxu0 0.0
    %3026 = vmatmul.mubr.f32.gmra.mxu0 %v2773
    %v3027 = vpop.f32.mrf.mxu0
    %v3028 = vadd.f32 %v2821, %v3027
    %v3029 = vpop.f32.mrf.mxu0
    %3030 = vdwg.mxu0
    %v3031 = vmax.f32 %v2953, 0.0
    %v3032 = vmax.f32 %v2958, 0.0
    %v3033 = vmax.f32 %v2963, 0.0
    %v3034 = vmax.f32 %v2968, 0.0
    %v3035 = vmax.f32 %v2973, 0.0
    %v3036 = vmax.f32 %v2978, 0.0
    %v3037 = vmax.f32 %v2983, 0.0
    %v3038 = vmax.f32 %v2988, 0.0
    %v3039 = vmax.f32 %v2993, 0.0
    %v3040 = vmax.f32 %v2998, 0.0
    %v3041 = vmax.f32 %v3003, 0.0
    %v3042 = vmax.f32 %v3008, 0.0
    %v3043 = vmax.f32 %v3013, 0.0
    %v3044 = vmax.f32 %v3018, 0.0
    %v3045 = vmax.f32 %v3023, 0.0
    %v3046 = vmax.f32 %v3028, 0.0
    %3047 = vmatprep.subr.mxu0 0.0
    %3048 = vmatpush1.msra.mxu0 %v3046
    %3049 = vmatprep.subr.mxu0 0.0
    %3050 = vmatpush1.msra.mxu0 %v3045
    %3051 = vmatprep.subr.mxu0 0.0
    %3052 = vmatpush1.msra.mxu0 %v3044
    %3053 = vmatprep.subr.mxu0 0.0
    %3054 = vmatpush1.msra.mxu0 %v3043
    %3055 = vmatprep.subr.mxu0 0.0
    %3056 = vmatpush1.msra.mxu0 %v3042
    %3057 = vmatprep.subr.mxu0 0.0
    %3058 = vmatpush1.msra.mxu0 %v3041
    %3059 = vmatprep.subr.mxu0 0.0
    %3060 = vmatpush1.msra.mxu0 %v3040
    %3061 = vmatprep.subr.mxu0 0.0
    %3062 = vmatpush1.msra.mxu0 %v3039
    %3063 = vmatprep.subr.mxu0 0.0
    %3064 = vmatpush1.msra.mxu0 %v3038
    %3065 = vmatprep.subr.mxu0 0.0
    %3066 = vmatpush1.msra.mxu0 %v3037
    %3067 = vmatprep.subr.mxu0 0.0
    %3068 = vmatpush1.msra.mxu0 %v3036
    %3069 = vmatprep.subr.mxu0 0.0
    %3070 = vmatpush1.msra.mxu0 %v3035
    %3071 = vmatprep.subr.mxu0 0.0
    %3072 = vmatpush1.msra.mxu0 %v3034
    %3073 = vmatprep.subr.mxu0 0.0
    %3074 = vmatpush1.msra.mxu0 %v3033
    %3075 = vmatprep.subr.mxu0 0.0
    %3076 = vmatpush1.msra.mxu0 %v3032
    %3077 = vmatprep.subr.mxu0 0.0
    %3078 = vmatpush1.msra.mxu0 %v3031
    %3079 = vmatprep.subr.mxu0 0.0
    %3080 = vmatpush2.msra.mxu0 0.0
    %3081 = vmatprep.subr.mxu0 0.0
    %3082 = vmatpush2.msra.mxu0 0.0
    %3083 = vmatprep.subr.mxu0 0.0
    %3084 = vmatpush2.msra.mxu0 0.0
    %3085 = vmatprep.subr.mxu0 0.0
    %3086 = vmatpush2.msra.mxu0 0.0
    %3087 = vmatprep.subr.mxu0 0.0
    %3088 = vmatpush2.msra.mxu0 0.0
    %3089 = vmatprep.subr.mxu0 0.0
    %3090 = vmatpush2.msra.mxu0 0.0
    %3091 = vmatprep.subr.mxu0 0.0
    %3092 = vmatpush2.msra.mxu0 0.0
    %3093 = vmatprep.subr.mxu0 0.0
    %3094 = vmatpush2.msra.mxu0 0.0
    %3095 = vmatprep.subr.mxu0 0.0
    %3096 = vmatpush2.msra.mxu0 0.0
    %3097 = vmatprep.subr.mxu0 0.0
    %3098 = vmatpush2.msra.mxu0 0.0
    %3099 = vmatprep.subr.mxu0 0.0
    %3100 = vmatpush2.msra.mxu0 0.0
    %3101 = vmatprep.subr.mxu0 0.0
    %3102 = vmatpush2.msra.mxu0 0.0
    %3103 = vmatprep.subr.mxu0 0.0
    %3104 = vmatpush2.msra.mxu0 0.0
    %3105 = vmatprep.subr.mxu0 0.0
    %3106 = vmatpush2.msra.mxu0 0.0
    %3107 = vmatprep.subr.mxu0 0.0
    %3108 = vmatpush2.msra.mxu0 0.0
    %3109 = vmatprep.subr.mxu0 0.0
    %3110 = vmatpush2.msra.mxu0 0.0
    %3111 = vmatprep.mubr.f32.mxu0 0.0
    %3112 = vmatmul.mubr.f32.gmra.mxu0 %v2774
    %v3113 = vpop.f32.mrf.mxu0
    %v3114 = vadd.f32 %v2822, %v3113
    %v3115 = vpop.f32.mrf.mxu0
    %3116 = vmatprep.mubr.f32.mxu0 0.0
    %3117 = vmatmul.mubr.f32.gmra.mxu0 %v2775
    %v3118 = vpop.f32.mrf.mxu0
    %v3119 = vadd.f32 %v2823, %v3118
    %v3120 = vpop.f32.mrf.mxu0
    %3121 = vmatprep.mubr.f32.mxu0 0.0
    %3122 = vmatmul.mubr.f32.gmra.mxu0 %v2776
    %v3123 = vpop.f32.mrf.mxu0
    %v3124 = vadd.f32 %v2824, %v3123
    %v3125 = vpop.f32.mrf.mxu0
    %3126 = vmatprep.mubr.f32.mxu0 0.0
    %3127 = vmatmul.mubr.f32.gmra.mxu0 %v2777
    %v3128 = vpop.f32.mrf.mxu0
    %v3129 = vadd.f32 %v2825, %v3128
    %v3130 = vpop.f32.mrf.mxu0
    %3131 = vmatprep.mubr.f32.mxu0 0.0
    %3132 = vmatmul.mubr.f32.gmra.mxu0 %v2778
    %v3133 = vpop.f32.mrf.mxu0
    %v3134 = vadd.f32 %v2826, %v3133
    %v3135 = vpop.f32.mrf.mxu0
    %3136 = vmatprep.mubr.f32.mxu0 0.0
    %3137 = vmatmul.mubr.f32.gmra.mxu0 %v2779
    %v3138 = vpop.f32.mrf.mxu0
    %v3139 = vadd.f32 %v2827, %v3138
    %v3140 = vpop.f32.mrf.mxu0
    %3141 = vmatprep.mubr.f32.mxu0 0.0
    %3142 = vmatmul.mubr.f32.gmra.mxu0 %v2780
    %v3143 = vpop.f32.mrf.mxu0
    %v3144 = vadd.f32 %v2828, %v3143
    %v3145 = vpop.f32.mrf.mxu0
    %3146 = vmatprep.mubr.f32.mxu0 0.0
    %3147 = vmatmul.mubr.f32.gmra.mxu0 %v2781
    %v3148 = vpop.f32.mrf.mxu0
    %v3149 = vadd.f32 %v2829, %v3148
    %v3150 = vpop.f32.mrf.mxu0
    %3151 = vmatprep.mubr.f32.mxu0 0.0
    %3152 = vmatmul.mubr.f32.gmra.mxu0 %v2782
    %v3153 = vpop.f32.mrf.mxu0
    %v3154 = vadd.f32 %v2830, %v3153
    %v3155 = vpop.f32.mrf.mxu0
    %3156 = vmatprep.mubr.f32.mxu0 0.0
    %3157 = vmatmul.mubr.f32.gmra.mxu0 %v2783
    %v3158 = vpop.f32.mrf.mxu0
    %v3159 = vadd.f32 %v2831, %v3158
    %v3160 = vpop.f32.mrf.mxu0
    %3161 = vmatprep.mubr.f32.mxu0 0.0
    %3162 = vmatmul.mubr.f32.gmra.mxu0 %v2784
    %v3163 = vpop.f32.mrf.mxu0
    %v3164 = vadd.f32 %v2832, %v3163
    %v3165 = vpop.f32.mrf.mxu0
    %3166 = vmatprep.mubr.f32.mxu0 0.0
    %3167 = vmatmul.mubr.f32.gmra.mxu0 %v2785
    %v3168 = vpop.f32.mrf.mxu0
    %v3169 = vadd.f32 %v2833, %v3168
    %v3170 = vpop.f32.mrf.mxu0
    %3171 = vmatprep.mubr.f32.mxu0 0.0
    %3172 = vmatmul.mubr.f32.gmra.mxu0 %v2786
    %v3173 = vpop.f32.mrf.mxu0
    %v3174 = vadd.f32 %v2834, %v3173
    %v3175 = vpop.f32.mrf.mxu0
    %3176 = vmatprep.mubr.f32.mxu0 0.0
    %3177 = vmatmul.mubr.f32.gmra.mxu0 %v2787
    %v3178 = vpop.f32.mrf.mxu0
    %v3179 = vadd.f32 %v2835, %v3178
    %v3180 = vpop.f32.mrf.mxu0
    %3181 = vmatprep.mubr.f32.mxu0 0.0
    %3182 = vmatmul.mubr.f32.gmra.mxu0 %v2788
    %v3183 = vpop.f32.mrf.mxu0
    %v3184 = vadd.f32 %v2836, %v3183
    %v3185 = vpop.f32.mrf.mxu0
    %3186 = vmatprep.mubr.f32.mxu0 0.0
    %3187 = vmatmul.mubr.f32.gmra.mxu0 %v2789
    %v3188 = vpop.f32.mrf.mxu0
    %v3189 = vadd.f32 %v2837, %v3188
    %v3190 = vpop.f32.mrf.mxu0
    %3191 = vdwg.mxu0
    %v3192 = vmax.f32 %v3114, 0.0
    %v3193 = vmax.f32 %v3119, 0.0
    %v3194 = vmax.f32 %v3124, 0.0
    %v3195 = vmax.f32 %v3129, 0.0
    %v3196 = vmax.f32 %v3134, 0.0
    %v3197 = vmax.f32 %v3139, 0.0
    %v3198 = vmax.f32 %v3144, 0.0
    %v3199 = vmax.f32 %v3149, 0.0
    %v3200 = vmax.f32 %v3154, 0.0
    %v3201 = vmax.f32 %v3159, 0.0
    %v3202 = vmax.f32 %v3164, 0.0
    %v3203 = vmax.f32 %v3169, 0.0
    %v3204 = vmax.f32 %v3174, 0.0
    %v3205 = vmax.f32 %v3179, 0.0
    %v3206 = vmax.f32 %v3184, 0.0
    %v3207 = vmax.f32 %v3189, 0.0
    %3208 = vmatprep.subr.mxu0 0.0
    %3209 = vmatpush1.msra.mxu0 %v3207
    %3210 = vmatprep.subr.mxu0 0.0
    %3211 = vmatpush1.msra.mxu0 %v3206
    %3212 = vmatprep.subr.mxu0 0.0
    %3213 = vmatpush1.msra.mxu0 %v3205
    %3214 = vmatprep.subr.mxu0 0.0
    %3215 = vmatpush1.msra.mxu0 %v3204
    %3216 = vmatprep.subr.mxu0 0.0
    %3217 = vmatpush1.msra.mxu0 %v3203
    %3218 = vmatprep.subr.mxu0 0.0
    %3219 = vmatpush1.msra.mxu0 %v3202
    %3220 = vmatprep.subr.mxu0 0.0
    %3221 = vmatpush1.msra.mxu0 %v3201
    %3222 = vmatprep.subr.mxu0 0.0
    %3223 = vmatpush1.msra.mxu0 %v3200
    %3224 = vmatprep.subr.mxu0 0.0
    %3225 = vmatpush1.msra.mxu0 %v3199
    %3226 = vmatprep.subr.mxu0 0.0
    %3227 = vmatpush1.msra.mxu0 %v3198
    %3228 = vmatprep.subr.mxu0 0.0
    %3229 = vmatpush1.msra.mxu0 %v3197
    %3230 = vmatprep.subr.mxu0 0.0
    %3231 = vmatpush1.msra.mxu0 %v3196
    %3232 = vmatprep.subr.mxu0 0.0
    %3233 = vmatpush1.msra.mxu0 %v3195
    %3234 = vmatprep.subr.mxu0 0.0
    %3235 = vmatpush1.msra.mxu0 %v3194
    %3236 = vmatprep.subr.mxu0 0.0
    %3237 = vmatpush1.msra.mxu0 %v3193
    %3238 = vmatprep.subr.mxu0 0.0
    %3239 = vmatpush1.msra.mxu0 %v3192
    %3240 = vmatprep.subr.mxu0 0.0
    %3241 = vmatpush2.msra.mxu0 0.0
    %3242 = vmatprep.subr.mxu0 0.0
    %3243 = vmatpush2.msra.mxu0 0.0
    %3244 = vmatprep.subr.mxu0 0.0
    %3245 = vmatpush2.msra.mxu0 0.0
    %3246 = vmatprep.subr.mxu0 0.0
    %3247 = vmatpush2.msra.mxu0 0.0
    %3248 = vmatprep.subr.mxu0 0.0
    %3249 = vmatpush2.msra.mxu0 0.0
    %3250 = vmatprep.subr.mxu0 0.0
    %3251 = vmatpush2.msra.mxu0 0.0
    %3252 = vmatprep.subr.mxu0 0.0
    %3253 = vmatpush2.msra.mxu0 0.0
    %3254 = vmatprep.subr.mxu0 0.0
    %3255 = vmatpush2.msra.mxu0 0.0
    %3256 = vmatprep.subr.mxu0 0.0
    %3257 = vmatpush2.msra.mxu0 0.0
    %3258 = vmatprep.subr.mxu0 0.0
    %3259 = vmatpush2.msra.mxu0 0.0
    %3260 = vmatprep.subr.mxu0 0.0
    %3261 = vmatpush2.msra.mxu0 0.0
    %3262 = vmatprep.subr.mxu0 0.0
    %3263 = vmatpush2.msra.mxu0 0.0
    %3264 = vmatprep.subr.mxu0 0.0
    %3265 = vmatpush2.msra.mxu0 0.0
    %3266 = vmatprep.subr.mxu0 0.0
    %3267 = vmatpush2.msra.mxu0 0.0
    %3268 = vmatprep.subr.mxu0 0.0
    %3269 = vmatpush2.msra.mxu0 0.0
    %3270 = vmatprep.subr.mxu0 0.0
    %3271 = vmatpush2.msra.mxu0 0.0
    %3272 = vmatprep.mubr.f32.mxu0 0.0
    %3273 = vmatmul.mubr.f32.gmra.mxu0 %v2790
    %v3274 = vpop.f32.mrf.mxu0
    %v3275 = vadd.f32 %v2838, %v3274
    %v3276 = vpop.f32.mrf.mxu0
    %3277 = vmatprep.mubr.f32.mxu0 0.0
    %3278 = vmatmul.mubr.f32.gmra.mxu0 %v2791
    %v3279 = vpop.f32.mrf.mxu0
    %v3280 = vadd.f32 %v2839, %v3279
    %v3281 = vpop.f32.mrf.mxu0
    %3282 = vmatprep.mubr.f32.mxu0 0.0
    %3283 = vmatmul.mubr.f32.gmra.mxu0 %v2792
    %v3284 = vpop.f32.mrf.mxu0
    %v3285 = vadd.f32 %v2840, %v3284
    %v3286 = vpop.f32.mrf.mxu0
    %3287 = vmatprep.mubr.f32.mxu0 0.0
    %3288 = vmatmul.mubr.f32.gmra.mxu0 %v2793
    %v3289 = vpop.f32.mrf.mxu0
    %v3290 = vadd.f32 %v2841, %v3289
    %v3291 = vpop.f32.mrf.mxu0
    %3292 = vmatprep.mubr.f32.mxu0 0.0
    %3293 = vmatmul.mubr.f32.gmra.mxu0 %v2794
    %v3294 = vpop.f32.mrf.mxu0
    %v3295 = vadd.f32 %v2842, %v3294
    %v3296 = vpop.f32.mrf.mxu0
    %3297 = vmatprep.mubr.f32.mxu0 0.0
    %3298 = vmatmul.mubr.f32.gmra.mxu0 %v2795
    %v3299 = vpop.f32.mrf.mxu0
    %v3300 = vadd.f32 %v2843, %v3299
    %v3301 = vpop.f32.mrf.mxu0
    %3302 = vmatprep.mubr.f32.mxu0 0.0
    %3303 = vmatmul.mubr.f32.gmra.mxu0 %v2796
    %v3304 = vpop.f32.mrf.mxu0
    %v3305 = vadd.f32 %v2844, %v3304
    %v3306 = vpop.f32.mrf.mxu0
    %3307 = vmatprep.mubr.f32.mxu0 0.0
    %3308 = vmatmul.mubr.f32.gmra.mxu0 %v2797
    %v3309 = vpop.f32.mrf.mxu0
    %v3310 = vadd.f32 %v2845, %v3309
    %v3311 = vpop.f32.mrf.mxu0
    %3312 = vmatprep.mubr.f32.mxu0 0.0
    %3313 = vmatmul.mubr.f32.gmra.mxu0 %v2798
    %v3314 = vpop.f32.mrf.mxu0
    %v3315 = vadd.f32 %v2846, %v3314
    %v3316 = vpop.f32.mrf.mxu0
    %3317 = vmatprep.mubr.f32.mxu0 0.0
    %3318 = vmatmul.mubr.f32.gmra.mxu0 %v2799
    %v3319 = vpop.f32.mrf.mxu0
    %v3320 = vadd.f32 %v2847, %v3319
    %v3321 = vpop.f32.mrf.mxu0
    %3322 = vmatprep.mubr.f32.mxu0 0.0
    %3323 = vmatmul.mubr.f32.gmra.mxu0 %v2800
    %v3324 = vpop.f32.mrf.mxu0
    %v3325 = vadd.f32 %v2848, %v3324
    %v3326 = vpop.f32.mrf.mxu0
    %3327 = vmatprep.mubr.f32.mxu0 0.0
    %3328 = vmatmul.mubr.f32.gmra.mxu0 %v2801
    %v3329 = vpop.f32.mrf.mxu0
    %v3330 = vadd.f32 %v2849, %v3329
    %v3331 = vpop.f32.mrf.mxu0
    %3332 = vmatprep.mubr.f32.mxu0 0.0
    %3333 = vmatmul.mubr.f32.gmra.mxu0 %v2802
    %v3334 = vpop.f32.mrf.mxu0
    %v3335 = vadd.f32 %v2850, %v3334
    %v3336 = vpop.f32.mrf.mxu0
    %3337 = vmatprep.mubr.f32.mxu0 0.0
    %3338 = vmatmul.mubr.f32.gmra.mxu0 %v2803
    %v3339 = vpop.f32.mrf.mxu0
    %v3340 = vadd.f32 %v2851, %v3339
    %v3341 = vpop.f32.mrf.mxu0
    %3342 = vmatprep.mubr.f32.mxu0 0.0
    %3343 = vmatmul.mubr.f32.gmra.mxu0 %v2804
    %v3344 = vpop.f32.mrf.mxu0
    %v3345 = vadd.f32 %v2852, %v3344
    %v3346 = vpop.f32.mrf.mxu0
    %3347 = vmatprep.mubr.f32.mxu0 0.0
    %3348 = vmatmul.mubr.f32.gmra.mxu0 %v2805
    %v3349 = vpop.f32.mrf.mxu0
    %v3350 = vadd.f32 %v2853, %v3349
    %v3351 = vpop.f32.mrf.mxu0
    %3352 = vdwg.mxu0
    %vm3353 = vcmask 7168
    %3354 = vst.msk [vmem:[%s17] sm:$0xff] %vm3353, %v3275
    %3355 = vst.msk [vmem:[%s17 + $0x8] sm:$0xff] %vm3353, %v3280
    %3356 = vst.msk [vmem:[%s17 + $0x10] sm:$0xff] %vm3353, %v3285
    %3357 = vst.msk [vmem:[%s17 + $0x18] sm:$0xff] %vm3353, %v3290
    %3358 = vst.msk [vmem:[%s17 + $0x20] sm:$0xff] %vm3353, %v3295
    %3359 = vst.msk [vmem:[%s17 + $0x28] sm:$0xff] %vm3353, %v3300
    %3360 = vst.msk [vmem:[%s17 + $0x30] sm:$0xff] %vm3353, %v3305
    %3361 = vst.msk [vmem:[%s17 + $0x38] sm:$0xff] %vm3353, %v3310
    %3362 = vst.msk [vmem:[%s17 + $0x40] sm:$0xff] %vm3353, %v3315
    %3363 = vst.msk [vmem:[%s17 + $0x48] sm:$0xff] %vm3353, %v3320
    %3364 = vst.msk [vmem:[%s17 + $0x50] sm:$0xff] %vm3353, %v3325
    %3365 = vst.msk [vmem:[%s17 + $0x58] sm:$0xff] %vm3353, %v3330
    %3366 = vst.msk [vmem:[%s17 + $0x60] sm:$0xff] %vm3353, %v3335
    %3367 = vst.msk [vmem:[%s17 + $0x68] sm:$0xff] %vm3353, %v3340
    %3368 = vst.msk [vmem:[%s17 + $0x70] sm:$0xff] %vm3353, %v3345
    %3369 = vst.msk [vmem:[%s17 + $0x78] sm:$0xff] %vm3353, %v3350
    %3370 = vmax.xlane.f32.xlu0 %v2742
    %v3371 = vpop.xlane.xlu0 %3370
    %3372 = vmax.xlane.f32.xlu0 %v2743
    %v3373 = vpop.xlane.xlu0 %3372
    %3374 = vmax.xlane.f32.xlu0 %v2744
    %v3375 = vpop.xlane.xlu0 %3374
    %3376 = vmax.xlane.f32.xlu0 %v2745
    %v3377 = vpop.xlane.xlu0 %3376
    %3378 = vmax.xlane.f32.xlu0 %v2746
    %v3379 = vpop.xlane.xlu0 %3378
    %3380 = vmax.xlane.f32.xlu0 %v2747
    %v3381 = vpop.xlane.xlu0 %3380
    %3382 = vmax.xlane.f32.xlu0 %v2748
    %v3383 = vpop.xlane.xlu0 %3382
    %3384 = vmax.xlane.f32.xlu0 %v2749
    %v3385 = vpop.xlane.xlu0 %3384
    %3386 = vmax.xlane.f32.xlu0 %v2750
    %v3387 = vpop.xlane.xlu0 %3386
    %3388 = vmax.xlane.f32.xlu0 %v2751
    %v3389 = vpop.xlane.xlu0 %3388
    %3390 = vmax.xlane.f32.xlu0 %v2752
    %v3391 = vpop.xlane.xlu0 %3390
    %3392 = vmax.xlane.f32.xlu0 %v2753
    %v3393 = vpop.xlane.xlu0 %3392
    %3394 = vmax.xlane.f32.xlu0 %v2754
    %v3395 = vpop.xlane.xlu0 %3394
    %3396 = vmax.xlane.f32.xlu0 %v2755
    %v3397 = vpop.xlane.xlu0 %3396
    %3398 = vmax.xlane.f32.xlu0 %v2756
    %v3399 = vpop.xlane.xlu0 %3398
    %3400 = vmax.xlane.f32.xlu0 %v2757
    %v3401 = vpop.xlane.xlu0 %3400
    %3402 = vmatprep.subr.mxu0 0.0
    %3403 = vmatpush1.msra.mxu0 %v3401
    %3404 = vmatprep.subr.mxu0 0.0
    %3405 = vmatpush1.msra.mxu0 %v3399
    %3406 = vmatprep.subr.mxu0 0.0
    %3407 = vmatpush1.msra.mxu0 %v3397
    %3408 = vmatprep.subr.mxu0 0.0
    %3409 = vmatpush1.msra.mxu0 %v3395
    %3410 = vmatprep.subr.mxu0 0.0
    %3411 = vmatpush1.msra.mxu0 %v3393
    %3412 = vmatprep.subr.mxu0 0.0
    %3413 = vmatpush1.msra.mxu0 %v3391
    %3414 = vmatprep.subr.mxu0 0.0
    %3415 = vmatpush1.msra.mxu0 %v3389
    %3416 = vmatprep.subr.mxu0 0.0
    %3417 = vmatpush1.msra.mxu0 %v3387
    %3418 = vmatprep.subr.mxu0 0.0
    %3419 = vmatpush1.msra.mxu0 %v3385
    %3420 = vmatprep.subr.mxu0 0.0
    %3421 = vmatpush1.msra.mxu0 %v3383
    %3422 = vmatprep.subr.mxu0 0.0
    %3423 = vmatpush1.msra.mxu0 %v3381
    %3424 = vmatprep.subr.mxu0 0.0
    %3425 = vmatpush1.msra.mxu0 %v3379
    %3426 = vmatprep.subr.mxu0 0.0
    %3427 = vmatpush1.msra.mxu0 %v3377
    %3428 = vmatprep.subr.mxu0 0.0
    %3429 = vmatpush1.msra.mxu0 %v3375
    %3430 = vmatprep.subr.mxu0 0.0
    %3431 = vmatpush1.msra.mxu0 %v3373
    %3432 = vmatprep.subr.mxu0 0.0
    %3433 = vmatpush1.msra.mxu0 %v3371
    %3434 = vmatprep.subr.mxu0 0.0
    %3435 = vmatpush2.msra.mxu0 0.0
    %3436 = vmatprep.subr.mxu0 0.0
    %3437 = vmatpush2.msra.mxu0 0.0
    %3438 = vmatprep.subr.mxu0 0.0
    %3439 = vmatpush2.msra.mxu0 0.0
    %3440 = vmatprep.subr.mxu0 0.0
    %3441 = vmatpush2.msra.mxu0 0.0
    %3442 = vmatprep.subr.mxu0 0.0
    %3443 = vmatpush2.msra.mxu0 0.0
    %3444 = vmatprep.subr.mxu0 0.0
    %3445 = vmatpush2.msra.mxu0 0.0
    %3446 = vmatprep.subr.mxu0 0.0
    %3447 = vmatpush2.msra.mxu0 0.0
    %3448 = vmatprep.subr.mxu0 0.0
    %3449 = vmatpush2.msra.mxu0 0.0
    %3450 = vmatprep.subr.mxu0 0.0
    %3451 = vmatpush2.msra.mxu0 0.0
    %3452 = vmatprep.subr.mxu0 0.0
    %3453 = vmatpush2.msra.mxu0 0.0
    %3454 = vmatprep.subr.mxu0 0.0
    %3455 = vmatpush2.msra.mxu0 0.0
    %3456 = vmatprep.subr.mxu0 0.0
    %3457 = vmatpush2.msra.mxu0 0.0
    %3458 = vmatprep.subr.mxu0 0.0
    %3459 = vmatpush2.msra.mxu0 0.0
    %3460 = vmatprep.subr.mxu0 0.0
    %3461 = vmatpush2.msra.mxu0 0.0
    %3462 = vmatprep.subr.mxu0 0.0
    %3463 = vmatpush2.msra.mxu0 0.0
    %3464 = vmatprep.subr.mxu0 0.0
    %3465 = vmatpush2.msra.mxu0 0.0
    %3466 = vmatprep.mubr.f32.mxu0 0.0
    %3467 = vmatmul.mubr.f32.gmra.mxu0 %v2758
    %v3468 = vpop.f32.mrf.mxu0
    %v3469 = vadd.f32 %v2806, %v3468
    %v3470 = vpop.f32.mrf.mxu0
    %3471 = vmatprep.mubr.f32.mxu0 0.0
    %3472 = vmatmul.mubr.f32.gmra.mxu0 %v2759
    %v3473 = vpop.f32.mrf.mxu0
    %v3474 = vadd.f32 %v2807, %v3473
    %v3475 = vpop.f32.mrf.mxu0
    %3476 = vmatprep.mubr.f32.mxu0 0.0
    %3477 = vmatmul.mubr.f32.gmra.mxu0 %v2760
    %v3478 = vpop.f32.mrf.mxu0
    %v3479 = vadd.f32 %v2808, %v3478
    %v3480 = vpop.f32.mrf.mxu0
    %3481 = vmatprep.mubr.f32.mxu0 0.0
    %3482 = vmatmul.mubr.f32.gmra.mxu0 %v2761
    %v3483 = vpop.f32.mrf.mxu0
    %v3484 = vadd.f32 %v2809, %v3483
    %v3485 = vpop.f32.mrf.mxu0
    %3486 = vmatprep.mubr.f32.mxu0 0.0
    %3487 = vmatmul.mubr.f32.gmra.mxu0 %v2762
    %v3488 = vpop.f32.mrf.mxu0
    %v3489 = vadd.f32 %v2810, %v3488
    %v3490 = vpop.f32.mrf.mxu0
    %3491 = vmatprep.mubr.f32.mxu0 0.0
    %3492 = vmatmul.mubr.f32.gmra.mxu0 %v2763
    %v3493 = vpop.f32.mrf.mxu0
    %v3494 = vadd.f32 %v2811, %v3493
    %v3495 = vpop.f32.mrf.mxu0
    %3496 = vmatprep.mubr.f32.mxu0 0.0
    %3497 = vmatmul.mubr.f32.gmra.mxu0 %v2764
    %v3498 = vpop.f32.mrf.mxu0
    %v3499 = vadd.f32 %v2812, %v3498
    %v3500 = vpop.f32.mrf.mxu0
    %3501 = vmatprep.mubr.f32.mxu0 0.0
    %3502 = vmatmul.mubr.f32.gmra.mxu0 %v2765
    %v3503 = vpop.f32.mrf.mxu0
    %v3504 = vadd.f32 %v2813, %v3503
    %v3505 = vpop.f32.mrf.mxu0
    %3506 = vmatprep.mubr.f32.mxu0 0.0
    %3507 = vmatmul.mubr.f32.gmra.mxu0 %v2766
    %v3508 = vpop.f32.mrf.mxu0
    %v3509 = vadd.f32 %v2814, %v3508
    %v3510 = vpop.f32.mrf.mxu0
    %3511 = vmatprep.mubr.f32.mxu0 0.0
    %3512 = vmatmul.mubr.f32.gmra.mxu0 %v2767
    %v3513 = vpop.f32.mrf.mxu0
    %v3514 = vadd.f32 %v2815, %v3513
    %v3515 = vpop.f32.mrf.mxu0
    %3516 = vmatprep.mubr.f32.mxu0 0.0
    %3517 = vmatmul.mubr.f32.gmra.mxu0 %v2768
    %v3518 = vpop.f32.mrf.mxu0
    %v3519 = vadd.f32 %v2816, %v3518
    %v3520 = vpop.f32.mrf.mxu0
    %3521 = vmatprep.mubr.f32.mxu0 0.0
    %3522 = vmatmul.mubr.f32.gmra.mxu0 %v2769
    %v3523 = vpop.f32.mrf.mxu0
    %v3524 = vadd.f32 %v2817, %v3523
    %v3525 = vpop.f32.mrf.mxu0
    %3526 = vmatprep.mubr.f32.mxu0 0.0
    %3527 = vmatmul.mubr.f32.gmra.mxu0 %v2770
    %v3528 = vpop.f32.mrf.mxu0
    %v3529 = vadd.f32 %v2818, %v3528
    %v3530 = vpop.f32.mrf.mxu0
    %3531 = vmatprep.mubr.f32.mxu0 0.0
    %3532 = vmatmul.mubr.f32.gmra.mxu0 %v2771
    %v3533 = vpop.f32.mrf.mxu0
    %v3534 = vadd.f32 %v2819, %v3533
    %v3535 = vpop.f32.mrf.mxu0
    %3536 = vmatprep.mubr.f32.mxu0 0.0
    %3537 = vmatmul.mubr.f32.gmra.mxu0 %v2772
    %v3538 = vpop.f32.mrf.mxu0
    %v3539 = vadd.f32 %v2820, %v3538
    %v3540 = vpop.f32.mrf.mxu0
    %3541 = vmatprep.mubr.f32.mxu0 0.0
    %3542 = vmatmul.mubr.f32.gmra.mxu0 %v2773
    %v3543 = vpop.f32.mrf.mxu0
    %v3544 = vadd.f32 %v2821, %v3543
    %v3545 = vpop.f32.mrf.mxu0
    %3546 = vdwg.mxu0
    %v3547 = vmax.f32 %v3469, 0.0
    %v3548 = vmax.f32 %v3474, 0.0
    %v3549 = vmax.f32 %v3479, 0.0
    %v3550 = vmax.f32 %v3484, 0.0
    %v3551 = vmax.f32 %v3489, 0.0
    %v3552 = vmax.f32 %v3494, 0.0
    %v3553 = vmax.f32 %v3499, 0.0
    %v3554 = vmax.f32 %v3504, 0.0
    %v3555 = vmax.f32 %v3509, 0.0
    %v3556 = vmax.f32 %v3514, 0.0
    %v3557 = vmax.f32 %v3519, 0.0
    %v3558 = vmax.f32 %v3524, 0.0
    %v3559 = vmax.f32 %v3529, 0.0
    %v3560 = vmax.f32 %v3534, 0.0
    %v3561 = vmax.f32 %v3539, 0.0
    %v3562 = vmax.f32 %v3544, 0.0
    %3563 = vmatprep.subr.mxu0 0.0
    %3564 = vmatpush1.msra.mxu0 %v3562
    %3565 = vmatprep.subr.mxu0 0.0
    %3566 = vmatpush1.msra.mxu0 %v3561
    %3567 = vmatprep.subr.mxu0 0.0
    %3568 = vmatpush1.msra.mxu0 %v3560
    %3569 = vmatprep.subr.mxu0 0.0
    %3570 = vmatpush1.msra.mxu0 %v3559
    %3571 = vmatprep.subr.mxu0 0.0
    %3572 = vmatpush1.msra.mxu0 %v3558
    %3573 = vmatprep.subr.mxu0 0.0
    %3574 = vmatpush1.msra.mxu0 %v3557
    %3575 = vmatprep.subr.mxu0 0.0
    %3576 = vmatpush1.msra.mxu0 %v3556
    %3577 = vmatprep.subr.mxu0 0.0
    %3578 = vmatpush1.msra.mxu0 %v3555
    %3579 = vmatprep.subr.mxu0 0.0
    %3580 = vmatpush1.msra.mxu0 %v3554
    %3581 = vmatprep.subr.mxu0 0.0
    %3582 = vmatpush1.msra.mxu0 %v3553
    %3583 = vmatprep.subr.mxu0 0.0
    %3584 = vmatpush1.msra.mxu0 %v3552
    %3585 = vmatprep.subr.mxu0 0.0
    %3586 = vmatpush1.msra.mxu0 %v3551
    %3587 = vmatprep.subr.mxu0 0.0
    %3588 = vmatpush1.msra.mxu0 %v3550
    %3589 = vmatprep.subr.mxu0 0.0
    %3590 = vmatpush1.msra.mxu0 %v3549
    %3591 = vmatprep.subr.mxu0 0.0
    %3592 = vmatpush1.msra.mxu0 %v3548
    %3593 = vmatprep.subr.mxu0 0.0
    %3594 = vmatpush1.msra.mxu0 %v3547
    %3595 = vmatprep.subr.mxu0 0.0
    %3596 = vmatpush2.msra.mxu0 0.0
    %3597 = vmatprep.subr.mxu0 0.0
    %3598 = vmatpush2.msra.mxu0 0.0
    %3599 = vmatprep.subr.mxu0 0.0
    %3600 = vmatpush2.msra.mxu0 0.0
    %3601 = vmatprep.subr.mxu0 0.0
    %3602 = vmatpush2.msra.mxu0 0.0
    %3603 = vmatprep.subr.mxu0 0.0
    %3604 = vmatpush2.msra.mxu0 0.0
    %3605 = vmatprep.subr.mxu0 0.0
    %3606 = vmatpush2.msra.mxu0 0.0
    %3607 = vmatprep.subr.mxu0 0.0
    %3608 = vmatpush2.msra.mxu0 0.0
    %3609 = vmatprep.subr.mxu0 0.0
    %3610 = vmatpush2.msra.mxu0 0.0
    %3611 = vmatprep.subr.mxu0 0.0
    %3612 = vmatpush2.msra.mxu0 0.0
    %3613 = vmatprep.subr.mxu0 0.0
    %3614 = vmatpush2.msra.mxu0 0.0
    %3615 = vmatprep.subr.mxu0 0.0
    %3616 = vmatpush2.msra.mxu0 0.0
    %3617 = vmatprep.subr.mxu0 0.0
    %3618 = vmatpush2.msra.mxu0 0.0
    %3619 = vmatprep.subr.mxu0 0.0
    %3620 = vmatpush2.msra.mxu0 0.0
    %3621 = vmatprep.subr.mxu0 0.0
    %3622 = vmatpush2.msra.mxu0 0.0
    %3623 = vmatprep.subr.mxu0 0.0
    %3624 = vmatpush2.msra.mxu0 0.0
    %3625 = vmatprep.subr.mxu0 0.0
    %3626 = vmatpush2.msra.mxu0 0.0
    %3627 = vmatprep.mubr.f32.mxu0 0.0
    %3628 = vmatmul.mubr.f32.gmra.mxu0 %v2774
    %v3629 = vpop.f32.mrf.mxu0
    %v3630 = vadd.f32 %v2822, %v3629
    %v3631 = vpop.f32.mrf.mxu0
    %3632 = vmatprep.mubr.f32.mxu0 0.0
    %3633 = vmatmul.mubr.f32.gmra.mxu0 %v2775
    %v3634 = vpop.f32.mrf.mxu0
    %v3635 = vadd.f32 %v2823, %v3634
    %v3636 = vpop.f32.mrf.mxu0
    %3637 = vmatprep.mubr.f32.mxu0 0.0
    %3638 = vmatmul.mubr.f32.gmra.mxu0 %v2776
    %v3639 = vpop.f32.mrf.mxu0
    %v3640 = vadd.f32 %v2824, %v3639
    %v3641 = vpop.f32.mrf.mxu0
    %3642 = vmatprep.mubr.f32.mxu0 0.0
    %3643 = vmatmul.mubr.f32.gmra.mxu0 %v2777
    %v3644 = vpop.f32.mrf.mxu0
    %v3645 = vadd.f32 %v2825, %v3644
    %v3646 = vpop.f32.mrf.mxu0
    %3647 = vmatprep.mubr.f32.mxu0 0.0
    %3648 = vmatmul.mubr.f32.gmra.mxu0 %v2778
    %v3649 = vpop.f32.mrf.mxu0
    %v3650 = vadd.f32 %v2826, %v3649
    %v3651 = vpop.f32.mrf.mxu0
    %3652 = vmatprep.mubr.f32.mxu0 0.0
    %3653 = vmatmul.mubr.f32.gmra.mxu0 %v2779
    %v3654 = vpop.f32.mrf.mxu0
    %v3655 = vadd.f32 %v2827, %v3654
    %v3656 = vpop.f32.mrf.mxu0
    %3657 = vmatprep.mubr.f32.mxu0 0.0
    %3658 = vmatmul.mubr.f32.gmra.mxu0 %v2780
    %v3659 = vpop.f32.mrf.mxu0
    %v3660 = vadd.f32 %v2828, %v3659
    %v3661 = vpop.f32.mrf.mxu0
    %3662 = vmatprep.mubr.f32.mxu0 0.0
    %3663 = vmatmul.mubr.f32.gmra.mxu0 %v2781
    %v3664 = vpop.f32.mrf.mxu0
    %v3665 = vadd.f32 %v2829, %v3664
    %v3666 = vpop.f32.mrf.mxu0
    %3667 = vmatprep.mubr.f32.mxu0 0.0
    %3668 = vmatmul.mubr.f32.gmra.mxu0 %v2782
    %v3669 = vpop.f32.mrf.mxu0
    %v3670 = vadd.f32 %v2830, %v3669
    %v3671 = vpop.f32.mrf.mxu0
    %3672 = vmatprep.mubr.f32.mxu0 0.0
    %3673 = vmatmul.mubr.f32.gmra.mxu0 %v2783
    %v3674 = vpop.f32.mrf.mxu0
    %v3675 = vadd.f32 %v2831, %v3674
    %v3676 = vpop.f32.mrf.mxu0
    %3677 = vmatprep.mubr.f32.mxu0 0.0
    %3678 = vmatmul.mubr.f32.gmra.mxu0 %v2784
    %v3679 = vpop.f32.mrf.mxu0
    %v3680 = vadd.f32 %v2832, %v3679
    %v3681 = vpop.f32.mrf.mxu0
    %3682 = vmatprep.mubr.f32.mxu0 0.0
    %3683 = vmatmul.mubr.f32.gmra.mxu0 %v2785
    %v3684 = vpop.f32.mrf.mxu0
    %v3685 = vadd.f32 %v2833, %v3684
    %v3686 = vpop.f32.mrf.mxu0
    %3687 = vmatprep.mubr.f32.mxu0 0.0
    %3688 = vmatmul.mubr.f32.gmra.mxu0 %v2786
    %v3689 = vpop.f32.mrf.mxu0
    %v3690 = vadd.f32 %v2834, %v3689
    %v3691 = vpop.f32.mrf.mxu0
    %3692 = vmatprep.mubr.f32.mxu0 0.0
    %3693 = vmatmul.mubr.f32.gmra.mxu0 %v2787
    %v3694 = vpop.f32.mrf.mxu0
    %v3695 = vadd.f32 %v2835, %v3694
    %v3696 = vpop.f32.mrf.mxu0
    %3697 = vmatprep.mubr.f32.mxu0 0.0
    %3698 = vmatmul.mubr.f32.gmra.mxu0 %v2788
    %v3699 = vpop.f32.mrf.mxu0
    %v3700 = vadd.f32 %v2836, %v3699
    %v3701 = vpop.f32.mrf.mxu0
    %3702 = vmatprep.mubr.f32.mxu0 0.0
    %3703 = vmatmul.mubr.f32.gmra.mxu0 %v2789
    %v3704 = vpop.f32.mrf.mxu0
    %v3705 = vadd.f32 %v2837, %v3704
    %v3706 = vpop.f32.mrf.mxu0
    %3707 = vdwg.mxu0
    %v3708 = vmax.f32 %v3630, 0.0
    %v3709 = vmax.f32 %v3635, 0.0
    %v3710 = vmax.f32 %v3640, 0.0
    %v3711 = vmax.f32 %v3645, 0.0
    %v3712 = vmax.f32 %v3650, 0.0
    %v3713 = vmax.f32 %v3655, 0.0
    %v3714 = vmax.f32 %v3660, 0.0
    %v3715 = vmax.f32 %v3665, 0.0
    %v3716 = vmax.f32 %v3670, 0.0
    %v3717 = vmax.f32 %v3675, 0.0
    %v3718 = vmax.f32 %v3680, 0.0
    %v3719 = vmax.f32 %v3685, 0.0
    %v3720 = vmax.f32 %v3690, 0.0
    %v3721 = vmax.f32 %v3695, 0.0
    %v3722 = vmax.f32 %v3700, 0.0
    %v3723 = vmax.f32 %v3705, 0.0
    %3724 = vmatprep.subr.mxu0 0.0
    %3725 = vmatpush1.msra.mxu0 %v3723
    %3726 = vmatprep.subr.mxu0 0.0
    %3727 = vmatpush1.msra.mxu0 %v3722
    %3728 = vmatprep.subr.mxu0 0.0
    %3729 = vmatpush1.msra.mxu0 %v3721
    %3730 = vmatprep.subr.mxu0 0.0
    %3731 = vmatpush1.msra.mxu0 %v3720
    %3732 = vmatprep.subr.mxu0 0.0
    %3733 = vmatpush1.msra.mxu0 %v3719
    %3734 = vmatprep.subr.mxu0 0.0
    %3735 = vmatpush1.msra.mxu0 %v3718
    %3736 = vmatprep.subr.mxu0 0.0
    %3737 = vmatpush1.msra.mxu0 %v3717
    %3738 = vmatprep.subr.mxu0 0.0
    %3739 = vmatpush1.msra.mxu0 %v3716
    %3740 = vmatprep.subr.mxu0 0.0
    %3741 = vmatpush1.msra.mxu0 %v3715
    %3742 = vmatprep.subr.mxu0 0.0
    %3743 = vmatpush1.msra.mxu0 %v3714
    %3744 = vmatprep.subr.mxu0 0.0
    %3745 = vmatpush1.msra.mxu0 %v3713
    %3746 = vmatprep.subr.mxu0 0.0
    %3747 = vmatpush1.msra.mxu0 %v3712
    %3748 = vmatprep.subr.mxu0 0.0
    %3749 = vmatpush1.msra.mxu0 %v3711
    %3750 = vmatprep.subr.mxu0 0.0
    %3751 = vmatpush1.msra.mxu0 %v3710
    %3752 = vmatprep.subr.mxu0 0.0
    %3753 = vmatpush1.msra.mxu0 %v3709
    %3754 = vmatprep.subr.mxu0 0.0
    %3755 = vmatpush1.msra.mxu0 %v3708
    %3756 = vmatprep.subr.mxu0 0.0
    %3757 = vmatpush2.msra.mxu0 0.0
    %3758 = vmatprep.subr.mxu0 0.0
    %3759 = vmatpush2.msra.mxu0 0.0
    %3760 = vmatprep.subr.mxu0 0.0
    %3761 = vmatpush2.msra.mxu0 0.0
    %3762 = vmatprep.subr.mxu0 0.0
    %3763 = vmatpush2.msra.mxu0 0.0
    %3764 = vmatprep.subr.mxu0 0.0
    %3765 = vmatpush2.msra.mxu0 0.0
    %3766 = vmatprep.subr.mxu0 0.0
    %3767 = vmatpush2.msra.mxu0 0.0
    %3768 = vmatprep.subr.mxu0 0.0
    %3769 = vmatpush2.msra.mxu0 0.0
    %3770 = vmatprep.subr.mxu0 0.0
    %3771 = vmatpush2.msra.mxu0 0.0
    %3772 = vmatprep.subr.mxu0 0.0
    %3773 = vmatpush2.msra.mxu0 0.0
    %3774 = vmatprep.subr.mxu0 0.0
    %3775 = vmatpush2.msra.mxu0 0.0
    %3776 = vmatprep.subr.mxu0 0.0
    %3777 = vmatpush2.msra.mxu0 0.0
    %3778 = vmatprep.subr.mxu0 0.0
    %3779 = vmatpush2.msra.mxu0 0.0
    %3780 = vmatprep.subr.mxu0 0.0
    %3781 = vmatpush2.msra.mxu0 0.0
    %3782 = vmatprep.subr.mxu0 0.0
    %3783 = vmatpush2.msra.mxu0 0.0
    %3784 = vmatprep.subr.mxu0 0.0
    %3785 = vmatpush2.msra.mxu0 0.0
    %3786 = vmatprep.subr.mxu0 0.0
    %3787 = vmatpush2.msra.mxu0 0.0
    %3788 = vmatprep.mubr.f32.mxu0 0.0
    %3789 = vmatmul.mubr.f32.gmra.mxu0 %v2790
    %v3790 = vpop.f32.mrf.mxu0
    %v3791 = vadd.f32 %v2838, %v3790
    %v3792 = vpop.f32.mrf.mxu0
    %3793 = vmatprep.mubr.f32.mxu0 0.0
    %3794 = vmatmul.mubr.f32.gmra.mxu0 %v2791
    %v3795 = vpop.f32.mrf.mxu0
    %v3796 = vadd.f32 %v2839, %v3795
    %v3797 = vpop.f32.mrf.mxu0
    %3798 = vmatprep.mubr.f32.mxu0 0.0
    %3799 = vmatmul.mubr.f32.gmra.mxu0 %v2792
    %v3800 = vpop.f32.mrf.mxu0
    %v3801 = vadd.f32 %v2840, %v3800
    %v3802 = vpop.f32.mrf.mxu0
    %3803 = vmatprep.mubr.f32.mxu0 0.0
    %3804 = vmatmul.mubr.f32.gmra.mxu0 %v2793
    %v3805 = vpop.f32.mrf.mxu0
    %v3806 = vadd.f32 %v2841, %v3805
    %v3807 = vpop.f32.mrf.mxu0
    %3808 = vmatprep.mubr.f32.mxu0 0.0
    %3809 = vmatmul.mubr.f32.gmra.mxu0 %v2794
    %v3810 = vpop.f32.mrf.mxu0
    %v3811 = vadd.f32 %v2842, %v3810
    %v3812 = vpop.f32.mrf.mxu0
    %3813 = vmatprep.mubr.f32.mxu0 0.0
    %3814 = vmatmul.mubr.f32.gmra.mxu0 %v2795
    %v3815 = vpop.f32.mrf.mxu0
    %v3816 = vadd.f32 %v2843, %v3815
    %v3817 = vpop.f32.mrf.mxu0
    %3818 = vmatprep.mubr.f32.mxu0 0.0
    %3819 = vmatmul.mubr.f32.gmra.mxu0 %v2796
    %v3820 = vpop.f32.mrf.mxu0
    %v3821 = vadd.f32 %v2844, %v3820
    %v3822 = vpop.f32.mrf.mxu0
    %3823 = vmatprep.mubr.f32.mxu0 0.0
    %3824 = vmatmul.mubr.f32.gmra.mxu0 %v2797
    %v3825 = vpop.f32.mrf.mxu0
    %v3826 = vadd.f32 %v2845, %v3825
    %v3827 = vpop.f32.mrf.mxu0
    %3828 = vmatprep.mubr.f32.mxu0 0.0
    %3829 = vmatmul.mubr.f32.gmra.mxu0 %v2798
    %v3830 = vpop.f32.mrf.mxu0
    %v3831 = vadd.f32 %v2846, %v3830
    %v3832 = vpop.f32.mrf.mxu0
    %3833 = vmatprep.mubr.f32.mxu0 0.0
    %3834 = vmatmul.mubr.f32.gmra.mxu0 %v2799
    %v3835 = vpop.f32.mrf.mxu0
    %v3836 = vadd.f32 %v2847, %v3835
    %v3837 = vpop.f32.mrf.mxu0
    %3838 = vmatprep.mubr.f32.mxu0 0.0
    %3839 = vmatmul.mubr.f32.gmra.mxu0 %v2800
    %v3840 = vpop.f32.mrf.mxu0
    %v3841 = vadd.f32 %v2848, %v3840
    %v3842 = vpop.f32.mrf.mxu0
    %3843 = vmatprep.mubr.f32.mxu0 0.0
    %3844 = vmatmul.mubr.f32.gmra.mxu0 %v2801
    %v3845 = vpop.f32.mrf.mxu0
    %v3846 = vadd.f32 %v2849, %v3845
    %v3847 = vpop.f32.mrf.mxu0
    %3848 = vmatprep.mubr.f32.mxu0 0.0
    %3849 = vmatmul.mubr.f32.gmra.mxu0 %v2802
    %v3850 = vpop.f32.mrf.mxu0
    %v3851 = vadd.f32 %v2850, %v3850
    %v3852 = vpop.f32.mrf.mxu0
    %3853 = vmatprep.mubr.f32.mxu0 0.0
    %3854 = vmatmul.mubr.f32.gmra.mxu0 %v2803
    %v3855 = vpop.f32.mrf.mxu0
    %v3856 = vadd.f32 %v2851, %v3855
    %v3857 = vpop.f32.mrf.mxu0
    %3858 = vmatprep.mubr.f32.mxu0 0.0
    %3859 = vmatmul.mubr.f32.gmra.mxu0 %v2804
    %v3860 = vpop.f32.mrf.mxu0
    %v3861 = vadd.f32 %v2852, %v3860
    %v3862 = vpop.f32.mrf.mxu0
    %3863 = vmatprep.mubr.f32.mxu0 0.0
    %3864 = vmatmul.mubr.f32.gmra.mxu0 %v2805
    %v3865 = vpop.f32.mrf.mxu0
    %v3866 = vadd.f32 %v2853, %v3865
    %v3867 = vpop.f32.mrf.mxu0
    %3868 = vdwg.mxu0
    %3885 = vrot.lane.b32.xlu0 %v3791, 1
    %v3886 = vpop.permute.xlu0 %3885
    %3887 = vrot.lane.b32.xlu0 %v3796, 1
    %v3888 = vpop.permute.xlu0 %3887
    %3889 = vrot.lane.b32.xlu0 %v3801, 1
    %v3890 = vpop.permute.xlu0 %3889
    %3891 = vrot.lane.b32.xlu0 %v3806, 1
    %v3892 = vpop.permute.xlu0 %3891
    %3893 = vrot.lane.b32.xlu0 %v3811, 1
    %v3894 = vpop.permute.xlu0 %3893
    %3895 = vrot.lane.b32.xlu0 %v3816, 1
    %v3896 = vpop.permute.xlu0 %3895
    %3897 = vrot.lane.b32.xlu0 %v3821, 1
    %v3898 = vpop.permute.xlu0 %3897
    %3899 = vrot.lane.b32.xlu0 %v3826, 1
    %v3900 = vpop.permute.xlu0 %3899
    %3901 = vrot.lane.b32.xlu0 %v3831, 1
    %v3902 = vpop.permute.xlu0 %3901
    %3903 = vrot.lane.b32.xlu0 %v3836, 1
    %v3904 = vpop.permute.xlu0 %3903
    %3905 = vrot.lane.b32.xlu0 %v3841, 1
    %v3906 = vpop.permute.xlu0 %3905
    %3907 = vrot.lane.b32.xlu0 %v3846, 1
    %v3908 = vpop.permute.xlu0 %3907
    %3909 = vrot.lane.b32.xlu0 %v3851, 1
    %v3910 = vpop.permute.xlu0 %3909
    %3911 = vrot.lane.b32.xlu0 %v3856, 1
    %v3912 = vpop.permute.xlu0 %3911
    %3913 = vrot.lane.b32.xlu0 %v3861, 1
    %v3914 = vpop.permute.xlu0 %3913
    %3915 = vrot.lane.b32.xlu0 %v3866, 1
    %v3916 = vpop.permute.xlu0 %3915
    %vm3933 = vcmask 15368
    %3934 = vst.msk [vmem:[%s17] sm:$0xff] %vm3933, %v3886
    %3935 = vst.msk [vmem:[%s17 + $0x8] sm:$0xff] %vm3933, %v3888
    %3936 = vst.msk [vmem:[%s17 + $0x10] sm:$0xff] %vm3933, %v3890
    %3937 = vst.msk [vmem:[%s17 + $0x18] sm:$0xff] %vm3933, %v3892
    %3938 = vst.msk [vmem:[%s17 + $0x20] sm:$0xff] %vm3933, %v3894
    %3939 = vst.msk [vmem:[%s17 + $0x28] sm:$0xff] %vm3933, %v3896
    %3940 = vst.msk [vmem:[%s17 + $0x30] sm:$0xff] %vm3933, %v3898
    %3941 = vst.msk [vmem:[%s17 + $0x38] sm:$0xff] %vm3933, %v3900
    %3942 = vst.msk [vmem:[%s17 + $0x40] sm:$0xff] %vm3933, %v3902
    %3943 = vst.msk [vmem:[%s17 + $0x48] sm:$0xff] %vm3933, %v3904
    %3944 = vst.msk [vmem:[%s17 + $0x50] sm:$0xff] %vm3933, %v3906
    %3945 = vst.msk [vmem:[%s17 + $0x58] sm:$0xff] %vm3933, %v3908
    %3946 = vst.msk [vmem:[%s17 + $0x60] sm:$0xff] %vm3933, %v3910
    %3947 = vst.msk [vmem:[%s17 + $0x68] sm:$0xff] %vm3933, %v3912
    %3948 = vst.msk [vmem:[%s17 + $0x70] sm:$0xff] %vm3933, %v3914
    %3949 = vst.msk [vmem:[%s17 + $0x78] sm:$0xff] %vm3933, %v3916
    // Predicated region
    $region106: #{tpu_custom_call.1} parent=1 // pred_check
      _
    $region107: #{tpu_custom_call.1} parent=1 // pred_check_branch
      %3951 = sbr.rel (0) target = $region109
    $region108: #{tpu_custom_call.1} parent=1 // pred_region
      _
    $region109: #{tpu_custom_call.1} parent=1 // pred_fallthru
      _
    // Predicated region
    $region110: #{tpu_custom_call.1} parent=1 // pred_check
      _
    $region111: #{tpu_custom_call.1} parent=1 // pred_check_branch
      %3953 = sbr.rel (0) target = $region113
    $region112: #{tpu_custom_call.1} parent=1 // pred_region
      _
    $region113: #{tpu_custom_call.1} parent=1 // pred_fallthru
      _
    %3954 = vsyncpa [#allocation3], 1
    %3955 = vsyncpa [#allocation5], 1
    %3956 = vsyncpa [#allocation8], 1
    %3957 = vsyncpa [#allocation11], 1
    %3958 = vsyncpa [#allocation14], 1

</llo_original>
